<compile_context>
chip_gen: v7x
topology: tpu7x:2x2x1
jax: 0.10.0
libtpu: 0.0.40
codegen_flags: <defaults>
</compile_context>

<pallas_src>
import jax
import jax.numpy as jnp
from jax import lax
from jax.experimental import pallas as pl
from jax.experimental.pallas import tpu as pltpu


def _round_up(x, m):
    return (x + m - 1) // m * m


# ---------------------------------------------------------------------------
# Pallas kernels
# ---------------------------------------------------------------------------
def gru_layer_kernel(x_ref, wih_ref, whh_ref, bias_ref, bhn_ref, out_ref,
                     h_scr, gi_scr):
    """One bidirectional GRU layer; grid axis 0 = direction (0=fwd, 1=bwd).

    x_ref   : (S, T, Bp, Din) bf16  shared input slabs (constant block)
    wih_ref : (S, Din, 2*GW)  bf16  fused input->hidden weights: fwd gates in
                                    lanes [0,GW), bwd gates in [GW,2GW),
                                    gate order (r,z,n), zero-padded to GW
    whh_ref : (H, 3H)         bf16  this direction's hidden->hidden weights
    bias_ref: (2, 1, GW)      f32   b_ih + [b_hr, b_hz, 0] per direction
    bhn_ref : (1, H)          f32   this direction's b_hn
    out_ref : (T, Bp, H)      bf16  this direction's hidden states
    h_scr   : (Bp, H)         f32   recurrent state
    gi_scr  : (2*T, Bp, GW)   f32   input projections for BOTH directions
                                    (persistent across the two grid steps)
    """
    S, T, Bp, Din = x_ref.shape
    H = whh_ref.shape[0]
    GW = gi_scr.shape[-1]
    d = pl.program_id(0)          # 0 = forward, 1 = backward (time-reversed)

    # ---- 1) Fused input->hidden projection for BOTH directions, computed once
    #         at d == 0 into the persistent gi scratch (one wide matmul instead
    #         of two narrow ones; lane split at GW is 128-aligned). ------------
    @pl.when(d == 0)
    def _():
        x0 = x_ref[0].reshape(T * Bp, Din)
        acc = jnp.dot(x0, wih_ref[0], preferred_element_type=jnp.float32)
        for s in range(1, S):     # static python loop (S is 1 or 2)
            xs = x_ref[s].reshape(T * Bp, Din)
            acc = acc + jnp.dot(xs, wih_ref[s],
                                preferred_element_type=jnp.float32)
        gi_scr[pl.ds(0, T)] = (acc[:, :GW] + bias_ref[0]).reshape(T, Bp, GW)
        gi_scr[pl.ds(T, T)] = (acc[:, GW:] + bias_ref[1]).reshape(T, Bp, GW)

    # ---- 2) Recurrent loop: one packed (Bp,H)@(H,3H) matmul per step, weights
    #         and biases hoisted, leading-axis (time) indexing only. -----------
    # TODO(synk): hold whh in MXU staging registers across the loop via
    # pltpu.matmul_push_rhs / matmul_acc_lhs / matmul_pop to drop the per-step
    # RHS push from the serial chain.
    whh = whh_ref[...]
    bhn = bhn_ref[...]
    h_scr[...] = jnp.zeros_like(h_scr)
    base = d * T                                  # gi rows for this direction

    def step(i, carry):
        # forward walks t = i, backward walks t = T-1-i (in-kernel reversal).
        t = i + d * (T - 1 - 2 * i)
        h_prev = h_scr[...]                                          # (Bp, H)
        gh = jnp.dot(h_prev.astype(jnp.bfloat16), whh,
                     preferred_element_type=jnp.float32)             # (Bp, 3H)
        gi = gi_scr[base + t]                                        # (Bp, GW)
        r = jax.nn.sigmoid(gi[:, :H] + gh[:, :H])
        z = jax.nn.sigmoid(gi[:, H:2 * H] + gh[:, H:2 * H])
        # b_hn must stay inside r * (h @ W_hn + b_hn) (PyTorch GRU); all other
        # biases are already folded into gi.
        n = jnp.tanh(gi[:, 2 * H:3 * H] + r * (gh[:, 2 * H:] + bhn))
        h_new = (1.0 - z) * n + z * h_prev
        h_scr[...] = h_new
        out_ref[t] = h_new.astype(out_ref.dtype)
        return carry

    lax.fori_loop(0, T, step, 0, unroll=True if T <= 32 else 8)


def fc_kernel(x_ref, w_ref, b_ref, o_ref):
    """Linear on direction-major slabs with lane-padded output.

    x_ref: (2, T, Bp, H) bf16 slabs, w_ref: (2, H, Cp) bf16, b_ref: (1, Cp) f32.
    fwd @ W[:H] + bwd @ W[H:] == Linear(concat([fwd, bwd], -1)) — no concat.
    """
    S, T, Bp, H = x_ref.shape
    Cp = w_ref.shape[-1]
    M = T * Bp
    acc = jnp.dot(x_ref[0].reshape(M, H), w_ref[0],
                  preferred_element_type=jnp.float32)
    acc = acc + jnp.dot(x_ref[1].reshape(M, H), w_ref[1],
                        preferred_element_type=jnp.float32)
    o_ref[...] = (acc + b_ref[...]).reshape(T, Bp, Cp)


# ---------------------------------------------------------------------------
# Wrappers
# ---------------------------------------------------------------------------
def gru_layer(x_slabs, w_ih, w_hh, bias_fused, b_hn):
    """x_slabs: (S, T, Bp, Din) bf16 -> (2, T, Bp, H) bf16 direction slabs."""
    S, T, Bp, Din = x_slabs.shape
    H = w_hh.shape[1]
    GW = w_ih.shape[-1] // 2
    return pl.pallas_call(
        gru_layer_kernel,
        out_shape=jax.ShapeDtypeStruct((2, T, Bp, H), jnp.bfloat16),
        grid_spec=pltpu.PrefetchScalarGridSpec(
            num_scalar_prefetch=0,
            grid=(2,),                                        # direction axis
            in_specs=[
                pl.BlockSpec((S, T, Bp, Din), lambda d: (0, 0, 0, 0)),
                pl.BlockSpec((S, Din, 2 * GW), lambda d: (0, 0, 0)),
                pl.BlockSpec((None, H, 3 * H), lambda d: (d, 0, 0)),
                pl.BlockSpec((2, 1, GW), lambda d: (0, 0, 0)),
                pl.BlockSpec((None, 1, H), lambda d: (d, 0, 0)),
            ],
            out_specs=pl.BlockSpec((None, T, Bp, H), lambda d: (d, 0, 0, 0)),
            scratch_shapes=[
                pltpu.VMEM((Bp, H), jnp.float32),           # recurrent state
                pltpu.VMEM((2 * T, Bp, GW), jnp.float32),   # fused input gates
            ],
        ),
        compiler_params=pltpu.CompilerParams(
            # d==1 consumes the gi scratch written at d==0 -> sequential axis.
            dimension_semantics=("arbitrary",),
        ),
        # TODO(synk): for production T on v7x (64 MiB VMEM), add an inner
        # T-chunk grid axis ("arbitrary") streaming x/gi/out per chunk with h
        # carried in scratch, set vmem_limit_bytes, and use
        # pipeline_mode=pl.Buffered(1) on the constant-index x/weight specs.
    )(x_slabs, w_ih, w_hh, bias_fused, b_hn)


def linear_from_slabs(x_slabs, w, b):
    """x_slabs: (2, T, Bp, H) bf16, w: (2, H, Cp) bf16, b: (1, Cp) f32."""
    _, T, Bp, H = x_slabs.shape
    Cp = w.shape[-1]
    # TODO(synk): tile over M (>=512-row blocks) for production T*Bp instead of
    # whole-array VMEM residency.
    return pl.pallas_call(
        fc_kernel,
        out_shape=jax.ShapeDtypeStruct((T, Bp, Cp), jnp.float32),
        in_specs=[pl.BlockSpec(memory_space=pltpu.MemorySpace.VMEM)] * 3,
        out_specs=pl.BlockSpec(memory_space=pltpu.MemorySpace.VMEM),
    )(x_slabs, w, b)


def birnn_forward(x, params, num_classes):
    """x: (T, B, input_size) f32 -> (T, B, num_classes) f32 (torch BiRNN, eval)."""
    T, B, D0 = x.shape
    Bp = _round_up(max(B, 1), 16)     # sublane-pad batch (16 for bf16 packing)

    # Pad batch with zeros and cast once to bf16: (1, T, Bp, D0) input slab.
    slabs = jnp.zeros((1, T, Bp, D0), jnp.bfloat16)
    slabs = slabs.at[0, :, :B, :].set(x.astype(jnp.bfloat16))

    for layer in params["gru"]:
        slabs = gru_layer(slabs, layer["w_ih"], layer["w_hh"],
                          layer["bias"], layer["b_hn"])
        # slabs: (2, T, Bp, H) bf16 dir-major; consumed directly by the next
        # layer / the FC, so no jnp.flip or jnp.concatenate HBM round-trips.
        # TODO(synk): inter-layer dropout (p=0.3) is training-only in PyTorch;
        # the inference forward applies no dropout, so it is omitted.

    logits = linear_from_slabs(slabs, params["fc_w"], params["fc_b"])
    return logits[:, :B, :num_classes]


# ---------------------------------------------------------------------------
# Deterministic parameter initialization (packed layout, same fan-in bounds as
# torch.nn.GRU / torch.nn.Linear).  Gate order along the 3H axis is (r, z, n).
# ---------------------------------------------------------------------------
def init_params(key, input_size, hidden_size, num_layers, num_classes):
    H = hidden_size
    GW = _round_up(3 * H, 128)        # per-direction gate width, lane-padded
    bound = 1.0 / float(H) ** 0.5
    layers = []
    for layer_idx in range(num_layers):
        S, Din = (1, input_size) if layer_idx == 0 else (2, H)
        key, k1, k2, k3, k4 = jax.random.split(key, 5)
        w_ih = jax.random.uniform(k1, (2, S, Din, 3 * H), jnp.float32, -bound, bound)
        w_hh = jax.random.uniform(k2, (2, H, 3 * H), jnp.float32, -bound, bound)
        b_ih = jax.random.uniform(k3, (2, 1, 3 * H), jnp.float32, -bound, bound)
        b_hh = jax.random.uniform(k4, (2, 1, 3 * H), jnp.float32, -bound, bound)

        # Fuse the two directions along the output (lane) axis, each padded to
        # GW so the per-direction block is a whole number of 128-lane tiles.
        w_ih_f = jnp.zeros((S, Din, 2 * GW), jnp.float32)
        for d in range(2):
            w_ih_f = w_ih_f.at[:, :, d * GW:d * GW + 3 * H].set(w_ih[d])

        # Fold b_hr, b_hz into the input-projection bias; keep b_hn separate.
        bias = jnp.zeros((2, 1, GW), jnp.float32)
        bias = bias.at[:, :, :3 * H].set(b_ih)
        bias = bias.at[:, :, :2 * H].add(b_hh[:, :, :2 * H])
        b_hn = b_hh[:, :, 2 * H:]                      # (2, 1, H)

        layers.append({
            "w_ih": w_ih_f.astype(jnp.bfloat16),   # bf16 matmul operands,
            "w_hh": w_hh.astype(jnp.bfloat16),     # f32 accumulation in-kernel
            "bias": bias,
            "b_hn": b_hn,
        })

    key, kw, kb = jax.random.split(key, 3)
    Cp = _round_up(num_classes, 128)               # lane-dense FC output
    fc_bound = 1.0 / float(2 * H) ** 0.5
    fc_w = jax.random.uniform(kw, (2, H, num_classes), jnp.float32, -fc_bound, fc_bound)
    fc_b = jax.random.uniform(kb, (1, num_classes), jnp.float32, -fc_bound, fc_bound)
    fc_w_p = jnp.zeros((2, H, Cp), jnp.float32).at[:, :, :num_classes].set(fc_w)
    fc_b_p = jnp.zeros((1, Cp), jnp.float32).at[:, :num_classes].set(fc_b)
    return {"gru": layers,
            "fc_w": fc_w_p.astype(jnp.bfloat16),
            "fc_b": fc_b_p}


# ---------------------------------------------------------------------------
# Main
# ---------------------------------------------------------------------------
if __name__ == "__main__":
    T, B = 8, 2            # seq_len, batch
    input_size = 16
    hidden_size = 32
    num_layers = 2
    num_classes = 11

    key = jax.random.PRNGKey(0)
    key, kx, kp = jax.random.split(key, 3)
    x = jax.random.normal(kx, (T, B, input_size), jnp.float32)
    params = init_params(kp, input_size, hidden_size, num_layers, num_classes)

    fwd = jax.jit(birnn_forward, static_argnums=(2,))
    out = fwd(x, params, num_classes)
    jax.block_until_ready(out)
    assert out.shape == (T, B, num_classes)
    assert bool(jnp.all(jnp.isfinite(out)))
    print("KERNEL_OK")
</pallas_src>

<mosaic_0001>
module attributes {stable_mosaic.version = 11 : i64} {
  func.func @gru_layer_kernel(%arg0: i32, %arg1: memref<1x8x16x16xbf16, #tpu.memory_space<vmem>>, %arg2: memref<1x16x256xbf16, #tpu.memory_space<vmem>>, %arg3: memref<1x32x96xbf16, #tpu.memory_space<vmem>>, %arg4: memref<2x1x128xf32, #tpu.memory_space<vmem>>, %arg5: memref<1x1x32xf32, #tpu.memory_space<vmem>>, %arg6: memref<1x8x16x32xbf16, #tpu.memory_space<vmem>>, %arg7: memref<16x32xf32, #tpu.memory_space<vmem>>, %arg8: memref<16x16x128xf32, #tpu.memory_space<vmem>>) attributes {dimension_semantics = [#tpu.dimension_semantics<arbitrary>], iteration_bounds = array<i64: 2>, scalar_prefetch = 0 : i64, scratch_operands = 2 : i64, tpu.core_type = #tpu.core_type<tc>, window_params = [{pipeline_mode = #tpu.pipeline_mode<synchronous>, transform_indices = @transform_0, window_bounds = array<i64: 1, 8, 16, 16>}, {pipeline_mode = #tpu.pipeline_mode<synchronous>, transform_indices = @transform_1, window_bounds = array<i64: 1, 16, 256>}, {transform_indices = @transform_2, window_bounds = array<i64: 1, 32, 96>}, {pipeline_mode = #tpu.pipeline_mode<synchronous>, transform_indices = @transform_3, window_bounds = array<i64: 2, 1, 128>}, {transform_indices = @transform_4, window_bounds = array<i64: 1, 1, 32>}, {transform_indices = @transform_5, window_bounds = array<i64: 1, 8, 16, 32>}]} {
    %c0_i32 = arith.constant 0 : i32
    %0 = arith.cmpi eq, %arg0, %c0_i32 : i32
    %1 = arith.extui %0 : i1 to i32
    %c0_i32_0 = arith.constant 0 : i32
    %2 = arith.cmpi ne, %1, %c0_i32_0 : i32
    scf.if %2 {
      %c0_130 = arith.constant 0 : index
      %c0_131 = arith.constant 0 : index
      %c0_132 = arith.constant 0 : index
      %c0_133 = arith.constant 0 : index
      %370 = vector.load %arg1[%c0_130, %c0_131, %c0_132, %c0_133] : memref<1x8x16x16xbf16, #tpu.memory_space<vmem>>, vector<1x8x16x16xbf16>
      %371 = vector.shape_cast %370 : vector<1x8x16x16xbf16> to vector<8x16x16xbf16>
      %372 = vector.shape_cast %371 : vector<8x16x16xbf16> to vector<128x16xbf16>
      %c0_134 = arith.constant 0 : index
      %c0_135 = arith.constant 0 : index
      %c0_136 = arith.constant 0 : index
      %373 = vector.load %arg2[%c0_134, %c0_135, %c0_136] : memref<1x16x256xbf16, #tpu.memory_space<vmem>>, vector<1x16x256xbf16>
      %374 = vector.shape_cast %373 : vector<1x16x256xbf16> to vector<16x256xbf16>
      %cst_137 = arith.constant dense<0.000000e+00> : vector<128x256xf32>
      %375 = tpu.matmul %372, %374, %cst_137 {dimension_numbers = #tpu.dot_dimension_numbers<[1], [0], [0], [1], [0, 0, 1, 1], [], []>} : vector<128x16xbf16>, vector<16x256xbf16>, vector<128x256xf32> -> vector<128x256xf32>
      %376 = vector.extract_strided_slice %375 {offsets = [0, 0], sizes = [128, 128], strides = [1, 1]} : vector<128x256xf32> to vector<128x128xf32>
      %c0_138 = arith.constant 0 : index
      %c0_139 = arith.constant 0 : index
      %c0_140 = arith.constant 0 : index
      %377 = vector.load %arg4[%c0_138, %c0_139, %c0_140] : memref<2x1x128xf32, #tpu.memory_space<vmem>>, vector<1x1x128xf32>
      %378 = vector.shape_cast %377 : vector<1x1x128xf32> to vector<1x128xf32>
      %379 = vector.broadcast %378 : vector<1x128xf32> to vector<128x128xf32>
      %380 = arith.addf %376, %379 : vector<128x128xf32>
      %381 = vector.shape_cast %380 : vector<128x128xf32> to vector<8x16x128xf32>
      %c0_141 = arith.constant 0 : index
      %c0_142 = arith.constant 0 : index
      %c0_143 = arith.constant 0 : index
      %382 = vector.load %arg8[%c0_141, %c0_142, %c0_143] : memref<16x16x128xf32, #tpu.memory_space<vmem>>, vector<8x16x128xf32>
      tpu.vector_store %arg8[%c0_141, %c0_142, %c0_143], %381 {strides = array<i32>} : memref<16x16x128xf32, #tpu.memory_space<vmem>>, vector<8x16x128xf32>,
      %383 = vector.extract_strided_slice %375 {offsets = [0, 128], sizes = [128, 128], strides = [1, 1]} : vector<128x256xf32> to vector<128x128xf32>
      %c1 = arith.constant 1 : index
      %c0_144 = arith.constant 0 : index
      %c0_145 = arith.constant 0 : index
      %384 = vector.load %arg4[%c1, %c0_144, %c0_145] : memref<2x1x128xf32, #tpu.memory_space<vmem>>, vector<1x1x128xf32>
      %385 = vector.shape_cast %384 : vector<1x1x128xf32> to vector<1x128xf32>
      %386 = vector.broadcast %385 : vector<1x128xf32> to vector<128x128xf32>
      %387 = arith.addf %383, %386 : vector<128x128xf32>
      %388 = vector.shape_cast %387 : vector<128x128xf32> to vector<8x16x128xf32>
      %c8 = arith.constant 8 : index
      %c0_146 = arith.constant 0 : index
      %c0_147 = arith.constant 0 : index
      %389 = vector.load %arg8[%c8, %c0_146, %c0_147] : memref<16x16x128xf32, #tpu.memory_space<vmem>>, vector<8x16x128xf32>
      tpu.vector_store %arg8[%c8, %c0_146, %c0_147], %388 {strides = array<i32>} : memref<16x16x128xf32, #tpu.memory_space<vmem>>, vector<8x16x128xf32>,
    } else {
    }
    %c0 = arith.constant 0 : index
    %c0_1 = arith.constant 0 : index
    %c0_2 = arith.constant 0 : index
    %3 = vector.load %arg3[%c0, %c0_1, %c0_2] : memref<1x32x96xbf16, #tpu.memory_space<vmem>>, vector<1x32x96xbf16>
    %4 = vector.shape_cast %3 : vector<1x32x96xbf16> to vector<32x96xbf16>
    %c0_3 = arith.constant 0 : index
    %c0_4 = arith.constant 0 : index
    %c0_5 = arith.constant 0 : index
    %5 = vector.load %arg5[%c0_3, %c0_4, %c0_5] : memref<1x1x32xf32, #tpu.memory_space<vmem>>, vector<1x1x32xf32>
    %6 = vector.shape_cast %5 : vector<1x1x32xf32> to vector<1x32xf32>
    %cst = arith.constant 0.000000e+00 : f32
    %7 = vector.broadcast %cst : f32 to vector<16x32xf32>
    %c0_6 = arith.constant 0 : index
    %c0_7 = arith.constant 0 : index
    %8 = vector.load %arg7[%c0_6, %c0_7] : memref<16x32xf32, #tpu.memory_space<vmem>>, vector<16x32xf32>
    tpu.vector_store %arg7[%c0_6, %c0_7], %7 {strides = array<i32>} : memref<16x32xf32, #tpu.memory_space<vmem>>, vector<16x32xf32>,
    %c8_i32 = arith.constant 8 : i32
    %9 = arith.muli %arg0, %c8_i32 : i32
    %c0_i32_8 = arith.constant 0 : i32
    %c2_i32 = arith.constant 2 : i32
    %10 = arith.muli %c2_i32, %c0_i32_8 : i32
    %c7_i32 = arith.constant 7 : i32
    %11 = arith.subi %c7_i32, %10 : i32
    %12 = arith.muli %arg0, %11 : i32
    %13 = arith.addi %c0_i32_8, %12 : i32
    %c0_9 = arith.constant 0 : index
    %c0_10 = arith.constant 0 : index
    %14 = vector.load %arg7[%c0_9, %c0_10] : memref<16x32xf32, #tpu.memory_space<vmem>>, vector<16x32xf32>
    %15 = arith.truncf %14 : vector<16x32xf32> to vector<16x32xbf16>
    %cst_11 = arith.constant dense<0.000000e+00> : vector<16x96xf32>
    %16 = tpu.matmul %15, %4, %cst_11 {dimension_numbers = #tpu.dot_dimension_numbers<[1], [0], [0], [1], [0, 0, 1, 1], [], []>} : vector<16x32xbf16>, vector<32x96xbf16>, vector<16x96xf32> -> vector<16x96xf32>
    %17 = arith.addi %9, %13 : i32
    %18 = arith.index_cast %17 : i32 to index
    %c0_12 = arith.constant 0 : index
    %c0_13 = arith.constant 0 : index
    %19 = vector.load %arg8[%18, %c0_12, %c0_13] : memref<16x16x128xf32, #tpu.memory_space<vmem>>, vector<1x16x128xf32>
    %20 = vector.shape_cast %19 : vector<1x16x128xf32> to vector<16x128xf32>
    %21 = vector.extract_strided_slice %20 {offsets = [0, 0], sizes = [16, 32], strides = [1, 1]} : vector<16x128xf32> to vector<16x32xf32>
    %22 = vector.extract_strided_slice %16 {offsets = [0, 0], sizes = [16, 32], strides = [1, 1]} : vector<16x96xf32> to vector<16x32xf32>
    %23 = arith.addf %21, %22 : vector<16x32xf32>
    %24 = arith.negf %23 : vector<16x32xf32>
    %25 = math.exp %24 : vector<16x32xf32>
    %cst_14 = arith.constant 1.000000e+00 : f32
    %26 = vector.broadcast %cst_14 : f32 to vector<16x32xf32>
    %27 = arith.addf %26, %25 : vector<16x32xf32>
    %28 = arith.divf %26, %27 : vector<16x32xf32>
    %29 = vector.extract_strided_slice %20 {offsets = [0, 32], sizes = [16, 32], strides = [1, 1]} : vector<16x128xf32> to vector<16x32xf32>
    %30 = vector.extract_strided_slice %16 {offsets = [0, 32], sizes = [16, 32], strides = [1, 1]} : vector<16x96xf32> to vector<16x32xf32>
    %31 = arith.addf %29, %30 : vector<16x32xf32>
    %32 = arith.negf %31 : vector<16x32xf32>
    %33 = math.exp %32 : vector<16x32xf32>
    %cst_15 = arith.constant 1.000000e+00 : f32
    %34 = vector.broadcast %cst_15 : f32 to vector<16x32xf32>
    %35 = arith.addf %34, %33 : vector<16x32xf32>
    %36 = arith.divf %34, %35 : vector<16x32xf32>
    %37 = vector.extract_strided_slice %20 {offsets = [0, 64], sizes = [16, 32], strides = [1, 1]} : vector<16x128xf32> to vector<16x32xf32>
    %38 = vector.extract_strided_slice %16 {offsets = [0, 64], sizes = [16, 32], strides = [1, 1]} : vector<16x96xf32> to vector<16x32xf32>
    %39 = vector.broadcast %6 : vector<1x32xf32> to vector<16x32xf32>
    %40 = arith.addf %38, %39 : vector<16x32xf32>
    %41 = arith.mulf %28, %40 : vector<16x32xf32>
    %42 = arith.addf %37, %41 : vector<16x32xf32>
    %43 = math.tanh %42 : vector<16x32xf32>
    %cst_16 = arith.constant 1.000000e+00 : f32
    %44 = vector.broadcast %cst_16 : f32 to vector<16x32xf32>
    %45 = arith.subf %44, %36 : vector<16x32xf32>
    %46 = arith.mulf %45, %43 : vector<16x32xf32>
    %47 = arith.mulf %36, %14 : vector<16x32xf32>
    %48 = arith.addf %46, %47 : vector<16x32xf32>
    %c0_17 = arith.constant 0 : index
    %c0_18 = arith.constant 0 : index
    %49 = vector.load %arg7[%c0_17, %c0_18] : memref<16x32xf32, #tpu.memory_space<vmem>>, vector<16x32xf32>
    tpu.vector_store %arg7[%c0_17, %c0_18], %48 {strides = array<i32>} : memref<16x32xf32, #tpu.memory_space<vmem>>, vector<16x32xf32>,
    %50 = arith.truncf %48 : vector<16x32xf32> to vector<16x32xbf16>
    %c0_19 = arith.constant 0 : index
    %51 = arith.index_cast %13 : i32 to index
    %c0_20 = arith.constant 0 : index
    %c0_21 = arith.constant 0 : index
    %52 = vector.load %arg6[%c0_19, %51, %c0_20, %c0_21] : memref<1x8x16x32xbf16, #tpu.memory_space<vmem>>, vector<1x1x16x32xbf16>
    %53 = vector.shape_cast %52 : vector<1x1x16x32xbf16> to vector<16x32xbf16>
    %54 = vector.shape_cast %50 : vector<16x32xbf16> to vector<1x1x16x32xbf16>
    tpu.vector_store %arg6[%c0_19, %51, %c0_20, %c0_21], %54 {strides = array<i32>} : memref<1x8x16x32xbf16, #tpu.memory_space<vmem>>, vector<1x1x16x32xbf16>,
    %c1_i32 = arith.constant 1 : i32
    %c2_i32_22 = arith.constant 2 : i32
    %55 = arith.muli %c2_i32_22, %c1_i32 : i32
    %c7_i32_23 = arith.constant 7 : i32
    %56 = arith.subi %c7_i32_23, %55 : i32
    %57 = arith.muli %arg0, %56 : i32
    %58 = arith.addi %c1_i32, %57 : i32
    %c0_24 = arith.constant 0 : index
    %c0_25 = arith.constant 0 : index
    %59 = vector.load %arg7[%c0_24, %c0_25] : memref<16x32xf32, #tpu.memory_space<vmem>>, vector<16x32xf32>
    %60 = arith.truncf %59 : vector<16x32xf32> to vector<16x32xbf16>
    %cst_26 = arith.constant dense<0.000000e+00> : vector<16x96xf32>
    %61 = tpu.matmul %60, %4, %cst_26 {dimension_numbers = #tpu.dot_dimension_numbers<[1], [0], [0], [1], [0, 0, 1, 1], [], []>} : vector<16x32xbf16>, vector<32x96xbf16>, vector<16x96xf32> -> vector<16x96xf32>
    %62 = arith.addi %9, %58 : i32
    %63 = arith.index_cast %62 : i32 to index
    %c0_27 = arith.constant 0 : index
    %c0_28 = arith.constant 0 : index
    %64 = vector.load %arg8[%63, %c0_27, %c0_28] : memref<16x16x128xf32, #tpu.memory_space<vmem>>, vector<1x16x128xf32>
    %65 = vector.shape_cast %64 : vector<1x16x128xf32> to vector<16x128xf32>
    %66 = vector.extract_strided_slice %65 {offsets = [0, 0], sizes = [16, 32], strides = [1, 1]} : vector<16x128xf32> to vector<16x32xf32>
    %67 = vector.extract_strided_slice %61 {offsets = [0, 0], sizes = [16, 32], strides = [1, 1]} : vector<16x96xf32> to vector<16x32xf32>
    %68 = arith.addf %66, %67 : vector<16x32xf32>
    %69 = arith.negf %68 : vector<16x32xf32>
    %70 = math.exp %69 : vector<16x32xf32>
    %cst_29 = arith.constant 1.000000e+00 : f32
    %71 = vector.broadcast %cst_29 : f32 to vector<16x32xf32>
    %72 = arith.addf %71, %70 : vector<16x32xf32>
    %73 = arith.divf %71, %72 : vector<16x32xf32>
    %74 = vector.extract_strided_slice %65 {offsets = [0, 32], sizes = [16, 32], strides = [1, 1]} : vector<16x128xf32> to vector<16x32xf32>
    %75 = vector.extract_strided_slice %61 {offsets = [0, 32], sizes = [16, 32], strides = [1, 1]} : vector<16x96xf32> to vector<16x32xf32>
    %76 = arith.addf %74, %75 : vector<16x32xf32>
    %77 = arith.negf %76 : vector<16x32xf32>
    %78 = math.exp %77 : vector<16x32xf32>
    %cst_30 = arith.constant 1.000000e+00 : f32
    %79 = vector.broadcast %cst_30 : f32 to vector<16x32xf32>
    %80 = arith.addf %79, %78 : vector<16x32xf32>
    %81 = arith.divf %79, %80 : vector<16x32xf32>
    %82 = vector.extract_strided_slice %65 {offsets = [0, 64], sizes = [16, 32], strides = [1, 1]} : vector<16x128xf32> to vector<16x32xf32>
    %83 = vector.extract_strided_slice %61 {offsets = [0, 64], sizes = [16, 32], strides = [1, 1]} : vector<16x96xf32> to vector<16x32xf32>
    %84 = vector.broadcast %6 : vector<1x32xf32> to vector<16x32xf32>
    %85 = arith.addf %83, %84 : vector<16x32xf32>
    %86 = arith.mulf %73, %85 : vector<16x32xf32>
    %87 = arith.addf %82, %86 : vector<16x32xf32>
    %88 = math.tanh %87 : vector<16x32xf32>
    %cst_31 = arith.constant 1.000000e+00 : f32
    %89 = vector.broadcast %cst_31 : f32 to vector<16x32xf32>
    %90 = arith.subf %89, %81 : vector<16x32xf32>
    %91 = arith.mulf %90, %88 : vector<16x32xf32>
    %92 = arith.mulf %81, %59 : vector<16x32xf32>
    %93 = arith.addf %91, %92 : vector<16x32xf32>
    %c0_32 = arith.constant 0 : index
    %c0_33 = arith.constant 0 : index
    %94 = vector.load %arg7[%c0_32, %c0_33] : memref<16x32xf32, #tpu.memory_space<vmem>>, vector<16x32xf32>
    tpu.vector_store %arg7[%c0_32, %c0_33], %93 {strides = array<i32>} : memref<16x32xf32, #tpu.memory_space<vmem>>, vector<16x32xf32>,
    %95 = arith.truncf %93 : vector<16x32xf32> to vector<16x32xbf16>
    %c0_34 = arith.constant 0 : index
    %96 = arith.index_cast %58 : i32 to index
    %c0_35 = arith.constant 0 : index
    %c0_36 = arith.constant 0 : index
    %97 = vector.load %arg6[%c0_34, %96, %c0_35, %c0_36] : memref<1x8x16x32xbf16, #tpu.memory_space<vmem>>, vector<1x1x16x32xbf16>
    %98 = vector.shape_cast %97 : vector<1x1x16x32xbf16> to vector<16x32xbf16>
    %99 = vector.shape_cast %95 : vector<16x32xbf16> to vector<1x1x16x32xbf16>
    tpu.vector_store %arg6[%c0_34, %96, %c0_35, %c0_36], %99 {strides = array<i32>} : memref<1x8x16x32xbf16, #tpu.memory_space<vmem>>, vector<1x1x16x32xbf16>,
    %c2_i32_37 = arith.constant 2 : i32
    %c2_i32_38 = arith.constant 2 : i32
    %100 = arith.muli %c2_i32_38, %c2_i32_37 : i32
    %c7_i32_39 = arith.constant 7 : i32
    %101 = arith.subi %c7_i32_39, %100 : i32
    %102 = arith.muli %arg0, %101 : i32
    %103 = arith.addi %c2_i32_37, %102 : i32
    %c0_40 = arith.constant 0 : index
    %c0_41 = arith.constant 0 : index
    %104 = vector.load %arg7[%c0_40, %c0_41] : memref<16x32xf32, #tpu.memory_space<vmem>>, vector<16x32xf32>
    %105 = arith.truncf %104 : vector<16x32xf32> to vector<16x32xbf16>
    %cst_42 = arith.constant dense<0.000000e+00> : vector<16x96xf32>
    %106 = tpu.matmul %105, %4, %cst_42 {dimension_numbers = #tpu.dot_dimension_numbers<[1], [0], [0], [1], [0, 0, 1, 1], [], []>} : vector<16x32xbf16>, vector<32x96xbf16>, vector<16x96xf32> -> vector<16x96xf32>
    %107 = arith.addi %9, %103 : i32
    %108 = arith.index_cast %107 : i32 to index
    %c0_43 = arith.constant 0 : index
    %c0_44 = arith.constant 0 : index
    %109 = vector.load %arg8[%108, %c0_43, %c0_44] : memref<16x16x128xf32, #tpu.memory_space<vmem>>, vector<1x16x128xf32>
    %110 = vector.shape_cast %109 : vector<1x16x128xf32> to vector<16x128xf32>
    %111 = vector.extract_strided_slice %110 {offsets = [0, 0], sizes = [16, 32], strides = [1, 1]} : vector<16x128xf32> to vector<16x32xf32>
    %112 = vector.extract_strided_slice %106 {offsets = [0, 0], sizes = [16, 32], strides = [1, 1]} : vector<16x96xf32> to vector<16x32xf32>
    %113 = arith.addf %111, %112 : vector<16x32xf32>
    %114 = arith.negf %113 : vector<16x32xf32>
    %115 = math.exp %114 : vector<16x32xf32>
    %cst_45 = arith.constant 1.000000e+00 : f32
    %116 = vector.broadcast %cst_45 : f32 to vector<16x32xf32>
    %117 = arith.addf %116, %115 : vector<16x32xf32>
    %118 = arith.divf %116, %117 : vector<16x32xf32>
    %119 = vector.extract_strided_slice %110 {offsets = [0, 32], sizes = [16, 32], strides = [1, 1]} : vector<16x128xf32> to vector<16x32xf32>
    %120 = vector.extract_strided_slice %106 {offsets = [0, 32], sizes = [16, 32], strides = [1, 1]} : vector<16x96xf32> to vector<16x32xf32>
    %121 = arith.addf %119, %120 : vector<16x32xf32>
    %122 = arith.negf %121 : vector<16x32xf32>
    %123 = math.exp %122 : vector<16x32xf32>
    %cst_46 = arith.constant 1.000000e+00 : f32
    %124 = vector.broadcast %cst_46 : f32 to vector<16x32xf32>
    %125 = arith.addf %124, %123 : vector<16x32xf32>
    %126 = arith.divf %124, %125 : vector<16x32xf32>
    %127 = vector.extract_strided_slice %110 {offsets = [0, 64], sizes = [16, 32], strides = [1, 1]} : vector<16x128xf32> to vector<16x32xf32>
    %128 = vector.extract_strided_slice %106 {offsets = [0, 64], sizes = [16, 32], strides = [1, 1]} : vector<16x96xf32> to vector<16x32xf32>
    %129 = vector.broadcast %6 : vector<1x32xf32> to vector<16x32xf32>
    %130 = arith.addf %128, %129 : vector<16x32xf32>
    %131 = arith.mulf %118, %130 : vector<16x32xf32>
    %132 = arith.addf %127, %131 : vector<16x32xf32>
    %133 = math.tanh %132 : vector<16x32xf32>
    %cst_47 = arith.constant 1.000000e+00 : f32
    %134 = vector.broadcast %cst_47 : f32 to vector<16x32xf32>
    %135 = arith.subf %134, %126 : vector<16x32xf32>
    %136 = arith.mulf %135, %133 : vector<16x32xf32>
    %137 = arith.mulf %126, %104 : vector<16x32xf32>
    %138 = arith.addf %136, %137 : vector<16x32xf32>
    %c0_48 = arith.constant 0 : index
    %c0_49 = arith.constant 0 : index
    %139 = vector.load %arg7[%c0_48, %c0_49] : memref<16x32xf32, #tpu.memory_space<vmem>>, vector<16x32xf32>
    tpu.vector_store %arg7[%c0_48, %c0_49], %138 {strides = array<i32>} : memref<16x32xf32, #tpu.memory_space<vmem>>, vector<16x32xf32>,
    %140 = arith.truncf %138 : vector<16x32xf32> to vector<16x32xbf16>
    %c0_50 = arith.constant 0 : index
    %141 = arith.index_cast %103 : i32 to index
    %c0_51 = arith.constant 0 : index
    %c0_52 = arith.constant 0 : index
    %142 = vector.load %arg6[%c0_50, %141, %c0_51, %c0_52] : memref<1x8x16x32xbf16, #tpu.memory_space<vmem>>, vector<1x1x16x32xbf16>
    %143 = vector.shape_cast %142 : vector<1x1x16x32xbf16> to vector<16x32xbf16>
    %144 = vector.shape_cast %140 : vector<16x32xbf16> to vector<1x1x16x32xbf16>
    tpu.vector_store %arg6[%c0_50, %141, %c0_51, %c0_52], %144 {strides = array<i32>} : memref<1x8x16x32xbf16, #tpu.memory_space<vmem>>, vector<1x1x16x32xbf16>,
    %c3_i32 = arith.constant 3 : i32
    %c2_i32_53 = arith.constant 2 : i32
    %145 = arith.muli %c2_i32_53, %c3_i32 : i32
    %c7_i32_54 = arith.constant 7 : i32
    %146 = arith.subi %c7_i32_54, %145 : i32
    %147 = arith.muli %arg0, %146 : i32
    %148 = arith.addi %c3_i32, %147 : i32
    %c0_55 = arith.constant 0 : index
    %c0_56 = arith.constant 0 : index
    %149 = vector.load %arg7[%c0_55, %c0_56] : memref<16x32xf32, #tpu.memory_space<vmem>>, vector<16x32xf32>
    %150 = arith.truncf %149 : vector<16x32xf32> to vector<16x32xbf16>
    %cst_57 = arith.constant dense<0.000000e+00> : vector<16x96xf32>
    %151 = tpu.matmul %150, %4, %cst_57 {dimension_numbers = #tpu.dot_dimension_numbers<[1], [0], [0], [1], [0, 0, 1, 1], [], []>} : vector<16x32xbf16>, vector<32x96xbf16>, vector<16x96xf32> -> vector<16x96xf32>
    %152 = arith.addi %9, %148 : i32
    %153 = arith.index_cast %152 : i32 to index
    %c0_58 = arith.constant 0 : index
    %c0_59 = arith.constant 0 : index
    %154 = vector.load %arg8[%153, %c0_58, %c0_59] : memref<16x16x128xf32, #tpu.memory_space<vmem>>, vector<1x16x128xf32>
    %155 = vector.shape_cast %154 : vector<1x16x128xf32> to vector<16x128xf32>
    %156 = vector.extract_strided_slice %155 {offsets = [0, 0], sizes = [16, 32], strides = [1, 1]} : vector<16x128xf32> to vector<16x32xf32>
    %157 = vector.extract_strided_slice %151 {offsets = [0, 0], sizes = [16, 32], strides = [1, 1]} : vector<16x96xf32> to vector<16x32xf32>
    %158 = arith.addf %156, %157 : vector<16x32xf32>
    %159 = arith.negf %158 : vector<16x32xf32>
    %160 = math.exp %159 : vector<16x32xf32>
    %cst_60 = arith.constant 1.000000e+00 : f32
    %161 = vector.broadcast %cst_60 : f32 to vector<16x32xf32>
    %162 = arith.addf %161, %160 : vector<16x32xf32>
    %163 = arith.divf %161, %162 : vector<16x32xf32>
    %164 = vector.extract_strided_slice %155 {offsets = [0, 32], sizes = [16, 32], strides = [1, 1]} : vector<16x128xf32> to vector<16x32xf32>
    %165 = vector.extract_strided_slice %151 {offsets = [0, 32], sizes = [16, 32], strides = [1, 1]} : vector<16x96xf32> to vector<16x32xf32>
    %166 = arith.addf %164, %165 : vector<16x32xf32>
    %167 = arith.negf %166 : vector<16x32xf32>
    %168 = math.exp %167 : vector<16x32xf32>
    %cst_61 = arith.constant 1.000000e+00 : f32
    %169 = vector.broadcast %cst_61 : f32 to vector<16x32xf32>
    %170 = arith.addf %169, %168 : vector<16x32xf32>
    %171 = arith.divf %169, %170 : vector<16x32xf32>
    %172 = vector.extract_strided_slice %155 {offsets = [0, 64], sizes = [16, 32], strides = [1, 1]} : vector<16x128xf32> to vector<16x32xf32>
    %173 = vector.extract_strided_slice %151 {offsets = [0, 64], sizes = [16, 32], strides = [1, 1]} : vector<16x96xf32> to vector<16x32xf32>
    %174 = vector.broadcast %6 : vector<1x32xf32> to vector<16x32xf32>
    %175 = arith.addf %173, %174 : vector<16x32xf32>
    %176 = arith.mulf %163, %175 : vector<16x32xf32>
    %177 = arith.addf %172, %176 : vector<16x32xf32>
    %178 = math.tanh %177 : vector<16x32xf32>
    %cst_62 = arith.constant 1.000000e+00 : f32
    %179 = vector.broadcast %cst_62 : f32 to vector<16x32xf32>
    %180 = arith.subf %179, %171 : vector<16x32xf32>
    %181 = arith.mulf %180, %178 : vector<16x32xf32>
    %182 = arith.mulf %171, %149 : vector<16x32xf32>
    %183 = arith.addf %181, %182 : vector<16x32xf32>
    %c0_63 = arith.constant 0 : index
    %c0_64 = arith.constant 0 : index
    %184 = vector.load %arg7[%c0_63, %c0_64] : memref<16x32xf32, #tpu.memory_space<vmem>>, vector<16x32xf32>
    tpu.vector_store %arg7[%c0_63, %c0_64], %183 {strides = array<i32>} : memref<16x32xf32, #tpu.memory_space<vmem>>, vector<16x32xf32>,
    %185 = arith.truncf %183 : vector<16x32xf32> to vector<16x32xbf16>
    %c0_65 = arith.constant 0 : index
    %186 = arith.index_cast %148 : i32 to index
    %c0_66 = arith.constant 0 : index
    %c0_67 = arith.constant 0 : index
    %187 = vector.load %arg6[%c0_65, %186, %c0_66, %c0_67] : memref<1x8x16x32xbf16, #tpu.memory_space<vmem>>, vector<1x1x16x32xbf16>
    %188 = vector.shape_cast %187 : vector<1x1x16x32xbf16> to vector<16x32xbf16>
    %189 = vector.shape_cast %185 : vector<16x32xbf16> to vector<1x1x16x32xbf16>
    tpu.vector_store %arg6[%c0_65, %186, %c0_66, %c0_67], %189 {strides = array<i32>} : memref<1x8x16x32xbf16, #tpu.memory_space<vmem>>, vector<1x1x16x32xbf16>,
    %c4_i32 = arith.constant 4 : i32
    %c2_i32_68 = arith.constant 2 : i32
    %190 = arith.muli %c2_i32_68, %c4_i32 : i32
    %c7_i32_69 = arith.constant 7 : i32
    %191 = arith.subi %c7_i32_69, %190 : i32
    %192 = arith.muli %arg0, %191 : i32
    %193 = arith.addi %c4_i32, %192 : i32
    %c0_70 = arith.constant 0 : index
    %c0_71 = arith.constant 0 : index
    %194 = vector.load %arg7[%c0_70, %c0_71] : memref<16x32xf32, #tpu.memory_space<vmem>>, vector<16x32xf32>
    %195 = arith.truncf %194 : vector<16x32xf32> to vector<16x32xbf16>
    %cst_72 = arith.constant dense<0.000000e+00> : vector<16x96xf32>
    %196 = tpu.matmul %195, %4, %cst_72 {dimension_numbers = #tpu.dot_dimension_numbers<[1], [0], [0], [1], [0, 0, 1, 1], [], []>} : vector<16x32xbf16>, vector<32x96xbf16>, vector<16x96xf32> -> vector<16x96xf32>
    %197 = arith.addi %9, %193 : i32
    %198 = arith.index_cast %197 : i32 to index
    %c0_73 = arith.constant 0 : index
    %c0_74 = arith.constant 0 : index
    %199 = vector.load %arg8[%198, %c0_73, %c0_74] : memref<16x16x128xf32, #tpu.memory_space<vmem>>, vector<1x16x128xf32>
    %200 = vector.shape_cast %199 : vector<1x16x128xf32> to vector<16x128xf32>
    %201 = vector.extract_strided_slice %200 {offsets = [0, 0], sizes = [16, 32], strides = [1, 1]} : vector<16x128xf32> to vector<16x32xf32>
    %202 = vector.extract_strided_slice %196 {offsets = [0, 0], sizes = [16, 32], strides = [1, 1]} : vector<16x96xf32> to vector<16x32xf32>
    %203 = arith.addf %201, %202 : vector<16x32xf32>
    %204 = arith.negf %203 : vector<16x32xf32>
    %205 = math.exp %204 : vector<16x32xf32>
    %cst_75 = arith.constant 1.000000e+00 : f32
    %206 = vector.broadcast %cst_75 : f32 to vector<16x32xf32>
    %207 = arith.addf %206, %205 : vector<16x32xf32>
    %208 = arith.divf %206, %207 : vector<16x32xf32>
    %209 = vector.extract_strided_slice %200 {offsets = [0, 32], sizes = [16, 32], strides = [1, 1]} : vector<16x128xf32> to vector<16x32xf32>
    %210 = vector.extract_strided_slice %196 {offsets = [0, 32], sizes = [16, 32], strides = [1, 1]} : vector<16x96xf32> to vector<16x32xf32>
    %211 = arith.addf %209, %210 : vector<16x32xf32>
    %212 = arith.negf %211 : vector<16x32xf32>
    %213 = math.exp %212 : vector<16x32xf32>
    %cst_76 = arith.constant 1.000000e+00 : f32
    %214 = vector.broadcast %cst_76 : f32 to vector<16x32xf32>
    %215 = arith.addf %214, %213 : vector<16x32xf32>
    %216 = arith.divf %214, %215 : vector<16x32xf32>
    %217 = vector.extract_strided_slice %200 {offsets = [0, 64], sizes = [16, 32], strides = [1, 1]} : vector<16x128xf32> to vector<16x32xf32>
    %218 = vector.extract_strided_slice %196 {offsets = [0, 64], sizes = [16, 32], strides = [1, 1]} : vector<16x96xf32> to vector<16x32xf32>
    %219 = vector.broadcast %6 : vector<1x32xf32> to vector<16x32xf32>
    %220 = arith.addf %218, %219 : vector<16x32xf32>
    %221 = arith.mulf %208, %220 : vector<16x32xf32>
    %222 = arith.addf %217, %221 : vector<16x32xf32>
    %223 = math.tanh %222 : vector<16x32xf32>
    %cst_77 = arith.constant 1.000000e+00 : f32
    %224 = vector.broadcast %cst_77 : f32 to vector<16x32xf32>
    %225 = arith.subf %224, %216 : vector<16x32xf32>
    %226 = arith.mulf %225, %223 : vector<16x32xf32>
    %227 = arith.mulf %216, %194 : vector<16x32xf32>
    %228 = arith.addf %226, %227 : vector<16x32xf32>
    %c0_78 = arith.constant 0 : index
    %c0_79 = arith.constant 0 : index
    %229 = vector.load %arg7[%c0_78, %c0_79] : memref<16x32xf32, #tpu.memory_space<vmem>>, vector<16x32xf32>
    tpu.vector_store %arg7[%c0_78, %c0_79], %228 {strides = array<i32>} : memref<16x32xf32, #tpu.memory_space<vmem>>, vector<16x32xf32>,
    %230 = arith.truncf %228 : vector<16x32xf32> to vector<16x32xbf16>
    %c0_80 = arith.constant 0 : index
    %231 = arith.index_cast %193 : i32 to index
    %c0_81 = arith.constant 0 : index
    %c0_82 = arith.constant 0 : index
    %232 = vector.load %arg6[%c0_80, %231, %c0_81, %c0_82] : memref<1x8x16x32xbf16, #tpu.memory_space<vmem>>, vector<1x1x16x32xbf16>
    %233 = vector.shape_cast %232 : vector<1x1x16x32xbf16> to vector<16x32xbf16>
    %234 = vector.shape_cast %230 : vector<16x32xbf16> to vector<1x1x16x32xbf16>
    tpu.vector_store %arg6[%c0_80, %231, %c0_81, %c0_82], %234 {strides = array<i32>} : memref<1x8x16x32xbf16, #tpu.memory_space<vmem>>, vector<1x1x16x32xbf16>,
    %c5_i32 = arith.constant 5 : i32
    %c2_i32_83 = arith.constant 2 : i32
    %235 = arith.muli %c2_i32_83, %c5_i32 : i32
    %c7_i32_84 = arith.constant 7 : i32
    %236 = arith.subi %c7_i32_84, %235 : i32
    %237 = arith.muli %arg0, %236 : i32
    %238 = arith.addi %c5_i32, %237 : i32
    %c0_85 = arith.constant 0 : index
    %c0_86 = arith.constant 0 : index
    %239 = vector.load %arg7[%c0_85, %c0_86] : memref<16x32xf32, #tpu.memory_space<vmem>>, vector<16x32xf32>
    %240 = arith.truncf %239 : vector<16x32xf32> to vector<16x32xbf16>
    %cst_87 = arith.constant dense<0.000000e+00> : vector<16x96xf32>
    %241 = tpu.matmul %240, %4, %cst_87 {dimension_numbers = #tpu.dot_dimension_numbers<[1], [0], [0], [1], [0, 0, 1, 1], [], []>} : vector<16x32xbf16>, vector<32x96xbf16>, vector<16x96xf32> -> vector<16x96xf32>
    %242 = arith.addi %9, %238 : i32
    %243 = arith.index_cast %242 : i32 to index
    %c0_88 = arith.constant 0 : index
    %c0_89 = arith.constant 0 : index
    %244 = vector.load %arg8[%243, %c0_88, %c0_89] : memref<16x16x128xf32, #tpu.memory_space<vmem>>, vector<1x16x128xf32>
    %245 = vector.shape_cast %244 : vector<1x16x128xf32> to vector<16x128xf32>
    %246 = vector.extract_strided_slice %245 {offsets = [0, 0], sizes = [16, 32], strides = [1, 1]} : vector<16x128xf32> to vector<16x32xf32>
    %247 = vector.extract_strided_slice %241 {offsets = [0, 0], sizes = [16, 32], strides = [1, 1]} : vector<16x96xf32> to vector<16x32xf32>
    %248 = arith.addf %246, %247 : vector<16x32xf32>
    %249 = arith.negf %248 : vector<16x32xf32>
    %250 = math.exp %249 : vector<16x32xf32>
    %cst_90 = arith.constant 1.000000e+00 : f32
    %251 = vector.broadcast %cst_90 : f32 to vector<16x32xf32>
    %252 = arith.addf %251, %250 : vector<16x32xf32>
    %253 = arith.divf %251, %252 : vector<16x32xf32>
    %254 = vector.extract_strided_slice %245 {offsets = [0, 32], sizes = [16, 32], strides = [1, 1]} : vector<16x128xf32> to vector<16x32xf32>
    %255 = vector.extract_strided_slice %241 {offsets = [0, 32], sizes = [16, 32], strides = [1, 1]} : vector<16x96xf32> to vector<16x32xf32>
    %256 = arith.addf %254, %255 : vector<16x32xf32>
    %257 = arith.negf %256 : vector<16x32xf32>
    %258 = math.exp %257 : vector<16x32xf32>
    %cst_91 = arith.constant 1.000000e+00 : f32
    %259 = vector.broadcast %cst_91 : f32 to vector<16x32xf32>
    %260 = arith.addf %259, %258 : vector<16x32xf32>
    %261 = arith.divf %259, %260 : vector<16x32xf32>
    %262 = vector.extract_strided_slice %245 {offsets = [0, 64], sizes = [16, 32], strides = [1, 1]} : vector<16x128xf32> to vector<16x32xf32>
    %263 = vector.extract_strided_slice %241 {offsets = [0, 64], sizes = [16, 32], strides = [1, 1]} : vector<16x96xf32> to vector<16x32xf32>
    %264 = vector.broadcast %6 : vector<1x32xf32> to vector<16x32xf32>
    %265 = arith.addf %263, %264 : vector<16x32xf32>
    %266 = arith.mulf %253, %265 : vector<16x32xf32>
    %267 = arith.addf %262, %266 : vector<16x32xf32>
    %268 = math.tanh %267 : vector<16x32xf32>
    %cst_92 = arith.constant 1.000000e+00 : f32
    %269 = vector.broadcast %cst_92 : f32 to vector<16x32xf32>
    %270 = arith.subf %269, %261 : vector<16x32xf32>
    %271 = arith.mulf %270, %268 : vector<16x32xf32>
    %272 = arith.mulf %261, %239 : vector<16x32xf32>
    %273 = arith.addf %271, %272 : vector<16x32xf32>
    %c0_93 = arith.constant 0 : index
    %c0_94 = arith.constant 0 : index
    %274 = vector.load %arg7[%c0_93, %c0_94] : memref<16x32xf32, #tpu.memory_space<vmem>>, vector<16x32xf32>
    tpu.vector_store %arg7[%c0_93, %c0_94], %273 {strides = array<i32>} : memref<16x32xf32, #tpu.memory_space<vmem>>, vector<16x32xf32>,
    %275 = arith.truncf %273 : vector<16x32xf32> to vector<16x32xbf16>
    %c0_95 = arith.constant 0 : index
    %276 = arith.index_cast %238 : i32 to index
    %c0_96 = arith.constant 0 : index
    %c0_97 = arith.constant 0 : index
    %277 = vector.load %arg6[%c0_95, %276, %c0_96, %c0_97] : memref<1x8x16x32xbf16, #tpu.memory_space<vmem>>, vector<1x1x16x32xbf16>
    %278 = vector.shape_cast %277 : vector<1x1x16x32xbf16> to vector<16x32xbf16>
    %279 = vector.shape_cast %275 : vector<16x32xbf16> to vector<1x1x16x32xbf16>
    tpu.vector_store %arg6[%c0_95, %276, %c0_96, %c0_97], %279 {strides = array<i32>} : memref<1x8x16x32xbf16, #tpu.memory_space<vmem>>, vector<1x1x16x32xbf16>,
    %c6_i32 = arith.constant 6 : i32
    %c2_i32_98 = arith.constant 2 : i32
    %280 = arith.muli %c2_i32_98, %c6_i32 : i32
    %c7_i32_99 = arith.constant 7 : i32
    %281 = arith.subi %c7_i32_99, %280 : i32
    %282 = arith.muli %arg0, %281 : i32
    %283 = arith.addi %c6_i32, %282 : i32
    %c0_100 = arith.constant 0 : index
    %c0_101 = arith.constant 0 : index
    %284 = vector.load %arg7[%c0_100, %c0_101] : memref<16x32xf32, #tpu.memory_space<vmem>>, vector<16x32xf32>
    %285 = arith.truncf %284 : vector<16x32xf32> to vector<16x32xbf16>
    %cst_102 = arith.constant dense<0.000000e+00> : vector<16x96xf32>
    %286 = tpu.matmul %285, %4, %cst_102 {dimension_numbers = #tpu.dot_dimension_numbers<[1], [0], [0], [1], [0, 0, 1, 1], [], []>} : vector<16x32xbf16>, vector<32x96xbf16>, vector<16x96xf32> -> vector<16x96xf32>
    %287 = arith.addi %9, %283 : i32
    %288 = arith.index_cast %287 : i32 to index
    %c0_103 = arith.constant 0 : index
    %c0_104 = arith.constant 0 : index
    %289 = vector.load %arg8[%288, %c0_103, %c0_104] : memref<16x16x128xf32, #tpu.memory_space<vmem>>, vector<1x16x128xf32>
    %290 = vector.shape_cast %289 : vector<1x16x128xf32> to vector<16x128xf32>
    %291 = vector.extract_strided_slice %290 {offsets = [0, 0], sizes = [16, 32], strides = [1, 1]} : vector<16x128xf32> to vector<16x32xf32>
    %292 = vector.extract_strided_slice %286 {offsets = [0, 0], sizes = [16, 32], strides = [1, 1]} : vector<16x96xf32> to vector<16x32xf32>
    %293 = arith.addf %291, %292 : vector<16x32xf32>
    %294 = arith.negf %293 : vector<16x32xf32>
    %295 = math.exp %294 : vector<16x32xf32>
    %cst_105 = arith.constant 1.000000e+00 : f32
    %296 = vector.broadcast %cst_105 : f32 to vector<16x32xf32>
    %297 = arith.addf %296, %295 : vector<16x32xf32>
    %298 = arith.divf %296, %297 : vector<16x32xf32>
    %299 = vector.extract_strided_slice %290 {offsets = [0, 32], sizes = [16, 32], strides = [1, 1]} : vector<16x128xf32> to vector<16x32xf32>
    %300 = vector.extract_strided_slice %286 {offsets = [0, 32], sizes = [16, 32], strides = [1, 1]} : vector<16x96xf32> to vector<16x32xf32>
    %301 = arith.addf %299, %300 : vector<16x32xf32>
    %302 = arith.negf %301 : vector<16x32xf32>
    %303 = math.exp %302 : vector<16x32xf32>
    %cst_106 = arith.constant 1.000000e+00 : f32
    %304 = vector.broadcast %cst_106 : f32 to vector<16x32xf32>
    %305 = arith.addf %304, %303 : vector<16x32xf32>
    %306 = arith.divf %304, %305 : vector<16x32xf32>
    %307 = vector.extract_strided_slice %290 {offsets = [0, 64], sizes = [16, 32], strides = [1, 1]} : vector<16x128xf32> to vector<16x32xf32>
    %308 = vector.extract_strided_slice %286 {offsets = [0, 64], sizes = [16, 32], strides = [1, 1]} : vector<16x96xf32> to vector<16x32xf32>
    %309 = vector.broadcast %6 : vector<1x32xf32> to vector<16x32xf32>
    %310 = arith.addf %308, %309 : vector<16x32xf32>
    %311 = arith.mulf %298, %310 : vector<16x32xf32>
    %312 = arith.addf %307, %311 : vector<16x32xf32>
    %313 = math.tanh %312 : vector<16x32xf32>
    %cst_107 = arith.constant 1.000000e+00 : f32
    %314 = vector.broadcast %cst_107 : f32 to vector<16x32xf32>
    %315 = arith.subf %314, %306 : vector<16x32xf32>
    %316 = arith.mulf %315, %313 : vector<16x32xf32>
    %317 = arith.mulf %306, %284 : vector<16x32xf32>
    %318 = arith.addf %316, %317 : vector<16x32xf32>
    %c0_108 = arith.constant 0 : index
    %c0_109 = arith.constant 0 : index
    %319 = vector.load %arg7[%c0_108, %c0_109] : memref<16x32xf32, #tpu.memory_space<vmem>>, vector<16x32xf32>
    tpu.vector_store %arg7[%c0_108, %c0_109], %318 {strides = array<i32>} : memref<16x32xf32, #tpu.memory_space<vmem>>, vector<16x32xf32>,
    %320 = arith.truncf %318 : vector<16x32xf32> to vector<16x32xbf16>
    %c0_110 = arith.constant 0 : index
    %321 = arith.index_cast %283 : i32 to index
    %c0_111 = arith.constant 0 : index
    %c0_112 = arith.constant 0 : index
    %322 = vector.load %arg6[%c0_110, %321, %c0_111, %c0_112] : memref<1x8x16x32xbf16, #tpu.memory_space<vmem>>, vector<1x1x16x32xbf16>
    %323 = vector.shape_cast %322 : vector<1x1x16x32xbf16> to vector<16x32xbf16>
    %324 = vector.shape_cast %320 : vector<16x32xbf16> to vector<1x1x16x32xbf16>
    tpu.vector_store %arg6[%c0_110, %321, %c0_111, %c0_112], %324 {strides = array<i32>} : memref<1x8x16x32xbf16, #tpu.memory_space<vmem>>, vector<1x1x16x32xbf16>,
    %c7_i32_113 = arith.constant 7 : i32
    %c2_i32_114 = arith.constant 2 : i32
    %325 = arith.muli %c2_i32_114, %c7_i32_113 : i32
    %c7_i32_115 = arith.constant 7 : i32
    %326 = arith.subi %c7_i32_115, %325 : i32
    %327 = arith.muli %arg0, %326 : i32
    %328 = arith.addi %c7_i32_113, %327 : i32
    %c0_116 = arith.constant 0 : index
    %c0_117 = arith.constant 0 : index
    %329 = vector.load %arg7[%c0_116, %c0_117] : memref<16x32xf32, #tpu.memory_space<vmem>>, vector<16x32xf32>
    %330 = arith.truncf %329 : vector<16x32xf32> to vector<16x32xbf16>
    %cst_118 = arith.constant dense<0.000000e+00> : vector<16x96xf32>
    %331 = tpu.matmul %330, %4, %cst_118 {dimension_numbers = #tpu.dot_dimension_numbers<[1], [0], [0], [1], [0, 0, 1, 1], [], []>} : vector<16x32xbf16>, vector<32x96xbf16>, vector<16x96xf32> -> vector<16x96xf32>
    %332 = arith.addi %9, %328 : i32
    %333 = arith.index_cast %332 : i32 to index
    %c0_119 = arith.constant 0 : index
    %c0_120 = arith.constant 0 : index
    %334 = vector.load %arg8[%333, %c0_119, %c0_120] : memref<16x16x128xf32, #tpu.memory_space<vmem>>, vector<1x16x128xf32>
    %335 = vector.shape_cast %334 : vector<1x16x128xf32> to vector<16x128xf32>
    %336 = vector.extract_strided_slice %335 {offsets = [0, 0], sizes = [16, 32], strides = [1, 1]} : vector<16x128xf32> to vector<16x32xf32>
    %337 = vector.extract_strided_slice %331 {offsets = [0, 0], sizes = [16, 32], strides = [1, 1]} : vector<16x96xf32> to vector<16x32xf32>
    %338 = arith.addf %336, %337 : vector<16x32xf32>
    %339 = arith.negf %338 : vector<16x32xf32>
    %340 = math.exp %339 : vector<16x32xf32>
    %cst_121 = arith.constant 1.000000e+00 : f32
    %341 = vector.broadcast %cst_121 : f32 to vector<16x32xf32>
    %342 = arith.addf %341, %340 : vector<16x32xf32>
    %343 = arith.divf %341, %342 : vector<16x32xf32>
    %344 = vector.extract_strided_slice %335 {offsets = [0, 32], sizes = [16, 32], strides = [1, 1]} : vector<16x128xf32> to vector<16x32xf32>
    %345 = vector.extract_strided_slice %331 {offsets = [0, 32], sizes = [16, 32], strides = [1, 1]} : vector<16x96xf32> to vector<16x32xf32>
    %346 = arith.addf %344, %345 : vector<16x32xf32>
    %347 = arith.negf %346 : vector<16x32xf32>
    %348 = math.exp %347 : vector<16x32xf32>
    %cst_122 = arith.constant 1.000000e+00 : f32
    %349 = vector.broadcast %cst_122 : f32 to vector<16x32xf32>
    %350 = arith.addf %349, %348 : vector<16x32xf32>
    %351 = arith.divf %349, %350 : vector<16x32xf32>
    %352 = vector.extract_strided_slice %335 {offsets = [0, 64], sizes = [16, 32], strides = [1, 1]} : vector<16x128xf32> to vector<16x32xf32>
    %353 = vector.extract_strided_slice %331 {offsets = [0, 64], sizes = [16, 32], strides = [1, 1]} : vector<16x96xf32> to vector<16x32xf32>
    %354 = vector.broadcast %6 : vector<1x32xf32> to vector<16x32xf32>
    %355 = arith.addf %353, %354 : vector<16x32xf32>
    %356 = arith.mulf %343, %355 : vector<16x32xf32>
    %357 = arith.addf %352, %356 : vector<16x32xf32>
    %358 = math.tanh %357 : vector<16x32xf32>
    %cst_123 = arith.constant 1.000000e+00 : f32
    %359 = vector.broadcast %cst_123 : f32 to vector<16x32xf32>
    %360 = arith.subf %359, %351 : vector<16x32xf32>
    %361 = arith.mulf %360, %358 : vector<16x32xf32>
    %362 = arith.mulf %351, %329 : vector<16x32xf32>
    %363 = arith.addf %361, %362 : vector<16x32xf32>
    %c0_124 = arith.constant 0 : index
    %c0_125 = arith.constant 0 : index
    %364 = vector.load %arg7[%c0_124, %c0_125] : memref<16x32xf32, #tpu.memory_space<vmem>>, vector<16x32xf32>
    tpu.vector_store %arg7[%c0_124, %c0_125], %363 {strides = array<i32>} : memref<16x32xf32, #tpu.memory_space<vmem>>, vector<16x32xf32>,
    %365 = arith.truncf %363 : vector<16x32xf32> to vector<16x32xbf16>
    %c0_126 = arith.constant 0 : index
    %366 = arith.index_cast %328 : i32 to index
    %c0_127 = arith.constant 0 : index
    %c0_128 = arith.constant 0 : index
    %367 = vector.load %arg6[%c0_126, %366, %c0_127, %c0_128] : memref<1x8x16x32xbf16, #tpu.memory_space<vmem>>, vector<1x1x16x32xbf16>
    %368 = vector.shape_cast %367 : vector<1x1x16x32xbf16> to vector<16x32xbf16>
    %369 = vector.shape_cast %365 : vector<16x32xbf16> to vector<1x1x16x32xbf16>
    tpu.vector_store %arg6[%c0_126, %366, %c0_127, %c0_128], %369 {strides = array<i32>} : memref<1x8x16x32xbf16, #tpu.memory_space<vmem>>, vector<1x1x16x32xbf16>,
    %c8_i32_129 = arith.constant 8 : i32
    return
  }
  func.func @transform_0(%arg0: i32) -> (i32, i32, i32, i32) {
    %c0_i32 = arith.constant 0 : i32
    %c0_i32_0 = arith.constant 0 : i32
    %c0_i32_1 = arith.constant 0 : i32
    %c0_i32_2 = arith.constant 0 : i32
    %c0_i32_3 = arith.constant 0 : i32
    return %c0_i32, %c0_i32_0, %c0_i32_1, %c0_i32_2 : i32, i32, i32, i32
  }
  func.func @transform_1(%arg0: i32) -> (i32, i32, i32) {
    %c0_i32 = arith.constant 0 : i32
    %c0_i32_0 = arith.constant 0 : i32
    %c0_i32_1 = arith.constant 0 : i32
    %c0_i32_2 = arith.constant 0 : i32
    return %c0_i32, %c0_i32_0, %c0_i32_1 : i32, i32, i32
  }
  func.func @transform_2(%arg0: i32) -> (i32, i32, i32) {
    %c0_i32 = arith.constant 0 : i32
    %c0_i32_0 = arith.constant 0 : i32
    %c0_i32_1 = arith.constant 0 : i32
    return %arg0, %c0_i32, %c0_i32_0 : i32, i32, i32
  }
  func.func @transform_3(%arg0: i32) -> (i32, i32, i32) {
    %c0_i32 = arith.constant 0 : i32
    %c0_i32_0 = arith.constant 0 : i32
    %c0_i32_1 = arith.constant 0 : i32
    %c0_i32_2 = arith.constant 0 : i32
    return %c0_i32, %c0_i32_0, %c0_i32_1 : i32, i32, i32
  }
  func.func @transform_4(%arg0: i32) -> (i32, i32, i32) {
    %c0_i32 = arith.constant 0 : i32
    %c0_i32_0 = arith.constant 0 : i32
    %c0_i32_1 = arith.constant 0 : i32
    return %arg0, %c0_i32, %c0_i32_0 : i32, i32, i32
  }
  func.func @transform_5(%arg0: i32) -> (i32, i32, i32, i32) {
    %c0_i32 = arith.constant 0 : i32
    %c0_i32_0 = arith.constant 0 : i32
    %c0_i32_1 = arith.constant 0 : i32
    %c0_i32_2 = arith.constant 0 : i32
    return %arg0, %c0_i32, %c0_i32_0, %c0_i32_1 : i32, i32, i32, i32
  }
}

module attributes {stable_mosaic.version = 11 : i64} {
  func.func @gru_layer_kernel(%arg0: i32, %arg1: memref<2x8x16x32xbf16, #tpu.memory_space<vmem>>, %arg2: memref<2x32x256xbf16, #tpu.memory_space<vmem>>, %arg3: memref<1x32x96xbf16, #tpu.memory_space<vmem>>, %arg4: memref<2x1x128xf32, #tpu.memory_space<vmem>>, %arg5: memref<1x1x32xf32, #tpu.memory_space<vmem>>, %arg6: memref<1x8x16x32xbf16, #tpu.memory_space<vmem>>, %arg7: memref<16x32xf32, #tpu.memory_space<vmem>>, %arg8: memref<16x16x128xf32, #tpu.memory_space<vmem>>) attributes {dimension_semantics = [#tpu.dimension_semantics<arbitrary>], iteration_bounds = array<i64: 2>, scalar_prefetch = 0 : i64, scratch_operands = 2 : i64, tpu.core_type = #tpu.core_type<tc>, window_params = [{pipeline_mode = #tpu.pipeline_mode<synchronous>, transform_indices = @transform_0, window_bounds = array<i64: 2, 8, 16, 32>}, {pipeline_mode = #tpu.pipeline_mode<synchronous>, transform_indices = @transform_1, window_bounds = array<i64: 2, 32, 256>}, {transform_indices = @transform_2, window_bounds = array<i64: 1, 32, 96>}, {pipeline_mode = #tpu.pipeline_mode<synchronous>, transform_indices = @transform_3, window_bounds = array<i64: 2, 1, 128>}, {transform_indices = @transform_4, window_bounds = array<i64: 1, 1, 32>}, {transform_indices = @transform_5, window_bounds = array<i64: 1, 8, 16, 32>}]} {
    %c0_i32 = arith.constant 0 : i32
    %0 = arith.cmpi eq, %arg0, %c0_i32 : i32
    %1 = arith.extui %0 : i1 to i32
    %c0_i32_0 = arith.constant 0 : i32
    %2 = arith.cmpi ne, %1, %c0_i32_0 : i32
    scf.if %2 {
      %c0_130 = arith.constant 0 : index
      %c0_131 = arith.constant 0 : index
      %c0_132 = arith.constant 0 : index
      %c0_133 = arith.constant 0 : index
      %370 = vector.load %arg1[%c0_130, %c0_131, %c0_132, %c0_133] : memref<2x8x16x32xbf16, #tpu.memory_space<vmem>>, vector<1x8x16x32xbf16>
      %371 = vector.shape_cast %370 : vector<1x8x16x32xbf16> to vector<8x16x32xbf16>
      %372 = vector.shape_cast %371 : vector<8x16x32xbf16> to vector<128x32xbf16>
      %c0_134 = arith.constant 0 : index
      %c0_135 = arith.constant 0 : index
      %c0_136 = arith.constant 0 : index
      %373 = vector.load %arg2[%c0_134, %c0_135, %c0_136] : memref<2x32x256xbf16, #tpu.memory_space<vmem>>, vector<1x32x256xbf16>
      %374 = vector.shape_cast %373 : vector<1x32x256xbf16> to vector<32x256xbf16>
      %cst_137 = arith.constant dense<0.000000e+00> : vector<128x256xf32>
      %375 = tpu.matmul %372, %374, %cst_137 {dimension_numbers = #tpu.dot_dimension_numbers<[1], [0], [0], [1], [0, 0, 1, 1], [], []>} : vector<128x32xbf16>, vector<32x256xbf16>, vector<128x256xf32> -> vector<128x256xf32>
      %c1 = arith.constant 1 : index
      %c0_138 = arith.constant 0 : index
      %c0_139 = arith.constant 0 : index
      %c0_140 = arith.constant 0 : index
      %376 = vector.load %arg1[%c1, %c0_138, %c0_139, %c0_140] : memref<2x8x16x32xbf16, #tpu.memory_space<vmem>>, vector<1x8x16x32xbf16>
      %377 = vector.shape_cast %376 : vector<1x8x16x32xbf16> to vector<8x16x32xbf16>
      %378 = vector.shape_cast %377 : vector<8x16x32xbf16> to vector<128x32xbf16>
      %c1_141 = arith.constant 1 : index
      %c0_142 = arith.constant 0 : index
      %c0_143 = arith.constant 0 : index
      %379 = vector.load %arg2[%c1_141, %c0_142, %c0_143] : memref<2x32x256xbf16, #tpu.memory_space<vmem>>, vector<1x32x256xbf16>
      %380 = vector.shape_cast %379 : vector<1x32x256xbf16> to vector<32x256xbf16>
      %cst_144 = arith.constant dense<0.000000e+00> : vector<128x256xf32>
      %381 = tpu.matmul %378, %380, %cst_144 {dimension_numbers = #tpu.dot_dimension_numbers<[1], [0], [0], [1], [0, 0, 1, 1], [], []>} : vector<128x32xbf16>, vector<32x256xbf16>, vector<128x256xf32> -> vector<128x256xf32>
      %382 = arith.addf %375, %381 : vector<128x256xf32>
      %383 = vector.extract_strided_slice %382 {offsets = [0, 0], sizes = [128, 128], strides = [1, 1]} : vector<128x256xf32> to vector<128x128xf32>
      %c0_145 = arith.constant 0 : index
      %c0_146 = arith.constant 0 : index
      %c0_147 = arith.constant 0 : index
      %384 = vector.load %arg4[%c0_145, %c0_146, %c0_147] : memref<2x1x128xf32, #tpu.memory_space<vmem>>, vector<1x1x128xf32>
      %385 = vector.shape_cast %384 : vector<1x1x128xf32> to vector<1x128xf32>
      %386 = vector.broadcast %385 : vector<1x128xf32> to vector<128x128xf32>
      %387 = arith.addf %383, %386 : vector<128x128xf32>
      %388 = vector.shape_cast %387 : vector<128x128xf32> to vector<8x16x128xf32>
      %c0_148 = arith.constant 0 : index
      %c0_149 = arith.constant 0 : index
      %c0_150 = arith.constant 0 : index
      %389 = vector.load %arg8[%c0_148, %c0_149, %c0_150] : memref<16x16x128xf32, #tpu.memory_space<vmem>>, vector<8x16x128xf32>
      tpu.vector_store %arg8[%c0_148, %c0_149, %c0_150], %388 {strides = array<i32>} : memref<16x16x128xf32, #tpu.memory_space<vmem>>, vector<8x16x128xf32>,
      %390 = vector.extract_strided_slice %382 {offsets = [0, 128], sizes = [128, 128], strides = [1, 1]} : vector<128x256xf32> to vector<128x128xf32>
      %c1_151 = arith.constant 1 : index
      %c0_152 = arith.constant 0 : index
      %c0_153 = arith.constant 0 : index
      %391 = vector.load %arg4[%c1_151, %c0_152, %c0_153] : memref<2x1x128xf32, #tpu.memory_space<vmem>>, vector<1x1x128xf32>
      %392 = vector.shape_cast %391 : vector<1x1x128xf32> to vector<1x128xf32>
      %393 = vector.broadcast %392 : vector<1x128xf32> to vector<128x128xf32>
      %394 = arith.addf %390, %393 : vector<128x128xf32>
      %395 = vector.shape_cast %394 : vector<128x128xf32> to vector<8x16x128xf32>
      %c8 = arith.constant 8 : index
      %c0_154 = arith.constant 0 : index
      %c0_155 = arith.constant 0 : index
      %396 = vector.load %arg8[%c8, %c0_154, %c0_155] : memref<16x16x128xf32, #tpu.memory_space<vmem>>, vector<8x16x128xf32>
      tpu.vector_store %arg8[%c8, %c0_154, %c0_155], %395 {strides = array<i32>} : memref<16x16x128xf32, #tpu.memory_space<vmem>>, vector<8x16x128xf32>,
    } else {
    }
    %c0 = arith.constant 0 : index
    %c0_1 = arith.constant 0 : index
    %c0_2 = arith.constant 0 : index
    %3 = vector.load %arg3[%c0, %c0_1, %c0_2] : memref<1x32x96xbf16, #tpu.memory_space<vmem>>, vector<1x32x96xbf16>
    %4 = vector.shape_cast %3 : vector<1x32x96xbf16> to vector<32x96xbf16>
    %c0_3 = arith.constant 0 : index
    %c0_4 = arith.constant 0 : index
    %c0_5 = arith.constant 0 : index
    %5 = vector.load %arg5[%c0_3, %c0_4, %c0_5] : memref<1x1x32xf32, #tpu.memory_space<vmem>>, vector<1x1x32xf32>
    %6 = vector.shape_cast %5 : vector<1x1x32xf32> to vector<1x32xf32>
    %cst = arith.constant 0.000000e+00 : f32
    %7 = vector.broadcast %cst : f32 to vector<16x32xf32>
    %c0_6 = arith.constant 0 : index
    %c0_7 = arith.constant 0 : index
    %8 = vector.load %arg7[%c0_6, %c0_7] : memref<16x32xf32, #tpu.memory_space<vmem>>, vector<16x32xf32>
    tpu.vector_store %arg7[%c0_6, %c0_7], %7 {strides = array<i32>} : memref<16x32xf32, #tpu.memory_space<vmem>>, vector<16x32xf32>,
    %c8_i32 = arith.constant 8 : i32
    %9 = arith.muli %arg0, %c8_i32 : i32
    %c0_i32_8 = arith.constant 0 : i32
    %c2_i32 = arith.constant 2 : i32
    %10 = arith.muli %c2_i32, %c0_i32_8 : i32
    %c7_i32 = arith.constant 7 : i32
    %11 = arith.subi %c7_i32, %10 : i32
    %12 = arith.muli %arg0, %11 : i32
    %13 = arith.addi %c0_i32_8, %12 : i32
    %c0_9 = arith.constant 0 : index
    %c0_10 = arith.constant 0 : index
    %14 = vector.load %arg7[%c0_9, %c0_10] : memref<16x32xf32, #tpu.memory_space<vmem>>, vector<16x32xf32>
    %15 = arith.truncf %14 : vector<16x32xf32> to vector<16x32xbf16>
    %cst_11 = arith.constant dense<0.000000e+00> : vector<16x96xf32>
    %16 = tpu.matmul %15, %4, %cst_11 {dimension_numbers = #tpu.dot_dimension_numbers<[1], [0], [0], [1], [0, 0, 1, 1], [], []>} : vector<16x32xbf16>, vector<32x96xbf16>, vector<16x96xf32> -> vector<16x96xf32>
    %17 = arith.addi %9, %13 : i32
    %18 = arith.index_cast %17 : i32 to index
    %c0_12 = arith.constant 0 : index
    %c0_13 = arith.constant 0 : index
    %19 = vector.load %arg8[%18, %c0_12, %c0_13] : memref<16x16x128xf32, #tpu.memory_space<vmem>>, vector<1x16x128xf32>
    %20 = vector.shape_cast %19 : vector<1x16x128xf32> to vector<16x128xf32>
    %21 = vector.extract_strided_slice %20 {offsets = [0, 0], sizes = [16, 32], strides = [1, 1]} : vector<16x128xf32> to vector<16x32xf32>
    %22 = vector.extract_strided_slice %16 {offsets = [0, 0], sizes = [16, 32], strides = [1, 1]} : vector<16x96xf32> to vector<16x32xf32>
    %23 = arith.addf %21, %22 : vector<16x32xf32>
    %24 = arith.negf %23 : vector<16x32xf32>
    %25 = math.exp %24 : vector<16x32xf32>
    %cst_14 = arith.constant 1.000000e+00 : f32
    %26 = vector.broadcast %cst_14 : f32 to vector<16x32xf32>
    %27 = arith.addf %26, %25 : vector<16x32xf32>
    %28 = arith.divf %26, %27 : vector<16x32xf32>
    %29 = vector.extract_strided_slice %20 {offsets = [0, 32], sizes = [16, 32], strides = [1, 1]} : vector<16x128xf32> to vector<16x32xf32>
    %30 = vector.extract_strided_slice %16 {offsets = [0, 32], sizes = [16, 32], strides = [1, 1]} : vector<16x96xf32> to vector<16x32xf32>
    %31 = arith.addf %29, %30 : vector<16x32xf32>
    %32 = arith.negf %31 : vector<16x32xf32>
    %33 = math.exp %32 : vector<16x32xf32>
    %cst_15 = arith.constant 1.000000e+00 : f32
    %34 = vector.broadcast %cst_15 : f32 to vector<16x32xf32>
    %35 = arith.addf %34, %33 : vector<16x32xf32>
    %36 = arith.divf %34, %35 : vector<16x32xf32>
    %37 = vector.extract_strided_slice %20 {offsets = [0, 64], sizes = [16, 32], strides = [1, 1]} : vector<16x128xf32> to vector<16x32xf32>
    %38 = vector.extract_strided_slice %16 {offsets = [0, 64], sizes = [16, 32], strides = [1, 1]} : vector<16x96xf32> to vector<16x32xf32>
    %39 = vector.broadcast %6 : vector<1x32xf32> to vector<16x32xf32>
    %40 = arith.addf %38, %39 : vector<16x32xf32>
    %41 = arith.mulf %28, %40 : vector<16x32xf32>
    %42 = arith.addf %37, %41 : vector<16x32xf32>
    %43 = math.tanh %42 : vector<16x32xf32>
    %cst_16 = arith.constant 1.000000e+00 : f32
    %44 = vector.broadcast %cst_16 : f32 to vector<16x32xf32>
    %45 = arith.subf %44, %36 : vector<16x32xf32>
    %46 = arith.mulf %45, %43 : vector<16x32xf32>
    %47 = arith.mulf %36, %14 : vector<16x32xf32>
    %48 = arith.addf %46, %47 : vector<16x32xf32>
    %c0_17 = arith.constant 0 : index
    %c0_18 = arith.constant 0 : index
    %49 = vector.load %arg7[%c0_17, %c0_18] : memref<16x32xf32, #tpu.memory_space<vmem>>, vector<16x32xf32>
    tpu.vector_store %arg7[%c0_17, %c0_18], %48 {strides = array<i32>} : memref<16x32xf32, #tpu.memory_space<vmem>>, vector<16x32xf32>,
    %50 = arith.truncf %48 : vector<16x32xf32> to vector<16x32xbf16>
    %c0_19 = arith.constant 0 : index
    %51 = arith.index_cast %13 : i32 to index
    %c0_20 = arith.constant 0 : index
    %c0_21 = arith.constant 0 : index
    %52 = vector.load %arg6[%c0_19, %51, %c0_20, %c0_21] : memref<1x8x16x32xbf16, #tpu.memory_space<vmem>>, vector<1x1x16x32xbf16>
    %53 = vector.shape_cast %52 : vector<1x1x16x32xbf16> to vector<16x32xbf16>
    %54 = vector.shape_cast %50 : vector<16x32xbf16> to vector<1x1x16x32xbf16>
    tpu.vector_store %arg6[%c0_19, %51, %c0_20, %c0_21], %54 {strides = array<i32>} : memref<1x8x16x32xbf16, #tpu.memory_space<vmem>>, vector<1x1x16x32xbf16>,
    %c1_i32 = arith.constant 1 : i32
    %c2_i32_22 = arith.constant 2 : i32
    %55 = arith.muli %c2_i32_22, %c1_i32 : i32
    %c7_i32_23 = arith.constant 7 : i32
    %56 = arith.subi %c7_i32_23, %55 : i32
    %57 = arith.muli %arg0, %56 : i32
    %58 = arith.addi %c1_i32, %57 : i32
    %c0_24 = arith.constant 0 : index
    %c0_25 = arith.constant 0 : index
    %59 = vector.load %arg7[%c0_24, %c0_25] : memref<16x32xf32, #tpu.memory_space<vmem>>, vector<16x32xf32>
    %60 = arith.truncf %59 : vector<16x32xf32> to vector<16x32xbf16>
    %cst_26 = arith.constant dense<0.000000e+00> : vector<16x96xf32>
    %61 = tpu.matmul %60, %4, %cst_26 {dimension_numbers = #tpu.dot_dimension_numbers<[1], [0], [0], [1], [0, 0, 1, 1], [], []>} : vector<16x32xbf16>, vector<32x96xbf16>, vector<16x96xf32> -> vector<16x96xf32>
    %62 = arith.addi %9, %58 : i32
    %63 = arith.index_cast %62 : i32 to index
    %c0_27 = arith.constant 0 : index
    %c0_28 = arith.constant 0 : index
    %64 = vector.load %arg8[%63, %c0_27, %c0_28] : memref<16x16x128xf32, #tpu.memory_space<vmem>>, vector<1x16x128xf32>
    %65 = vector.shape_cast %64 : vector<1x16x128xf32> to vector<16x128xf32>
    %66 = vector.extract_strided_slice %65 {offsets = [0, 0], sizes = [16, 32], strides = [1, 1]} : vector<16x128xf32> to vector<16x32xf32>
    %67 = vector.extract_strided_slice %61 {offsets = [0, 0], sizes = [16, 32], strides = [1, 1]} : vector<16x96xf32> to vector<16x32xf32>
    %68 = arith.addf %66, %67 : vector<16x32xf32>
    %69 = arith.negf %68 : vector<16x32xf32>
    %70 = math.exp %69 : vector<16x32xf32>
    %cst_29 = arith.constant 1.000000e+00 : f32
    %71 = vector.broadcast %cst_29 : f32 to vector<16x32xf32>
    %72 = arith.addf %71, %70 : vector<16x32xf32>
    %73 = arith.divf %71, %72 : vector<16x32xf32>
    %74 = vector.extract_strided_slice %65 {offsets = [0, 32], sizes = [16, 32], strides = [1, 1]} : vector<16x128xf32> to vector<16x32xf32>
    %75 = vector.extract_strided_slice %61 {offsets = [0, 32], sizes = [16, 32], strides = [1, 1]} : vector<16x96xf32> to vector<16x32xf32>
    %76 = arith.addf %74, %75 : vector<16x32xf32>
    %77 = arith.negf %76 : vector<16x32xf32>
    %78 = math.exp %77 : vector<16x32xf32>
    %cst_30 = arith.constant 1.000000e+00 : f32
    %79 = vector.broadcast %cst_30 : f32 to vector<16x32xf32>
    %80 = arith.addf %79, %78 : vector<16x32xf32>
    %81 = arith.divf %79, %80 : vector<16x32xf32>
    %82 = vector.extract_strided_slice %65 {offsets = [0, 64], sizes = [16, 32], strides = [1, 1]} : vector<16x128xf32> to vector<16x32xf32>
    %83 = vector.extract_strided_slice %61 {offsets = [0, 64], sizes = [16, 32], strides = [1, 1]} : vector<16x96xf32> to vector<16x32xf32>
    %84 = vector.broadcast %6 : vector<1x32xf32> to vector<16x32xf32>
    %85 = arith.addf %83, %84 : vector<16x32xf32>
    %86 = arith.mulf %73, %85 : vector<16x32xf32>
    %87 = arith.addf %82, %86 : vector<16x32xf32>
    %88 = math.tanh %87 : vector<16x32xf32>
    %cst_31 = arith.constant 1.000000e+00 : f32
    %89 = vector.broadcast %cst_31 : f32 to vector<16x32xf32>
    %90 = arith.subf %89, %81 : vector<16x32xf32>
    %91 = arith.mulf %90, %88 : vector<16x32xf32>
    %92 = arith.mulf %81, %59 : vector<16x32xf32>
    %93 = arith.addf %91, %92 : vector<16x32xf32>
    %c0_32 = arith.constant 0 : index
    %c0_33 = arith.constant 0 : index
    %94 = vector.load %arg7[%c0_32, %c0_33] : memref<16x32xf32, #tpu.memory_space<vmem>>, vector<16x32xf32>
    tpu.vector_store %arg7[%c0_32, %c0_33], %93 {strides = array<i32>} : memref<16x32xf32, #tpu.memory_space<vmem>>, vector<16x32xf32>,
    %95 = arith.truncf %93 : vector<16x32xf32> to vector<16x32xbf16>
    %c0_34 = arith.constant 0 : index
    %96 = arith.index_cast %58 : i32 to index
    %c0_35 = arith.constant 0 : index
    %c0_36 = arith.constant 0 : index
    %97 = vector.load %arg6[%c0_34, %96, %c0_35, %c0_36] : memref<1x8x16x32xbf16, #tpu.memory_space<vmem>>, vector<1x1x16x32xbf16>
    %98 = vector.shape_cast %97 : vector<1x1x16x32xbf16> to vector<16x32xbf16>
    %99 = vector.shape_cast %95 : vector<16x32xbf16> to vector<1x1x16x32xbf16>
    tpu.vector_store %arg6[%c0_34, %96, %c0_35, %c0_36], %99 {strides = array<i32>} : memref<1x8x16x32xbf16, #tpu.memory_space<vmem>>, vector<1x1x16x32xbf16>,
    %c2_i32_37 = arith.constant 2 : i32
    %c2_i32_38 = arith.constant 2 : i32
    %100 = arith.muli %c2_i32_38, %c2_i32_37 : i32
    %c7_i32_39 = arith.constant 7 : i32
    %101 = arith.subi %c7_i32_39, %100 : i32
    %102 = arith.muli %arg0, %101 : i32
    %103 = arith.addi %c2_i32_37, %102 : i32
    %c0_40 = arith.constant 0 : index
    %c0_41 = arith.constant 0 : index
    %104 = vector.load %arg7[%c0_40, %c0_41] : memref<16x32xf32, #tpu.memory_space<vmem>>, vector<16x32xf32>
    %105 = arith.truncf %104 : vector<16x32xf32> to vector<16x32xbf16>
    %cst_42 = arith.constant dense<0.000000e+00> : vector<16x96xf32>
    %106 = tpu.matmul %105, %4, %cst_42 {dimension_numbers = #tpu.dot_dimension_numbers<[1], [0], [0], [1], [0, 0, 1, 1], [], []>} : vector<16x32xbf16>, vector<32x96xbf16>, vector<16x96xf32> -> vector<16x96xf32>
    %107 = arith.addi %9, %103 : i32
    %108 = arith.index_cast %107 : i32 to index
    %c0_43 = arith.constant 0 : index
    %c0_44 = arith.constant 0 : index
    %109 = vector.load %arg8[%108, %c0_43, %c0_44] : memref<16x16x128xf32, #tpu.memory_space<vmem>>, vector<1x16x128xf32>
    %110 = vector.shape_cast %109 : vector<1x16x128xf32> to vector<16x128xf32>
    %111 = vector.extract_strided_slice %110 {offsets = [0, 0], sizes = [16, 32], strides = [1, 1]} : vector<16x128xf32> to vector<16x32xf32>
    %112 = vector.extract_strided_slice %106 {offsets = [0, 0], sizes = [16, 32], strides = [1, 1]} : vector<16x96xf32> to vector<16x32xf32>
    %113 = arith.addf %111, %112 : vector<16x32xf32>
    %114 = arith.negf %113 : vector<16x32xf32>
    %115 = math.exp %114 : vector<16x32xf32>
    %cst_45 = arith.constant 1.000000e+00 : f32
    %116 = vector.broadcast %cst_45 : f32 to vector<16x32xf32>
    %117 = arith.addf %116, %115 : vector<16x32xf32>
    %118 = arith.divf %116, %117 : vector<16x32xf32>
    %119 = vector.extract_strided_slice %110 {offsets = [0, 32], sizes = [16, 32], strides = [1, 1]} : vector<16x128xf32> to vector<16x32xf32>
    %120 = vector.extract_strided_slice %106 {offsets = [0, 32], sizes = [16, 32], strides = [1, 1]} : vector<16x96xf32> to vector<16x32xf32>
    %121 = arith.addf %119, %120 : vector<16x32xf32>
    %122 = arith.negf %121 : vector<16x32xf32>
    %123 = math.exp %122 : vector<16x32xf32>
    %cst_46 = arith.constant 1.000000e+00 : f32
    %124 = vector.broadcast %cst_46 : f32 to vector<16x32xf32>
    %125 = arith.addf %124, %123 : vector<16x32xf32>
    %126 = arith.divf %124, %125 : vector<16x32xf32>
    %127 = vector.extract_strided_slice %110 {offsets = [0, 64], sizes = [16, 32], strides = [1, 1]} : vector<16x128xf32> to vector<16x32xf32>
    %128 = vector.extract_strided_slice %106 {offsets = [0, 64], sizes = [16, 32], strides = [1, 1]} : vector<16x96xf32> to vector<16x32xf32>
    %129 = vector.broadcast %6 : vector<1x32xf32> to vector<16x32xf32>
    %130 = arith.addf %128, %129 : vector<16x32xf32>
    %131 = arith.mulf %118, %130 : vector<16x32xf32>
    %132 = arith.addf %127, %131 : vector<16x32xf32>
    %133 = math.tanh %132 : vector<16x32xf32>
    %cst_47 = arith.constant 1.000000e+00 : f32
    %134 = vector.broadcast %cst_47 : f32 to vector<16x32xf32>
    %135 = arith.subf %134, %126 : vector<16x32xf32>
    %136 = arith.mulf %135, %133 : vector<16x32xf32>
    %137 = arith.mulf %126, %104 : vector<16x32xf32>
    %138 = arith.addf %136, %137 : vector<16x32xf32>
    %c0_48 = arith.constant 0 : index
    %c0_49 = arith.constant 0 : index
    %139 = vector.load %arg7[%c0_48, %c0_49] : memref<16x32xf32, #tpu.memory_space<vmem>>, vector<16x32xf32>
    tpu.vector_store %arg7[%c0_48, %c0_49], %138 {strides = array<i32>} : memref<16x32xf32, #tpu.memory_space<vmem>>, vector<16x32xf32>,
    %140 = arith.truncf %138 : vector<16x32xf32> to vector<16x32xbf16>
    %c0_50 = arith.constant 0 : index
    %141 = arith.index_cast %103 : i32 to index
    %c0_51 = arith.constant 0 : index
    %c0_52 = arith.constant 0 : index
    %142 = vector.load %arg6[%c0_50, %141, %c0_51, %c0_52] : memref<1x8x16x32xbf16, #tpu.memory_space<vmem>>, vector<1x1x16x32xbf16>
    %143 = vector.shape_cast %142 : vector<1x1x16x32xbf16> to vector<16x32xbf16>
    %144 = vector.shape_cast %140 : vector<16x32xbf16> to vector<1x1x16x32xbf16>
    tpu.vector_store %arg6[%c0_50, %141, %c0_51, %c0_52], %144 {strides = array<i32>} : memref<1x8x16x32xbf16, #tpu.memory_space<vmem>>, vector<1x1x16x32xbf16>,
    %c3_i32 = arith.constant 3 : i32
    %c2_i32_53 = arith.constant 2 : i32
    %145 = arith.muli %c2_i32_53, %c3_i32 : i32
    %c7_i32_54 = arith.constant 7 : i32
    %146 = arith.subi %c7_i32_54, %145 : i32
    %147 = arith.muli %arg0, %146 : i32
    %148 = arith.addi %c3_i32, %147 : i32
    %c0_55 = arith.constant 0 : index
    %c0_56 = arith.constant 0 : index
    %149 = vector.load %arg7[%c0_55, %c0_56] : memref<16x32xf32, #tpu.memory_space<vmem>>, vector<16x32xf32>
    %150 = arith.truncf %149 : vector<16x32xf32> to vector<16x32xbf16>
    %cst_57 = arith.constant dense<0.000000e+00> : vector<16x96xf32>
    %151 = tpu.matmul %150, %4, %cst_57 {dimension_numbers = #tpu.dot_dimension_numbers<[1], [0], [0], [1], [0, 0, 1, 1], [], []>} : vector<16x32xbf16>, vector<32x96xbf16>, vector<16x96xf32> -> vector<16x96xf32>
    %152 = arith.addi %9, %148 : i32
    %153 = arith.index_cast %152 : i32 to index
    %c0_58 = arith.constant 0 : index
    %c0_59 = arith.constant 0 : index
    %154 = vector.load %arg8[%153, %c0_58, %c0_59] : memref<16x16x128xf32, #tpu.memory_space<vmem>>, vector<1x16x128xf32>
    %155 = vector.shape_cast %154 : vector<1x16x128xf32> to vector<16x128xf32>
    %156 = vector.extract_strided_slice %155 {offsets = [0, 0], sizes = [16, 32], strides = [1, 1]} : vector<16x128xf32> to vector<16x32xf32>
    %157 = vector.extract_strided_slice %151 {offsets = [0, 0], sizes = [16, 32], strides = [1, 1]} : vector<16x96xf32> to vector<16x32xf32>
    %158 = arith.addf %156, %157 : vector<16x32xf32>
    %159 = arith.negf %158 : vector<16x32xf32>
    %160 = math.exp %159 : vector<16x32xf32>
    %cst_60 = arith.constant 1.000000e+00 : f32
    %161 = vector.broadcast %cst_60 : f32 to vector<16x32xf32>
    %162 = arith.addf %161, %160 : vector<16x32xf32>
    %163 = arith.divf %161, %162 : vector<16x32xf32>
    %164 = vector.extract_strided_slice %155 {offsets = [0, 32], sizes = [16, 32], strides = [1, 1]} : vector<16x128xf32> to vector<16x32xf32>
    %165 = vector.extract_strided_slice %151 {offsets = [0, 32], sizes = [16, 32], strides = [1, 1]} : vector<16x96xf32> to vector<16x32xf32>
    %166 = arith.addf %164, %165 : vector<16x32xf32>
    %167 = arith.negf %166 : vector<16x32xf32>
    %168 = math.exp %167 : vector<16x32xf32>
    %cst_61 = arith.constant 1.000000e+00 : f32
    %169 = vector.broadcast %cst_61 : f32 to vector<16x32xf32>
    %170 = arith.addf %169, %168 : vector<16x32xf32>
    %171 = arith.divf %169, %170 : vector<16x32xf32>
    %172 = vector.extract_strided_slice %155 {offsets = [0, 64], sizes = [16, 32], strides = [1, 1]} : vector<16x128xf32> to vector<16x32xf32>
    %173 = vector.extract_strided_slice %151 {offsets = [0, 64], sizes = [16, 32], strides = [1, 1]} : vector<16x96xf32> to vector<16x32xf32>
    %174 = vector.broadcast %6 : vector<1x32xf32> to vector<16x32xf32>
    %175 = arith.addf %173, %174 : vector<16x32xf32>
    %176 = arith.mulf %163, %175 : vector<16x32xf32>
    %177 = arith.addf %172, %176 : vector<16x32xf32>
    %178 = math.tanh %177 : vector<16x32xf32>
    %cst_62 = arith.constant 1.000000e+00 : f32
    %179 = vector.broadcast %cst_62 : f32 to vector<16x32xf32>
    %180 = arith.subf %179, %171 : vector<16x32xf32>
    %181 = arith.mulf %180, %178 : vector<16x32xf32>
    %182 = arith.mulf %171, %149 : vector<16x32xf32>
    %183 = arith.addf %181, %182 : vector<16x32xf32>
    %c0_63 = arith.constant 0 : index
    %c0_64 = arith.constant 0 : index
    %184 = vector.load %arg7[%c0_63, %c0_64] : memref<16x32xf32, #tpu.memory_space<vmem>>, vector<16x32xf32>
    tpu.vector_store %arg7[%c0_63, %c0_64], %183 {strides = array<i32>} : memref<16x32xf32, #tpu.memory_space<vmem>>, vector<16x32xf32>,
    %185 = arith.truncf %183 : vector<16x32xf32> to vector<16x32xbf16>
    %c0_65 = arith.constant 0 : index
    %186 = arith.index_cast %148 : i32 to index
    %c0_66 = arith.constant 0 : index
    %c0_67 = arith.constant 0 : index
    %187 = vector.load %arg6[%c0_65, %186, %c0_66, %c0_67] : memref<1x8x16x32xbf16, #tpu.memory_space<vmem>>, vector<1x1x16x32xbf16>
    %188 = vector.shape_cast %187 : vector<1x1x16x32xbf16> to vector<16x32xbf16>
    %189 = vector.shape_cast %185 : vector<16x32xbf16> to vector<1x1x16x32xbf16>
    tpu.vector_store %arg6[%c0_65, %186, %c0_66, %c0_67], %189 {strides = array<i32>} : memref<1x8x16x32xbf16, #tpu.memory_space<vmem>>, vector<1x1x16x32xbf16>,
    %c4_i32 = arith.constant 4 : i32
    %c2_i32_68 = arith.constant 2 : i32
    %190 = arith.muli %c2_i32_68, %c4_i32 : i32
    %c7_i32_69 = arith.constant 7 : i32
    %191 = arith.subi %c7_i32_69, %190 : i32
    %192 = arith.muli %arg0, %191 : i32
    %193 = arith.addi %c4_i32, %192 : i32
    %c0_70 = arith.constant 0 : index
    %c0_71 = arith.constant 0 : index
    %194 = vector.load %arg7[%c0_70, %c0_71] : memref<16x32xf32, #tpu.memory_space<vmem>>, vector<16x32xf32>
    %195 = arith.truncf %194 : vector<16x32xf32> to vector<16x32xbf16>
    %cst_72 = arith.constant dense<0.000000e+00> : vector<16x96xf32>
    %196 = tpu.matmul %195, %4, %cst_72 {dimension_numbers = #tpu.dot_dimension_numbers<[1], [0], [0], [1], [0, 0, 1, 1], [], []>} : vector<16x32xbf16>, vector<32x96xbf16>, vector<16x96xf32> -> vector<16x96xf32>
    %197 = arith.addi %9, %193 : i32
    %198 = arith.index_cast %197 : i32 to index
    %c0_73 = arith.constant 0 : index
    %c0_74 = arith.constant 0 : index
    %199 = vector.load %arg8[%198, %c0_73, %c0_74] : memref<16x16x128xf32, #tpu.memory_space<vmem>>, vector<1x16x128xf32>
    %200 = vector.shape_cast %199 : vector<1x16x128xf32> to vector<16x128xf32>
    %201 = vector.extract_strided_slice %200 {offsets = [0, 0], sizes = [16, 32], strides = [1, 1]} : vector<16x128xf32> to vector<16x32xf32>
    %202 = vector.extract_strided_slice %196 {offsets = [0, 0], sizes = [16, 32], strides = [1, 1]} : vector<16x96xf32> to vector<16x32xf32>
    %203 = arith.addf %201, %202 : vector<16x32xf32>
    %204 = arith.negf %203 : vector<16x32xf32>
    %205 = math.exp %204 : vector<16x32xf32>
    %cst_75 = arith.constant 1.000000e+00 : f32
    %206 = vector.broadcast %cst_75 : f32 to vector<16x32xf32>
    %207 = arith.addf %206, %205 : vector<16x32xf32>
    %208 = arith.divf %206, %207 : vector<16x32xf32>
    %209 = vector.extract_strided_slice %200 {offsets = [0, 32], sizes = [16, 32], strides = [1, 1]} : vector<16x128xf32> to vector<16x32xf32>
    %210 = vector.extract_strided_slice %196 {offsets = [0, 32], sizes = [16, 32], strides = [1, 1]} : vector<16x96xf32> to vector<16x32xf32>
    %211 = arith.addf %209, %210 : vector<16x32xf32>
    %212 = arith.negf %211 : vector<16x32xf32>
    %213 = math.exp %212 : vector<16x32xf32>
    %cst_76 = arith.constant 1.000000e+00 : f32
    %214 = vector.broadcast %cst_76 : f32 to vector<16x32xf32>
    %215 = arith.addf %214, %213 : vector<16x32xf32>
    %216 = arith.divf %214, %215 : vector<16x32xf32>
    %217 = vector.extract_strided_slice %200 {offsets = [0, 64], sizes = [16, 32], strides = [1, 1]} : vector<16x128xf32> to vector<16x32xf32>
    %218 = vector.extract_strided_slice %196 {offsets = [0, 64], sizes = [16, 32], strides = [1, 1]} : vector<16x96xf32> to vector<16x32xf32>
    %219 = vector.broadcast %6 : vector<1x32xf32> to vector<16x32xf32>
    %220 = arith.addf %218, %219 : vector<16x32xf32>
    %221 = arith.mulf %208, %220 : vector<16x32xf32>
    %222 = arith.addf %217, %221 : vector<16x32xf32>
    %223 = math.tanh %222 : vector<16x32xf32>
    %cst_77 = arith.constant 1.000000e+00 : f32
    %224 = vector.broadcast %cst_77 : f32 to vector<16x32xf32>
    %225 = arith.subf %224, %216 : vector<16x32xf32>
    %226 = arith.mulf %225, %223 : vector<16x32xf32>
    %227 = arith.mulf %216, %194 : vector<16x32xf32>
    %228 = arith.addf %226, %227 : vector<16x32xf32>
    %c0_78 = arith.constant 0 : index
    %c0_79 = arith.constant 0 : index
    %229 = vector.load %arg7[%c0_78, %c0_79] : memref<16x32xf32, #tpu.memory_space<vmem>>, vector<16x32xf32>
    tpu.vector_store %arg7[%c0_78, %c0_79], %228 {strides = array<i32>} : memref<16x32xf32, #tpu.memory_space<vmem>>, vector<16x32xf32>,
    %230 = arith.truncf %228 : vector<16x32xf32> to vector<16x32xbf16>
    %c0_80 = arith.constant 0 : index
    %231 = arith.index_cast %193 : i32 to index
    %c0_81 = arith.constant 0 : index
    %c0_82 = arith.constant 0 : index
    %232 = vector.load %arg6[%c0_80, %231, %c0_81, %c0_82] : memref<1x8x16x32xbf16, #tpu.memory_space<vmem>>, vector<1x1x16x32xbf16>
    %233 = vector.shape_cast %232 : vector<1x1x16x32xbf16> to vector<16x32xbf16>
    %234 = vector.shape_cast %230 : vector<16x32xbf16> to vector<1x1x16x32xbf16>
    tpu.vector_store %arg6[%c0_80, %231, %c0_81, %c0_82], %234 {strides = array<i32>} : memref<1x8x16x32xbf16, #tpu.memory_space<vmem>>, vector<1x1x16x32xbf16>,
    %c5_i32 = arith.constant 5 : i32
    %c2_i32_83 = arith.constant 2 : i32
    %235 = arith.muli %c2_i32_83, %c5_i32 : i32
    %c7_i32_84 = arith.constant 7 : i32
    %236 = arith.subi %c7_i32_84, %235 : i32
    %237 = arith.muli %arg0, %236 : i32
    %238 = arith.addi %c5_i32, %237 : i32
    %c0_85 = arith.constant 0 : index
    %c0_86 = arith.constant 0 : index
    %239 = vector.load %arg7[%c0_85, %c0_86] : memref<16x32xf32, #tpu.memory_space<vmem>>, vector<16x32xf32>
    %240 = arith.truncf %239 : vector<16x32xf32> to vector<16x32xbf16>
    %cst_87 = arith.constant dense<0.000000e+00> : vector<16x96xf32>
    %241 = tpu.matmul %240, %4, %cst_87 {dimension_numbers = #tpu.dot_dimension_numbers<[1], [0], [0], [1], [0, 0, 1, 1], [], []>} : vector<16x32xbf16>, vector<32x96xbf16>, vector<16x96xf32> -> vector<16x96xf32>
    %242 = arith.addi %9, %238 : i32
    %243 = arith.index_cast %242 : i32 to index
    %c0_88 = arith.constant 0 : index
    %c0_89 = arith.constant 0 : index
    %244 = vector.load %arg8[%243, %c0_88, %c0_89] : memref<16x16x128xf32, #tpu.memory_space<vmem>>, vector<1x16x128xf32>
    %245 = vector.shape_cast %244 : vector<1x16x128xf32> to vector<16x128xf32>
    %246 = vector.extract_strided_slice %245 {offsets = [0, 0], sizes = [16, 32], strides = [1, 1]} : vector<16x128xf32> to vector<16x32xf32>
    %247 = vector.extract_strided_slice %241 {offsets = [0, 0], sizes = [16, 32], strides = [1, 1]} : vector<16x96xf32> to vector<16x32xf32>
    %248 = arith.addf %246, %247 : vector<16x32xf32>
    %249 = arith.negf %248 : vector<16x32xf32>
    %250 = math.exp %249 : vector<16x32xf32>
    %cst_90 = arith.constant 1.000000e+00 : f32
    %251 = vector.broadcast %cst_90 : f32 to vector<16x32xf32>
    %252 = arith.addf %251, %250 : vector<16x32xf32>
    %253 = arith.divf %251, %252 : vector<16x32xf32>
    %254 = vector.extract_strided_slice %245 {offsets = [0, 32], sizes = [16, 32], strides = [1, 1]} : vector<16x128xf32> to vector<16x32xf32>
    %255 = vector.extract_strided_slice %241 {offsets = [0, 32], sizes = [16, 32], strides = [1, 1]} : vector<16x96xf32> to vector<16x32xf32>
    %256 = arith.addf %254, %255 : vector<16x32xf32>
    %257 = arith.negf %256 : vector<16x32xf32>
    %258 = math.exp %257 : vector<16x32xf32>
    %cst_91 = arith.constant 1.000000e+00 : f32
    %259 = vector.broadcast %cst_91 : f32 to vector<16x32xf32>
    %260 = arith.addf %259, %258 : vector<16x32xf32>
    %261 = arith.divf %259, %260 : vector<16x32xf32>
    %262 = vector.extract_strided_slice %245 {offsets = [0, 64], sizes = [16, 32], strides = [1, 1]} : vector<16x128xf32> to vector<16x32xf32>
    %263 = vector.extract_strided_slice %241 {offsets = [0, 64], sizes = [16, 32], strides = [1, 1]} : vector<16x96xf32> to vector<16x32xf32>
    %264 = vector.broadcast %6 : vector<1x32xf32> to vector<16x32xf32>
    %265 = arith.addf %263, %264 : vector<16x32xf32>
    %266 = arith.mulf %253, %265 : vector<16x32xf32>
    %267 = arith.addf %262, %266 : vector<16x32xf32>
    %268 = math.tanh %267 : vector<16x32xf32>
    %cst_92 = arith.constant 1.000000e+00 : f32
    %269 = vector.broadcast %cst_92 : f32 to vector<16x32xf32>
    %270 = arith.subf %269, %261 : vector<16x32xf32>
    %271 = arith.mulf %270, %268 : vector<16x32xf32>
    %272 = arith.mulf %261, %239 : vector<16x32xf32>
    %273 = arith.addf %271, %272 : vector<16x32xf32>
    %c0_93 = arith.constant 0 : index
    %c0_94 = arith.constant 0 : index
    %274 = vector.load %arg7[%c0_93, %c0_94] : memref<16x32xf32, #tpu.memory_space<vmem>>, vector<16x32xf32>
    tpu.vector_store %arg7[%c0_93, %c0_94], %273 {strides = array<i32>} : memref<16x32xf32, #tpu.memory_space<vmem>>, vector<16x32xf32>,
    %275 = arith.truncf %273 : vector<16x32xf32> to vector<16x32xbf16>
    %c0_95 = arith.constant 0 : index
    %276 = arith.index_cast %238 : i32 to index
    %c0_96 = arith.constant 0 : index
    %c0_97 = arith.constant 0 : index
    %277 = vector.load %arg6[%c0_95, %276, %c0_96, %c0_97] : memref<1x8x16x32xbf16, #tpu.memory_space<vmem>>, vector<1x1x16x32xbf16>
    %278 = vector.shape_cast %277 : vector<1x1x16x32xbf16> to vector<16x32xbf16>
    %279 = vector.shape_cast %275 : vector<16x32xbf16> to vector<1x1x16x32xbf16>
    tpu.vector_store %arg6[%c0_95, %276, %c0_96, %c0_97], %279 {strides = array<i32>} : memref<1x8x16x32xbf16, #tpu.memory_space<vmem>>, vector<1x1x16x32xbf16>,
    %c6_i32 = arith.constant 6 : i32
    %c2_i32_98 = arith.constant 2 : i32
    %280 = arith.muli %c2_i32_98, %c6_i32 : i32
    %c7_i32_99 = arith.constant 7 : i32
    %281 = arith.subi %c7_i32_99, %280 : i32
    %282 = arith.muli %arg0, %281 : i32
    %283 = arith.addi %c6_i32, %282 : i32
    %c0_100 = arith.constant 0 : index
    %c0_101 = arith.constant 0 : index
    %284 = vector.load %arg7[%c0_100, %c0_101] : memref<16x32xf32, #tpu.memory_space<vmem>>, vector<16x32xf32>
    %285 = arith.truncf %284 : vector<16x32xf32> to vector<16x32xbf16>
    %cst_102 = arith.constant dense<0.000000e+00> : vector<16x96xf32>
    %286 = tpu.matmul %285, %4, %cst_102 {dimension_numbers = #tpu.dot_dimension_numbers<[1], [0], [0], [1], [0, 0, 1, 1], [], []>} : vector<16x32xbf16>, vector<32x96xbf16>, vector<16x96xf32> -> vector<16x96xf32>
    %287 = arith.addi %9, %283 : i32
    %288 = arith.index_cast %287 : i32 to index
    %c0_103 = arith.constant 0 : index
    %c0_104 = arith.constant 0 : index
    %289 = vector.load %arg8[%288, %c0_103, %c0_104] : memref<16x16x128xf32, #tpu.memory_space<vmem>>, vector<1x16x128xf32>
    %290 = vector.shape_cast %289 : vector<1x16x128xf32> to vector<16x128xf32>
    %291 = vector.extract_strided_slice %290 {offsets = [0, 0], sizes = [16, 32], strides = [1, 1]} : vector<16x128xf32> to vector<16x32xf32>
    %292 = vector.extract_strided_slice %286 {offsets = [0, 0], sizes = [16, 32], strides = [1, 1]} : vector<16x96xf32> to vector<16x32xf32>
    %293 = arith.addf %291, %292 : vector<16x32xf32>
    %294 = arith.negf %293 : vector<16x32xf32>
    %295 = math.exp %294 : vector<16x32xf32>
    %cst_105 = arith.constant 1.000000e+00 : f32
    %296 = vector.broadcast %cst_105 : f32 to vector<16x32xf32>
    %297 = arith.addf %296, %295 : vector<16x32xf32>
    %298 = arith.divf %296, %297 : vector<16x32xf32>
    %299 = vector.extract_strided_slice %290 {offsets = [0, 32], sizes = [16, 32], strides = [1, 1]} : vector<16x128xf32> to vector<16x32xf32>
    %300 = vector.extract_strided_slice %286 {offsets = [0, 32], sizes = [16, 32], strides = [1, 1]} : vector<16x96xf32> to vector<16x32xf32>
    %301 = arith.addf %299, %300 : vector<16x32xf32>
    %302 = arith.negf %301 : vector<16x32xf32>
    %303 = math.exp %302 : vector<16x32xf32>
    %cst_106 = arith.constant 1.000000e+00 : f32
    %304 = vector.broadcast %cst_106 : f32 to vector<16x32xf32>
    %305 = arith.addf %304, %303 : vector<16x32xf32>
    %306 = arith.divf %304, %305 : vector<16x32xf32>
    %307 = vector.extract_strided_slice %290 {offsets = [0, 64], sizes = [16, 32], strides = [1, 1]} : vector<16x128xf32> to vector<16x32xf32>
    %308 = vector.extract_strided_slice %286 {offsets = [0, 64], sizes = [16, 32], strides = [1, 1]} : vector<16x96xf32> to vector<16x32xf32>
    %309 = vector.broadcast %6 : vector<1x32xf32> to vector<16x32xf32>
    %310 = arith.addf %308, %309 : vector<16x32xf32>
    %311 = arith.mulf %298, %310 : vector<16x32xf32>
    %312 = arith.addf %307, %311 : vector<16x32xf32>
    %313 = math.tanh %312 : vector<16x32xf32>
    %cst_107 = arith.constant 1.000000e+00 : f32
    %314 = vector.broadcast %cst_107 : f32 to vector<16x32xf32>
    %315 = arith.subf %314, %306 : vector<16x32xf32>
    %316 = arith.mulf %315, %313 : vector<16x32xf32>
    %317 = arith.mulf %306, %284 : vector<16x32xf32>
    %318 = arith.addf %316, %317 : vector<16x32xf32>
    %c0_108 = arith.constant 0 : index
    %c0_109 = arith.constant 0 : index
    %319 = vector.load %arg7[%c0_108, %c0_109] : memref<16x32xf32, #tpu.memory_space<vmem>>, vector<16x32xf32>
    tpu.vector_store %arg7[%c0_108, %c0_109], %318 {strides = array<i32>} : memref<16x32xf32, #tpu.memory_space<vmem>>, vector<16x32xf32>,
    %320 = arith.truncf %318 : vector<16x32xf32> to vector<16x32xbf16>
    %c0_110 = arith.constant 0 : index
    %321 = arith.index_cast %283 : i32 to index
    %c0_111 = arith.constant 0 : index
    %c0_112 = arith.constant 0 : index
    %322 = vector.load %arg6[%c0_110, %321, %c0_111, %c0_112] : memref<1x8x16x32xbf16, #tpu.memory_space<vmem>>, vector<1x1x16x32xbf16>
    %323 = vector.shape_cast %322 : vector<1x1x16x32xbf16> to vector<16x32xbf16>
    %324 = vector.shape_cast %320 : vector<16x32xbf16> to vector<1x1x16x32xbf16>
    tpu.vector_store %arg6[%c0_110, %321, %c0_111, %c0_112], %324 {strides = array<i32>} : memref<1x8x16x32xbf16, #tpu.memory_space<vmem>>, vector<1x1x16x32xbf16>,
    %c7_i32_113 = arith.constant 7 : i32
    %c2_i32_114 = arith.constant 2 : i32
    %325 = arith.muli %c2_i32_114, %c7_i32_113 : i32
    %c7_i32_115 = arith.constant 7 : i32
    %326 = arith.subi %c7_i32_115, %325 : i32
    %327 = arith.muli %arg0, %326 : i32
    %328 = arith.addi %c7_i32_113, %327 : i32
    %c0_116 = arith.constant 0 : index
    %c0_117 = arith.constant 0 : index
    %329 = vector.load %arg7[%c0_116, %c0_117] : memref<16x32xf32, #tpu.memory_space<vmem>>, vector<16x32xf32>
    %330 = arith.truncf %329 : vector<16x32xf32> to vector<16x32xbf16>
    %cst_118 = arith.constant dense<0.000000e+00> : vector<16x96xf32>
    %331 = tpu.matmul %330, %4, %cst_118 {dimension_numbers = #tpu.dot_dimension_numbers<[1], [0], [0], [1], [0, 0, 1, 1], [], []>} : vector<16x32xbf16>, vector<32x96xbf16>, vector<16x96xf32> -> vector<16x96xf32>
    %332 = arith.addi %9, %328 : i32
    %333 = arith.index_cast %332 : i32 to index
    %c0_119 = arith.constant 0 : index
    %c0_120 = arith.constant 0 : index
    %334 = vector.load %arg8[%333, %c0_119, %c0_120] : memref<16x16x128xf32, #tpu.memory_space<vmem>>, vector<1x16x128xf32>
    %335 = vector.shape_cast %334 : vector<1x16x128xf32> to vector<16x128xf32>
    %336 = vector.extract_strided_slice %335 {offsets = [0, 0], sizes = [16, 32], strides = [1, 1]} : vector<16x128xf32> to vector<16x32xf32>
    %337 = vector.extract_strided_slice %331 {offsets = [0, 0], sizes = [16, 32], strides = [1, 1]} : vector<16x96xf32> to vector<16x32xf32>
    %338 = arith.addf %336, %337 : vector<16x32xf32>
    %339 = arith.negf %338 : vector<16x32xf32>
    %340 = math.exp %339 : vector<16x32xf32>
    %cst_121 = arith.constant 1.000000e+00 : f32
    %341 = vector.broadcast %cst_121 : f32 to vector<16x32xf32>
    %342 = arith.addf %341, %340 : vector<16x32xf32>
    %343 = arith.divf %341, %342 : vector<16x32xf32>
    %344 = vector.extract_strided_slice %335 {offsets = [0, 32], sizes = [16, 32], strides = [1, 1]} : vector<16x128xf32> to vector<16x32xf32>
    %345 = vector.extract_strided_slice %331 {offsets = [0, 32], sizes = [16, 32], strides = [1, 1]} : vector<16x96xf32> to vector<16x32xf32>
    %346 = arith.addf %344, %345 : vector<16x32xf32>
    %347 = arith.negf %346 : vector<16x32xf32>
    %348 = math.exp %347 : vector<16x32xf32>
    %cst_122 = arith.constant 1.000000e+00 : f32
    %349 = vector.broadcast %cst_122 : f32 to vector<16x32xf32>
    %350 = arith.addf %349, %348 : vector<16x32xf32>
    %351 = arith.divf %349, %350 : vector<16x32xf32>
    %352 = vector.extract_strided_slice %335 {offsets = [0, 64], sizes = [16, 32], strides = [1, 1]} : vector<16x128xf32> to vector<16x32xf32>
    %353 = vector.extract_strided_slice %331 {offsets = [0, 64], sizes = [16, 32], strides = [1, 1]} : vector<16x96xf32> to vector<16x32xf32>
    %354 = vector.broadcast %6 : vector<1x32xf32> to vector<16x32xf32>
    %355 = arith.addf %353, %354 : vector<16x32xf32>
    %356 = arith.mulf %343, %355 : vector<16x32xf32>
    %357 = arith.addf %352, %356 : vector<16x32xf32>
    %358 = math.tanh %357 : vector<16x32xf32>
    %cst_123 = arith.constant 1.000000e+00 : f32
    %359 = vector.broadcast %cst_123 : f32 to vector<16x32xf32>
    %360 = arith.subf %359, %351 : vector<16x32xf32>
    %361 = arith.mulf %360, %358 : vector<16x32xf32>
    %362 = arith.mulf %351, %329 : vector<16x32xf32>
    %363 = arith.addf %361, %362 : vector<16x32xf32>
    %c0_124 = arith.constant 0 : index
    %c0_125 = arith.constant 0 : index
    %364 = vector.load %arg7[%c0_124, %c0_125] : memref<16x32xf32, #tpu.memory_space<vmem>>, vector<16x32xf32>
    tpu.vector_store %arg7[%c0_124, %c0_125], %363 {strides = array<i32>} : memref<16x32xf32, #tpu.memory_space<vmem>>, vector<16x32xf32>,
    %365 = arith.truncf %363 : vector<16x32xf32> to vector<16x32xbf16>
    %c0_126 = arith.constant 0 : index
    %366 = arith.index_cast %328 : i32 to index
    %c0_127 = arith.constant 0 : index
    %c0_128 = arith.constant 0 : index
    %367 = vector.load %arg6[%c0_126, %366, %c0_127, %c0_128] : memref<1x8x16x32xbf16, #tpu.memory_space<vmem>>, vector<1x1x16x32xbf16>
    %368 = vector.shape_cast %367 : vector<1x1x16x32xbf16> to vector<16x32xbf16>
    %369 = vector.shape_cast %365 : vector<16x32xbf16> to vector<1x1x16x32xbf16>
    tpu.vector_store %arg6[%c0_126, %366, %c0_127, %c0_128], %369 {strides = array<i32>} : memref<1x8x16x32xbf16, #tpu.memory_space<vmem>>, vector<1x1x16x32xbf16>,
    %c8_i32_129 = arith.constant 8 : i32
    return
  }
  func.func @transform_0(%arg0: i32) -> (i32, i32, i32, i32) {
    %c0_i32 = arith.constant 0 : i32
    %c0_i32_0 = arith.constant 0 : i32
    %c0_i32_1 = arith.constant 0 : i32
    %c0_i32_2 = arith.constant 0 : i32
    %c0_i32_3 = arith.constant 0 : i32
    return %c0_i32, %c0_i32_0, %c0_i32_1, %c0_i32_2 : i32, i32, i32, i32
  }
  func.func @transform_1(%arg0: i32) -> (i32, i32, i32) {
    %c0_i32 = arith.constant 0 : i32
    %c0_i32_0 = arith.constant 0 : i32
    %c0_i32_1 = arith.constant 0 : i32
    %c0_i32_2 = arith.constant 0 : i32
    return %c0_i32, %c0_i32_0, %c0_i32_1 : i32, i32, i32
  }
  func.func @transform_2(%arg0: i32) -> (i32, i32, i32) {
    %c0_i32 = arith.constant 0 : i32
    %c0_i32_0 = arith.constant 0 : i32
    %c0_i32_1 = arith.constant 0 : i32
    return %arg0, %c0_i32, %c0_i32_0 : i32, i32, i32
  }
  func.func @transform_3(%arg0: i32) -> (i32, i32, i32) {
    %c0_i32 = arith.constant 0 : i32
    %c0_i32_0 = arith.constant 0 : i32
    %c0_i32_1 = arith.constant 0 : i32
    %c0_i32_2 = arith.constant 0 : i32
    return %c0_i32, %c0_i32_0, %c0_i32_1 : i32, i32, i32
  }
  func.func @transform_4(%arg0: i32) -> (i32, i32, i32) {
    %c0_i32 = arith.constant 0 : i32
    %c0_i32_0 = arith.constant 0 : i32
    %c0_i32_1 = arith.constant 0 : i32
    return %arg0, %c0_i32, %c0_i32_0 : i32, i32, i32
  }
  func.func @transform_5(%arg0: i32) -> (i32, i32, i32, i32) {
    %c0_i32 = arith.constant 0 : i32
    %c0_i32_0 = arith.constant 0 : i32
    %c0_i32_1 = arith.constant 0 : i32
    %c0_i32_2 = arith.constant 0 : i32
    return %arg0, %c0_i32, %c0_i32_0, %c0_i32_1 : i32, i32, i32, i32
  }
}

module attributes {stable_mosaic.version = 11 : i64} {
  func.func @fc_kernel(%arg0: memref<2x8x16x32xbf16, #tpu.memory_space<vmem>>, %arg1: memref<2x32x128xbf16, #tpu.memory_space<vmem>>, %arg2: memref<1x128xf32, #tpu.memory_space<vmem>>, %arg3: memref<8x16x128xf32, #tpu.memory_space<vmem>>) attributes {dimension_semantics = [], scalar_prefetch = 0 : i64, scratch_operands = 0 : i64, tpu.core_type = #tpu.core_type<tc>} {
    %c0 = arith.constant 0 : index
    %c0_0 = arith.constant 0 : index
    %c0_1 = arith.constant 0 : index
    %c0_2 = arith.constant 0 : index
    %0 = vector.load %arg0[%c0, %c0_0, %c0_1, %c0_2] : memref<2x8x16x32xbf16, #tpu.memory_space<vmem>>, vector<1x8x16x32xbf16>
    %1 = vector.shape_cast %0 : vector<1x8x16x32xbf16> to vector<8x16x32xbf16>
    %2 = vector.shape_cast %1 : vector<8x16x32xbf16> to vector<128x32xbf16>
    %c0_3 = arith.constant 0 : index
    %c0_4 = arith.constant 0 : index
    %c0_5 = arith.constant 0 : index
    %3 = vector.load %arg1[%c0_3, %c0_4, %c0_5] : memref<2x32x128xbf16, #tpu.memory_space<vmem>>, vector<1x32x128xbf16>
    %4 = vector.shape_cast %3 : vector<1x32x128xbf16> to vector<32x128xbf16>
    %cst = arith.constant dense<0.000000e+00> : vector<128x128xf32>
    %5 = tpu.matmul %2, %4, %cst {dimension_numbers = #tpu.dot_dimension_numbers<[1], [0], [0], [1], [0, 0, 1, 1], [], []>} : vector<128x32xbf16>, vector<32x128xbf16>, vector<128x128xf32> -> vector<128x128xf32>
    %c1 = arith.constant 1 : index
    %c0_6 = arith.constant 0 : index
    %c0_7 = arith.constant 0 : index
    %c0_8 = arith.constant 0 : index
    %6 = vector.load %arg0[%c1, %c0_6, %c0_7, %c0_8] : memref<2x8x16x32xbf16, #tpu.memory_space<vmem>>, vector<1x8x16x32xbf16>
    %7 = vector.shape_cast %6 : vector<1x8x16x32xbf16> to vector<8x16x32xbf16>
    %8 = vector.shape_cast %7 : vector<8x16x32xbf16> to vector<128x32xbf16>
    %c1_9 = arith.constant 1 : index
    %c0_10 = arith.constant 0 : index
    %c0_11 = arith.constant 0 : index
    %9 = vector.load %arg1[%c1_9, %c0_10, %c0_11] : memref<2x32x128xbf16, #tpu.memory_space<vmem>>, vector<1x32x128xbf16>
    %10 = vector.shape_cast %9 : vector<1x32x128xbf16> to vector<32x128xbf16>
    %cst_12 = arith.constant dense<0.000000e+00> : vector<128x128xf32>
    %11 = tpu.matmul %8, %10, %cst_12 {dimension_numbers = #tpu.dot_dimension_numbers<[1], [0], [0], [1], [0, 0, 1, 1], [], []>} : vector<128x32xbf16>, vector<32x128xbf16>, vector<128x128xf32> -> vector<128x128xf32>
    %12 = arith.addf %5, %11 : vector<128x128xf32>
    %c0_13 = arith.constant 0 : index
    %c0_14 = arith.constant 0 : index
    %13 = vector.load %arg2[%c0_13, %c0_14] : memref<1x128xf32, #tpu.memory_space<vmem>>, vector<1x128xf32>
    %14 = vector.broadcast %13 : vector<1x128xf32> to vector<128x128xf32>
    %15 = arith.addf %12, %14 : vector<128x128xf32>
    %16 = vector.shape_cast %15 : vector<128x128xf32> to vector<8x16x128xf32>
    %c0_15 = arith.constant 0 : index
    %c0_16 = arith.constant 0 : index
    %c0_17 = arith.constant 0 : index
    %17 = vector.load %arg3[%c0_15, %c0_16, %c0_17] : memref<8x16x128xf32, #tpu.memory_space<vmem>>, vector<8x16x128xf32>
    tpu.vector_store %arg3[%c0_15, %c0_16, %c0_17], %16 {strides = array<i32>} : memref<8x16x128xf32, #tpu.memory_space<vmem>>, vector<8x16x128xf32>,
    return
  }
}

</mosaic_0001>

<llo_original>
// kernel: birnn_forward.5
$region0: #{birnn_forward.5}
  #allocation0 [shape = 'u32[]', space=smem, size = 0x4, offset = 0x4, fixed_abs, tag = 'smem constant byte address 0x4 - core index']
  #allocation1 [shape = 'u32[144,128]{1,0:T(1,128)}', space=vmem, size = 0x12000, scoped, tag = 'internal scratch']
  %s0 = inlined_call_operand.vmem [shape: bf16[2,8,16,32], index: 0, kind: input, shape index: {}]
  %s1 = inlined_call_operand.vmem [shape: bf16[2,32,128], index: 1, kind: input, shape index: {}]
  %s2 = inlined_call_operand.vmem [shape: f32[1,128], index: 2, kind: input, shape index: {}]
  %s3 = inlined_call_operand.vmem [shape: f32[8,16,128], index: 3, kind: output, shape index: {}]
  %s4 = sld [smem:[#allocation0]]
  $region22: #{birnn_forward.5} parent=0
    _
  %s6 = ssub.s32 1, %s4
  %s7 = scalar_select 0, %s6, %s4
  // Predicated region
  $region2: #{birnn_forward.5} parent=0 // pred_check
    _
  $region3: #{birnn_forward.5} parent=0 // pred_check_branch
    %9 = sbr.rel (0) target = $region5
  $region4: #{birnn_forward.5} parent=0 // pred_region
    _
  $region5: #{birnn_forward.5} parent=0 // pred_fallthru
    _
  // Predicated region
  $region6: #{birnn_forward.5} parent=0 // pred_check
    _
  $region7: #{birnn_forward.5} parent=0 // pred_check_branch
    %11 = sbr.rel (0) target = $region9
  $region8: #{birnn_forward.5} parent=0 // pred_region
    _
  $region9: #{birnn_forward.5} parent=0 // pred_fallthru
    _
  // Predicated region
  $region10: #{birnn_forward.5} parent=0 // pred_check
    _
  $region11: #{birnn_forward.5} parent=0 // pred_check_branch
    %13 = sbr.rel (0) target = $region13
  $region12: #{birnn_forward.5} parent=0 // pred_region
    _
  $region13: #{birnn_forward.5} parent=0 // pred_fallthru
    _
  %v15 = vld [vmem:[%s0] sm:$0xf]
  %v16 = vld [vmem:[%s0 + $0x4] sm:$0xf]
  %v17 = vld [vmem:[%s0 + $0x8] sm:$0xf]
  %v18 = vld [vmem:[%s0 + $0xc] sm:$0xf]
  %v19 = vld [vmem:[%s0 + $0x10] sm:$0xf]
  %v20 = vld [vmem:[%s0 + $0x14] sm:$0xf]
  %v21 = vld [vmem:[%s0 + $0x18] sm:$0xf]
  %v22 = vld [vmem:[%s0 + $0x1c] sm:$0xf]
  %v23 = vld [vmem:[%s0 + $0x20] sm:$0xf]
  %v24 = vld [vmem:[%s0 + $0x24] sm:$0xf]
  %v25 = vld [vmem:[%s0 + $0x28] sm:$0xf]
  %v26 = vld [vmem:[%s0 + $0x2c] sm:$0xf]
  %v27 = vld [vmem:[%s0 + $0x30] sm:$0xf]
  %v28 = vld [vmem:[%s0 + $0x34] sm:$0xf]
  %v29 = vld [vmem:[%s0 + $0x38] sm:$0xf]
  %v30 = vld [vmem:[%s0 + $0x3c] sm:$0xf]
  %v31 = vld [vmem:[%s1] sm:$0xf]
  %v32 = vld [vmem:[%s1 + $0x4] sm:$0xf]
  %v33 = vld [vmem:[%s1 + $0x8] sm:$0xf]
  %v34 = vld [vmem:[%s1 + $0xc] sm:$0xf]
  %s35 = scalar_lea.vmem %s0, 64
  %v36 = vld [vmem:[%s35] sm:$0xf]
  %v37 = vld [vmem:[%s35 + $0x4] sm:$0xf]
  %v38 = vld [vmem:[%s35 + $0x8] sm:$0xf]
  %v39 = vld [vmem:[%s35 + $0xc] sm:$0xf]
  %v40 = vld [vmem:[%s35 + $0x10] sm:$0xf]
  %v41 = vld [vmem:[%s35 + $0x14] sm:$0xf]
  %v42 = vld [vmem:[%s35 + $0x18] sm:$0xf]
  %v43 = vld [vmem:[%s35 + $0x1c] sm:$0xf]
  %v44 = vld [vmem:[%s35 + $0x20] sm:$0xf]
  %v45 = vld [vmem:[%s35 + $0x24] sm:$0xf]
  %v46 = vld [vmem:[%s35 + $0x28] sm:$0xf]
  %v47 = vld [vmem:[%s35 + $0x2c] sm:$0xf]
  %v48 = vld [vmem:[%s35 + $0x30] sm:$0xf]
  %v49 = vld [vmem:[%s35 + $0x34] sm:$0xf]
  %v50 = vld [vmem:[%s35 + $0x38] sm:$0xf]
  %v51 = vld [vmem:[%s35 + $0x3c] sm:$0xf]
  %s52 = scalar_lea.vmem %s1, 16
  %v53 = vld [vmem:[%s52] sm:$0xf]
  %v54 = vld [vmem:[%s52 + $0x4] sm:$0xf]
  %v55 = vld [vmem:[%s52 + $0x8] sm:$0xf]
  %v56 = vld [vmem:[%s52 + $0xc] sm:$0xf]
  %v73 = vunpack.c.l.b16 %v36
  %v74 = vunpack.c.l.b16 %v37
  %v75 = vunpack.c.l.b16 %v38
  %v76 = vunpack.c.l.b16 %v39
  %v77 = vunpack.c.l.b16 %v40
  %v78 = vunpack.c.l.b16 %v41
  %v79 = vunpack.c.l.b16 %v42
  %v80 = vunpack.c.l.b16 %v43
  %v81 = vunpack.c.l.b16 %v44
  %v82 = vunpack.c.l.b16 %v45
  %v83 = vunpack.c.l.b16 %v46
  %v84 = vunpack.c.l.b16 %v47
  %v85 = vunpack.c.l.b16 %v48
  %v86 = vunpack.c.l.b16 %v49
  %v87 = vunpack.c.l.b16 %v50
  %v88 = vunpack.c.l.b16 %v51
  %v89 = vpack.c.b16 %v74, %v73
  %v90 = vpack.c.b16 %v76, %v75
  %v91 = vpack.c.b16 %v78, %v77
  %v92 = vpack.c.b16 %v80, %v79
  %v93 = vpack.c.b16 %v82, %v81
  %v94 = vpack.c.b16 %v84, %v83
  %v95 = vpack.c.b16 %v86, %v85
  %v96 = vpack.c.b16 %v88, %v87
  %v101 = vunpack.c.l.b16 %v53
  %v102 = vunpack.c.l.b16 %v54
  %v103 = vunpack.c.l.b16 %v55
  %v104 = vunpack.c.l.b16 %v56
  %v105 = vpack.c.b16 %v102, %v101
  %v106 = vpack.c.b16 %v104, %v103
  %vm109 = vcmask 261120
  %v111 = vsel %vm109, %v89, 0
  %v114 = vsel %vm109, %v90, 0
  %v117 = vsel %vm109, %v91, 0
  %v120 = vsel %vm109, %v92, 0
  %v123 = vsel %vm109, %v93, 0
  %v126 = vsel %vm109, %v94, 0
  %v129 = vsel %vm109, %v95, 0
  %v132 = vsel %vm109, %v96, 0
  %134 = vmatprep.subr.bf16.mxu0 0
  %135 = vmatpush1.bf16.msra.mxu0 %v105
  %136 = vmatprep.subr.bf16.mxu0 0
  %137 = vmatpush1.bf16.msra.mxu0 %v106
  %138 = vmatprep.subr.bf16.mxu0 0
  %139 = vmatpush1.bf16.msra.mxu0 0
  %140 = vmatprep.subr.bf16.mxu0 0
  %141 = vmatpush1.bf16.msra.mxu0 0
  %142 = vmatprep.subr.bf16.mxu0 0
  %143 = vmatpush1.bf16.msra.mxu0 0
  %144 = vmatprep.subr.bf16.mxu0 0
  %145 = vmatpush1.bf16.msra.mxu0 0
  %146 = vmatprep.subr.bf16.mxu0 0
  %147 = vmatpush1.bf16.msra.mxu0 0
  %148 = vmatprep.subr.bf16.mxu0 0
  %149 = vmatpush1.bf16.msra.mxu0 0
  %150 = vmatprep.subr.bf16.mxu0 0
  %151 = vmatpush1.bf16.msra.mxu0 0
  %152 = vmatprep.subr.bf16.mxu0 0
  %153 = vmatpush1.bf16.msra.mxu0 0
  %154 = vmatprep.subr.bf16.mxu0 0
  %155 = vmatpush1.bf16.msra.mxu0 0
  %156 = vmatprep.subr.bf16.mxu0 0
  %157 = vmatpush1.bf16.msra.mxu0 0
  %158 = vmatprep.subr.bf16.mxu0 0
  %159 = vmatpush1.bf16.msra.mxu0 0
  %160 = vmatprep.subr.bf16.mxu0 0
  %161 = vmatpush1.bf16.msra.mxu0 0
  %162 = vmatprep.subr.bf16.mxu0 0
  %163 = vmatpush1.bf16.msra.mxu0 0
  %164 = vmatprep.subr.bf16.mxu0 0
  %165 = vmatpush1.bf16.msra.mxu0 0
  %166 = vmatprep.mubr.bf16.mxu0 0
  %167 = vmatmul.mubr.bf16.gmra.mrb[0].mxu0 %v111
  %v168 = vpop.f32.mrb[0].mxu0
  %v169 = vadd.f32 0.0, %v168
  %v170 = vpop.f32.mrb[0].mxu0
  %v171 = vpop.f32.mrb[0].mxu0
  %v172 = vadd.f32 0.0, %v171
  %v173 = vpop.f32.mrb[0].mxu0
  %174 = vmatprep.mubr.bf16.mxu0 0
  %175 = vmatmul.mubr.bf16.gmra.mrb[0].mxu0 %v114
  %v176 = vpop.f32.mrb[0].mxu0
  %v177 = vadd.f32 0.0, %v176
  %v178 = vpop.f32.mrb[0].mxu0
  %v179 = vpop.f32.mrb[0].mxu0
  %v180 = vadd.f32 0.0, %v179
  %v181 = vpop.f32.mrb[0].mxu0
  %182 = vmatprep.mubr.bf16.mxu0 0
  %183 = vmatmul.mubr.bf16.gmra.mrb[0].mxu0 %v117
  %v184 = vpop.f32.mrb[0].mxu0
  %v185 = vadd.f32 0.0, %v184
  %v186 = vpop.f32.mrb[0].mxu0
  %v187 = vpop.f32.mrb[0].mxu0
  %v188 = vadd.f32 0.0, %v187
  %v189 = vpop.f32.mrb[0].mxu0
  %190 = vmatprep.mubr.bf16.mxu0 0
  %191 = vmatmul.mubr.bf16.gmra.mrb[0].mxu0 %v120
  %v192 = vpop.f32.mrb[0].mxu0
  %v193 = vadd.f32 0.0, %v192
  %v194 = vpop.f32.mrb[0].mxu0
  %v195 = vpop.f32.mrb[0].mxu0
  %v196 = vadd.f32 0.0, %v195
  %v197 = vpop.f32.mrb[0].mxu0
  %198 = vmatprep.mubr.bf16.mxu0 0
  %199 = vmatmul.mubr.bf16.gmra.mrb[0].mxu0 %v123
  %v200 = vpop.f32.mrb[0].mxu0
  %v201 = vadd.f32 0.0, %v200
  %v202 = vpop.f32.mrb[0].mxu0
  %v203 = vpop.f32.mrb[0].mxu0
  %v204 = vadd.f32 0.0, %v203
  %v205 = vpop.f32.mrb[0].mxu0
  %206 = vmatprep.mubr.bf16.mxu0 0
  %207 = vmatmul.mubr.bf16.gmra.mrb[0].mxu0 %v126
  %v208 = vpop.f32.mrb[0].mxu0
  %v209 = vadd.f32 0.0, %v208
  %v210 = vpop.f32.mrb[0].mxu0
  %v211 = vpop.f32.mrb[0].mxu0
  %v212 = vadd.f32 0.0, %v211
  %v213 = vpop.f32.mrb[0].mxu0
  %214 = vmatprep.mubr.bf16.mxu0 0
  %215 = vmatmul.mubr.bf16.gmra.mrb[0].mxu0 %v129
  %v216 = vpop.f32.mrb[0].mxu0
  %v217 = vadd.f32 0.0, %v216
  %v218 = vpop.f32.mrb[0].mxu0
  %v219 = vpop.f32.mrb[0].mxu0
  %v220 = vadd.f32 0.0, %v219
  %v221 = vpop.f32.mrb[0].mxu0
  %222 = vmatprep.mubr.bf16.mxu0 0
  %223 = vmatmul.mubr.bf16.gmra.mrb[0].mxu0 %v132
  %v224 = vpop.f32.mrb[0].mxu0
  %v225 = vadd.f32 0.0, %v224
  %v226 = vpop.f32.mrb[0].mxu0
  %v227 = vpop.f32.mrb[0].mxu0
  %v228 = vadd.f32 0.0, %v227
  %v229 = vpop.f32.mrb[0].mxu0
  %230 = vdwg.mxu0
  %v247 = vunpack.c.l.b16 %v15
  %v248 = vunpack.c.l.b16 %v16
  %v249 = vunpack.c.l.b16 %v17
  %v250 = vunpack.c.l.b16 %v18
  %v251 = vunpack.c.l.b16 %v19
  %v252 = vunpack.c.l.b16 %v20
  %v253 = vunpack.c.l.b16 %v21
  %v254 = vunpack.c.l.b16 %v22
  %v255 = vunpack.c.l.b16 %v23
  %v256 = vunpack.c.l.b16 %v24
  %v257 = vunpack.c.l.b16 %v25
  %v258 = vunpack.c.l.b16 %v26
  %v259 = vunpack.c.l.b16 %v27
  %v260 = vunpack.c.l.b16 %v28
  %v261 = vunpack.c.l.b16 %v29
  %v262 = vunpack.c.l.b16 %v30
  %v263 = vpack.c.b16 %v248, %v247
  %v264 = vpack.c.b16 %v250, %v249
  %v265 = vpack.c.b16 %v252, %v251
  %v266 = vpack.c.b16 %v254, %v253
  %v267 = vpack.c.b16 %v256, %v255
  %v268 = vpack.c.b16 %v258, %v257
  %v269 = vpack.c.b16 %v260, %v259
  %v270 = vpack.c.b16 %v262, %v261
  %v275 = vunpack.c.l.b16 %v31
  %v276 = vunpack.c.l.b16 %v32
  %v277 = vunpack.c.l.b16 %v33
  %v278 = vunpack.c.l.b16 %v34
  %v279 = vpack.c.b16 %v276, %v275
  %v280 = vpack.c.b16 %v278, %v277
  %v284 = vsel %vm109, %v263, 0
  %v287 = vsel %vm109, %v264, 0
  %v290 = vsel %vm109, %v265, 0
  %v293 = vsel %vm109, %v266, 0
  %v296 = vsel %vm109, %v267, 0
  %v299 = vsel %vm109, %v268, 0
  %v302 = vsel %vm109, %v269, 0
  %v305 = vsel %vm109, %v270, 0
  %307 = vmatprep.subr.bf16.mxu0 0
  %308 = vmatpush1.bf16.msra.mxu0 %v279
  %309 = vmatprep.subr.bf16.mxu0 0
  %310 = vmatpush1.bf16.msra.mxu0 %v280
  %311 = vmatprep.subr.bf16.mxu0 0
  %312 = vmatpush1.bf16.msra.mxu0 0
  %313 = vmatprep.subr.bf16.mxu0 0
  %314 = vmatpush1.bf16.msra.mxu0 0
  %315 = vmatprep.subr.bf16.mxu0 0
  %316 = vmatpush1.bf16.msra.mxu0 0
  %317 = vmatprep.subr.bf16.mxu0 0
  %318 = vmatpush1.bf16.msra.mxu0 0
  %319 = vmatprep.subr.bf16.mxu0 0
  %320 = vmatpush1.bf16.msra.mxu0 0
  %321 = vmatprep.subr.bf16.mxu0 0
  %322 = vmatpush1.bf16.msra.mxu0 0
  %323 = vmatprep.subr.bf16.mxu0 0
  %324 = vmatpush1.bf16.msra.mxu0 0
  %325 = vmatprep.subr.bf16.mxu0 0
  %326 = vmatpush1.bf16.msra.mxu0 0
  %327 = vmatprep.subr.bf16.mxu0 0
  %328 = vmatpush1.bf16.msra.mxu0 0
  %329 = vmatprep.subr.bf16.mxu0 0
  %330 = vmatpush1.bf16.msra.mxu0 0
  %331 = vmatprep.subr.bf16.mxu0 0
  %332 = vmatpush1.bf16.msra.mxu0 0
  %333 = vmatprep.subr.bf16.mxu0 0
  %334 = vmatpush1.bf16.msra.mxu0 0
  %335 = vmatprep.subr.bf16.mxu0 0
  %336 = vmatpush1.bf16.msra.mxu0 0
  %337 = vmatprep.subr.bf16.mxu0 0
  %338 = vmatpush1.bf16.msra.mxu0 0
  %339 = vmatprep.mubr.bf16.mxu0 0
  %340 = vmatmul.mubr.bf16.gmra.mrb[0].mxu0 %v284
  %v341 = vpop.f32.mrb[0].mxu0
  %v342 = vadd.f32 %v169, %v341
  %v343 = vpop.f32.mrb[0].mxu0
  %v344 = vpop.f32.mrb[0].mxu0
  %v345 = vadd.f32 %v172, %v344
  %v346 = vpop.f32.mrb[0].mxu0
  %347 = vmatprep.mubr.bf16.mxu0 0
  %348 = vmatmul.mubr.bf16.gmra.mrb[0].mxu0 %v287
  %v349 = vpop.f32.mrb[0].mxu0
  %v350 = vadd.f32 %v177, %v349
  %v351 = vpop.f32.mrb[0].mxu0
  %v352 = vpop.f32.mrb[0].mxu0
  %v353 = vadd.f32 %v180, %v352
  %v354 = vpop.f32.mrb[0].mxu0
  %355 = vmatprep.mubr.bf16.mxu0 0
  %356 = vmatmul.mubr.bf16.gmra.mrb[0].mxu0 %v290
  %v357 = vpop.f32.mrb[0].mxu0
  %v358 = vadd.f32 %v185, %v357
  %v359 = vpop.f32.mrb[0].mxu0
  %v360 = vpop.f32.mrb[0].mxu0
  %v361 = vadd.f32 %v188, %v360
  %v362 = vpop.f32.mrb[0].mxu0
  %363 = vmatprep.mubr.bf16.mxu0 0
  %364 = vmatmul.mubr.bf16.gmra.mrb[0].mxu0 %v293
  %v365 = vpop.f32.mrb[0].mxu0
  %v366 = vadd.f32 %v193, %v365
  %v367 = vpop.f32.mrb[0].mxu0
  %v368 = vpop.f32.mrb[0].mxu0
  %v369 = vadd.f32 %v196, %v368
  %v370 = vpop.f32.mrb[0].mxu0
  %371 = vmatprep.mubr.bf16.mxu0 0
  %372 = vmatmul.mubr.bf16.gmra.mrb[0].mxu0 %v296
  %v373 = vpop.f32.mrb[0].mxu0
  %v374 = vadd.f32 %v201, %v373
  %v375 = vpop.f32.mrb[0].mxu0
  %v376 = vpop.f32.mrb[0].mxu0
  %v377 = vadd.f32 %v204, %v376
  %v378 = vpop.f32.mrb[0].mxu0
  %379 = vmatprep.mubr.bf16.mxu0 0
  %380 = vmatmul.mubr.bf16.gmra.mrb[0].mxu0 %v299
  %v381 = vpop.f32.mrb[0].mxu0
  %v382 = vadd.f32 %v209, %v381
  %v383 = vpop.f32.mrb[0].mxu0
  %v384 = vpop.f32.mrb[0].mxu0
  %v385 = vadd.f32 %v212, %v384
  %v386 = vpop.f32.mrb[0].mxu0
  %387 = vmatprep.mubr.bf16.mxu0 0
  %388 = vmatmul.mubr.bf16.gmra.mrb[0].mxu0 %v302
  %v389 = vpop.f32.mrb[0].mxu0
  %v390 = vadd.f32 %v217, %v389
  %v391 = vpop.f32.mrb[0].mxu0
  %v392 = vpop.f32.mrb[0].mxu0
  %v393 = vadd.f32 %v220, %v392
  %v394 = vpop.f32.mrb[0].mxu0
  %395 = vmatprep.mubr.bf16.mxu0 0
  %396 = vmatmul.mubr.bf16.gmra.mrb[0].mxu0 %v305
  %v397 = vpop.f32.mrb[0].mxu0
  %v398 = vadd.f32 %v225, %v397
  %v399 = vpop.f32.mrb[0].mxu0
  %v400 = vpop.f32.mrb[0].mxu0
  %v401 = vadd.f32 %v228, %v400
  %v402 = vpop.f32.mrb[0].mxu0
  %403 = vdwg.mxu0
  %v404 = vld [vmem:[%s2] sm:$0x1]
  %v406 = vlaneseq
  %v407 = vshrl.u32 %v406, 7
  %v408 = vsub.s32 0, %v407
  %v409 = vrot.slane %v404, %v408
  %v411 = vadd.f32 %v342, %v409
  %v412 = vadd.f32 %v345, %v409
  %v413 = vadd.f32 %v350, %v409
  %v414 = vadd.f32 %v353, %v409
  %v415 = vadd.f32 %v358, %v409
  %v416 = vadd.f32 %v361, %v409
  %v417 = vadd.f32 %v366, %v409
  %v418 = vadd.f32 %v369, %v409
  %v419 = vadd.f32 %v374, %v409
  %v420 = vadd.f32 %v377, %v409
  %v421 = vadd.f32 %v382, %v409
  %v422 = vadd.f32 %v385, %v409
  %v423 = vadd.f32 %v390, %v409
  %v424 = vadd.f32 %v393, %v409
  %v425 = vadd.f32 %v398, %v409
  %v426 = vadd.f32 %v401, %v409
  %427 = vst [vmem:[%s3] sm:$0xff] %v411
  %428 = vst [vmem:[%s3 + $0x8] sm:$0xff] %v412
  %429 = vst [vmem:[%s3 + $0x10] sm:$0xff] %v413
  %430 = vst [vmem:[%s3 + $0x18] sm:$0xff] %v414
  %431 = vst [vmem:[%s3 + $0x20] sm:$0xff] %v415
  %432 = vst [vmem:[%s3 + $0x28] sm:$0xff] %v416
  %433 = vst [vmem:[%s3 + $0x30] sm:$0xff] %v417
  %434 = vst [vmem:[%s3 + $0x38] sm:$0xff] %v418
  %435 = vst [vmem:[%s3 + $0x40] sm:$0xff] %v419
  %436 = vst [vmem:[%s3 + $0x48] sm:$0xff] %v420
  %437 = vst [vmem:[%s3 + $0x50] sm:$0xff] %v421
  %438 = vst [vmem:[%s3 + $0x58] sm:$0xff] %v422
  %439 = vst [vmem:[%s3 + $0x60] sm:$0xff] %v423
  %440 = vst [vmem:[%s3 + $0x68] sm:$0xff] %v424
  %441 = vst [vmem:[%s3 + $0x70] sm:$0xff] %v425
  %442 = vst [vmem:[%s3 + $0x78] sm:$0xff] %v426
  // Predicated region
  $region14: #{birnn_forward.5} parent=0 // pred_check
    _
  $region15: #{birnn_forward.5} parent=0 // pred_check_branch
    %444 = sbr.rel (0) target = $region17
  $region16: #{birnn_forward.5} parent=0 // pred_region
    _
  $region17: #{birnn_forward.5} parent=0 // pred_fallthru
    _
  // Predicated region
  $region18: #{birnn_forward.5} parent=0 // pred_check
    _
  $region19: #{birnn_forward.5} parent=0 // pred_check_branch
    %446 = sbr.rel (0) target = $region21
  $region20: #{birnn_forward.5} parent=0 // pred_region
    _
  $region21: #{birnn_forward.5} parent=0 // pred_fallthru
    _

// kernel: birnn_forward.3
$region0: #{birnn_forward.3}
  #allocation0 [shape = 'u32[]', space=smem, size = 0x4, offset = 0x4, fixed_abs, tag = 'smem constant byte address 0x4 - core index']
  #allocation1 [shape = 'u32[144,128]{1,0:T(1,128)}', space=vmem, size = 0x12000, scoped, tag = 'internal scratch']
  #allocation2 [shape = 'f32[16,32]{1,0:T(8,128)}', space=vmem, size = 0x2000, scoped, tag = 'scratch operand']
  #allocation3 [shape = 'f32[16,16,128]{2,1,0:T(8,128)}', space=vmem, size = 0x20000, scoped, tag = 'scratch operand']
  %s0 = inlined_call_operand.vmem [shape: bf16[1,8,16,16], index: 0, kind: input, shape index: {}]
  %s1 = inlined_call_operand.vmem [shape: bf16[1,16,256], index: 1, kind: input, shape index: {}]
  %s2 = inlined_call_operand.vmem [shape: bf16[2,32,96], index: 2, kind: input, shape index: {}]
  %s3 = inlined_call_operand.vmem [shape: f32[2,1,128], index: 3, kind: input, shape index: {}]
  %s4 = inlined_call_operand.vmem [shape: f32[2,1,32], index: 4, kind: input, shape index: {}]
  %s5 = inlined_call_operand.vmem [shape: bf16[2,8,16,32], index: 5, kind: output, shape index: {}]
  %s6 = sld [smem:[#allocation0]]
  $region57: #{birnn_forward.3} parent=0
    _
  %s8 = ssub.s32 1, %s6
  %s9 = scalar_select 0, %s8, %s6
  loop: start=0, step=1, limit=4
  $region2: #{birnn_forward.3} parent=0 // loop_pre_header
    _
  $region3: #{birnn_forward.3} parent=0 // loop_header
    %s11 = sphi 0, %s15
    %p12 = scmp.ge.s32.totalorder %s11, 4
    %s19 = sphi 0, %s19
    %s21 = sphi 0, %s19
    %s22 = sphi 0, %s21
    %s36 = sphi 0, %s22
    %s40 = sphi 0, %s40
    %s42 = sphi 0, %s40
    %s43 = sphi 0, %s42
    %s57 = sphi 0, %s43
    %s63 = sphi 0, %s65
    %s66 = sphi 0, %s63
    %s67 = sphi 0, %s66
    %s83 = sphi 0, %s67
    %s87 = sphi 0, %s87
    %s89 = sphi 0, %s87
    %s90 = sphi 0, %s89
    %s104 = sphi 0, %s90
    %s110 = sphi 0, %s112
    %s113 = sphi 0, %s110
    %s114 = sphi 0, %s113
    %s130 = sphi 0, %s114
    %s136 = sphi 0, %s138
    %s139 = sphi 0, %s136
    %s140 = sphi 0, %s139
    %s156 = sphi 0, %s140
  $region4: #{birnn_forward.3} parent=0 // loop_header_branch
    %14 = sbr.rel (%p12) target = $region8
  $region5: #{birnn_forward.3} parent=0 // loop_body
    %s16 = ssub.s32 %s11, 1
    %s17 = ssub.s32 %s11, 2
    %s18 = sadd.s32 %s11, 1
    %s20 = sadd.s32 %s19, 1
    %p23 = scmp.eq.s32.totalorder %s11, 1
    %p24 = scmp.ne.s32.totalorder %s19, %s21
    %p25 = scmp.eq.s32.totalorder %s11, 0
    %p26 = por %p24, %p25
    %p27 = scmp.ne.s32.totalorder %s19, %s21
    %p28 = scmp.eq.s32.totalorder %s16, 1
    %p29 = por %p27, %p28
    %p30 = scmp.ne.s32.totalorder %s21, %s22
    %p31 = scmp.eq.s32.totalorder %s16, 0
    %p32 = por %p30, %p31
    %p33 = scmp.ne.s32.totalorder %s21, %s22
    %p34 = scmp.eq.s32.totalorder %s17, 1
    %p35 = por %p33, %p34
    %p37 = scmp.ne.s32.totalorder %s22, %s36
    %p38 = scmp.eq.s32.totalorder %s17, 0
    %p39 = por %p37, %p38
    %s41 = sadd.s32 %s40, 1
    %p44 = scmp.eq.s32.totalorder %s11, 1
    %p45 = scmp.ne.s32.totalorder %s40, %s42
    %p46 = scmp.eq.s32.totalorder %s11, 0
    %p47 = por %p45, %p46
    %p48 = scmp.ne.s32.totalorder %s40, %s42
    %p49 = scmp.eq.s32.totalorder %s16, 1
    %p50 = por %p48, %p49
    %p51 = scmp.ne.s32.totalorder %s42, %s43
    %p52 = scmp.eq.s32.totalorder %s16, 0
    %p53 = por %p51, %p52
    %p54 = scmp.ne.s32.totalorder %s42, %s43
    %p55 = scmp.eq.s32.totalorder %s17, 1
    %p56 = por %p54, %p55
    %p58 = scmp.ne.s32.totalorder %s43, %s57
    %p59 = scmp.eq.s32.totalorder %s17, 0
    %p60 = por %p58, %p59
    %s61 = ssub.s32 %s11, %s18
    %p62 = scmp.eq.s32.totalorder %s61, 0
    %s64 = sadd.s32 %s63, 1
    %s65 = scalar_select %p62, %s63, %s64
    %p68 = pneg %p62
    %p69 = scmp.eq.s32.totalorder %s11, 1
    %p70 = por %p68, %p69
    %p71 = scmp.ne.s32.totalorder %s63, %s66
    %p72 = scmp.eq.s32.totalorder %s11, 0
    %p73 = por %p71, %p72
    %p74 = scmp.ne.s32.totalorder %s63, %s66
    %p75 = scmp.eq.s32.totalorder %s16, 1
    %p76 = por %p74, %p75
    %p77 = scmp.ne.s32.totalorder %s66, %s67
    %p78 = scmp.eq.s32.totalorder %s16, 0
    %p79 = por %p77, %p78
    %p80 = scmp.ne.s32.totalorder %s66, %s67
    %p81 = scmp.eq.s32.totalorder %s17, 1
    %p82 = por %p80, %p81
    %p84 = scmp.ne.s32.totalorder %s67, %s83
    %p85 = scmp.eq.s32.totalorder %s17, 0
    %p86 = por %p84, %p85
    %s88 = sadd.s32 %s87, 1
    %p91 = scmp.eq.s32.totalorder %s11, 1
    %p92 = scmp.ne.s32.totalorder %s87, %s89
    %p93 = scmp.eq.s32.totalorder %s11, 0
    %p94 = por %p92, %p93
    %p95 = scmp.ne.s32.totalorder %s87, %s89
    %p96 = scmp.eq.s32.totalorder %s16, 1
    %p97 = por %p95, %p96
    %p98 = scmp.ne.s32.totalorder %s89, %s90
    %p99 = scmp.eq.s32.totalorder %s16, 0
    %p100 = por %p98, %p99
    %p101 = scmp.ne.s32.totalorder %s89, %s90
    %p102 = scmp.eq.s32.totalorder %s17, 1
    %p103 = por %p101, %p102
    %p105 = scmp.ne.s32.totalorder %s90, %s104
    %p106 = scmp.eq.s32.totalorder %s17, 0
    %p107 = por %p105, %p106
    %s108 = ssub.s32 %s11, %s18
    %p109 = scmp.eq.s32.totalorder %s108, 0
    %s111 = sadd.s32 %s110, 1
    %s112 = scalar_select %p109, %s110, %s111
    %p115 = pneg %p109
    %p116 = scmp.eq.s32.totalorder %s11, 1
    %p117 = por %p115, %p116
    %p118 = scmp.ne.s32.totalorder %s110, %s113
    %p119 = scmp.eq.s32.totalorder %s11, 0
    %p120 = por %p118, %p119
    %p121 = scmp.ne.s32.totalorder %s110, %s113
    %p122 = scmp.eq.s32.totalorder %s16, 1
    %p123 = por %p121, %p122
    %p124 = scmp.ne.s32.totalorder %s113, %s114
    %p125 = scmp.eq.s32.totalorder %s16, 0
    %p126 = por %p124, %p125
    %p127 = scmp.ne.s32.totalorder %s113, %s114
    %p128 = scmp.eq.s32.totalorder %s17, 1
    %p129 = por %p127, %p128
    %p131 = scmp.ne.s32.totalorder %s114, %s130
    %p132 = scmp.eq.s32.totalorder %s17, 0
    %p133 = por %p131, %p132
    %s134 = ssub.s32 %s11, %s18
    %p135 = scmp.eq.s32.totalorder %s134, 0
    %s137 = sadd.s32 %s136, 1
    %s138 = scalar_select %p135, %s136, %s137
    %p141 = pneg %p135
    %p142 = scmp.eq.s32.totalorder %s11, 1
    %p143 = por %p141, %p142
    %p144 = scmp.ne.s32.totalorder %s136, %s139
    %p145 = scmp.eq.s32.totalorder %s11, 0
    %p146 = por %p144, %p145
    %p147 = scmp.ne.s32.totalorder %s136, %s139
    %p148 = scmp.eq.s32.totalorder %s16, 1
    %p149 = por %p147, %p148
    %p150 = scmp.ne.s32.totalorder %s139, %s140
    %p151 = scmp.eq.s32.totalorder %s16, 0
    %p152 = por %p150, %p151
    %p153 = scmp.ne.s32.totalorder %s139, %s140
    %p154 = scmp.eq.s32.totalorder %s17, 1
    %p155 = por %p153, %p154
    %p157 = scmp.ne.s32.totalorder %s140, %s156
    %p158 = scmp.eq.s32.totalorder %s17, 0
    %p159 = por %p157, %p158
    %p160 = scmp.le.s32.totalorder 1, %s11
    %p161 = scmp.lt.s32.totalorder %s11, 3
    %p162 = pnand %p160, %p161
    %p163 = pneg %p162
    // Predicated region
    $region9: #{birnn_forward.3} parent=5 // pred_check
      _
    $region10: #{birnn_forward.3} parent=5 // pred_check_branch
      %165 = sbr.rel (%p162) target = $region12
    $region11: #{birnn_forward.3} parent=5 // pred_region
      %s166 = ssub.s32 %s11, 1
      // Predicated region
      $region13: #{birnn_forward.3} parent=11 // pred_check
        %p167 = pneg %p32
      $region14: #{birnn_forward.3} parent=11 // pred_check_branch
        %169 = sbr.rel (%p167) target = $region16
      $region15: #{birnn_forward.3} parent=11 // pred_region
        _
      $region16: #{birnn_forward.3} parent=11 // pred_fallthru
        _
      // Predicated region
      $region17: #{birnn_forward.3} parent=11 // pred_check
        %p170 = pneg %p53
      $region18: #{birnn_forward.3} parent=11 // pred_check_branch
        %172 = sbr.rel (%p170) target = $region20
      $region19: #{birnn_forward.3} parent=11 // pred_region
        _
      $region20: #{birnn_forward.3} parent=11 // pred_fallthru
        _
      // Predicated region
      $region21: #{birnn_forward.3} parent=11 // pred_check
        %p173 = pneg %p100
      $region22: #{birnn_forward.3} parent=11 // pred_check_branch
        %175 = sbr.rel (%p173) target = $region24
      $region23: #{birnn_forward.3} parent=11 // pred_region
        _
      $region24: #{birnn_forward.3} parent=11 // pred_fallthru
        _
    $region12: #{birnn_forward.3} parent=5 // pred_fallthru
      _
    %p176 = scmp.lt.s32.totalorder %s11, 2
    // Predicated region
    $region25: #{birnn_forward.3} parent=5 // pred_check
      %p177 = pneg %p176
    $region26: #{birnn_forward.3} parent=5 // pred_check_branch
      %179 = sbr.rel (%p177) target = $region28
    $region27: #{birnn_forward.3} parent=5 // pred_region
      // Predicated region
      $region29: #{birnn_forward.3} parent=27 // pred_check
        %p180 = pneg %p73
      $region30: #{birnn_forward.3} parent=27 // pred_check_branch
        %182 = sbr.rel (%p180) target = $region32
      $region31: #{birnn_forward.3} parent=27 // pred_region
        %p183 = scmp.lt.s32.totalorder %s11, 1
        %s184 = scalar_select %p183, %s11, 1
        %s185 = smul.addr %s184, 4
        %s186 = smul.addr %s185, 4
        %s187 = scalar_lea.vmem %s2, %s186
      $region32: #{birnn_forward.3} parent=27 // pred_fallthru
        _
      // Predicated region
      $region33: #{birnn_forward.3} parent=27 // pred_check
        %p188 = pneg %p120
      $region34: #{birnn_forward.3} parent=27 // pred_check_branch
        %190 = sbr.rel (%p188) target = $region36
      $region35: #{birnn_forward.3} parent=27 // pred_region
        %p191 = scmp.lt.s32.totalorder %s11, 1
        %s192 = scalar_select %p191, %s11, 1
        %s193 = scalar_lea.vmem %s4, %s192
      $region36: #{birnn_forward.3} parent=27 // pred_fallthru
        _
    $region28: #{birnn_forward.3} parent=5 // pred_fallthru
      _
    %p194 = scmp.le.s32.totalorder 1, %s11
    %p195 = scmp.lt.s32.totalorder %s11, 3
    %p196 = pnand %p194, %p195
    %p197 = pneg %p196
    // Predicated region
    $region37: #{birnn_forward.3} parent=5 // pred_check
      _
    $region38: #{birnn_forward.3} parent=5 // pred_check_branch
      %199 = sbr.rel (%p196) target = $region40
    $region39: #{birnn_forward.3} parent=5 // pred_region
      %s200 = ssub.s32 %s11, 1
      %p201 = pneg %p32
      %p202 = pneg %p29
      %p203 = pneg %p53
      %p204 = pneg %p50
      %p205 = scmp.lt.s32.totalorder %s16, 1
      %s206 = scalar_select %p205, %s16, 1
      %s207 = smul.addr %s206, 4
      %s208 = smul.addr %s207, 4
      %s209 = scalar_lea.vmem %s2, %s208
      %p210 = pneg %p79
      %p211 = pneg %p76
      %p212 = pneg %p100
      %p213 = pneg %p97
      %p214 = scmp.lt.s32.totalorder %s16, 1
      %s215 = scalar_select %p214, %s16, 1
      %s216 = scalar_lea.vmem %s4, %s215
      %p217 = pneg %p126
      %p218 = pneg %p123
      %p219 = pneg %p152
      %p220 = pneg %p149
      %p221 = scmp.lt.s32.totalorder %s16, 1
      %s222 = scalar_select %p221, %s16, 1
      %s223 = smul.addr %s222, 16
      %s224 = smul.addr %s223, 4
      %s225 = scalar_lea.vmem %s5, %s224
      %p226 = scmp.lt.s32.totalorder %s16, 1
      %s227 = scalar_select %p226, %s16, 1
      %s228 = smul.addr %s227, 4
      %s229 = smul.addr %s228, 4
      %s230 = scalar_lea.vmem %s2, %s229
      %p231 = scmp.lt.s32.totalorder %s16, 1
      %s232 = scalar_select %p231, %s16, 1
      %s233 = scalar_lea.vmem %s4, %s232
      %p234 = scmp.lt.s32.totalorder %s16, 1
      %s235 = scalar_select %p234, %s16, 1
      %s236 = smul.addr %s235, 16
      %s237 = smul.addr %s236, 4
      %s238 = scalar_lea.vmem %s5, %s237
      %p240 = scmp.eq.s32.totalorder %s16, 0
      // Predicated region
      $region41: #{birnn_forward.3} parent=39 // pred_check
        %p241 = pneg %p240
      $region42: #{birnn_forward.3} parent=39 // pred_check_branch
        %243 = sbr.rel (%p241) target = $region44
      $region43: #{birnn_forward.3} parent=39 // pred_region
        %v244 = vld [vmem:[%s0] sm:$0xf]
        %v245 = vld [vmem:[%s0 + $0x4] sm:$0xf]
        %v246 = vld [vmem:[%s0 + $0x8] sm:$0xf]
        %v247 = vld [vmem:[%s0 + $0xc] sm:$0xf]
        %v248 = vld [vmem:[%s0 + $0x10] sm:$0xf]
        %v249 = vld [vmem:[%s0 + $0x14] sm:$0xf]
        %v250 = vld [vmem:[%s0 + $0x18] sm:$0xf]
        %v251 = vld [vmem:[%s0 + $0x1c] sm:$0xf]
        %v252 = vld [vmem:[%s0 + $0x20] sm:$0xf]
        %v253 = vld [vmem:[%s0 + $0x24] sm:$0xf]
        %v254 = vld [vmem:[%s0 + $0x28] sm:$0xf]
        %v255 = vld [vmem:[%s0 + $0x2c] sm:$0xf]
        %v256 = vld [vmem:[%s0 + $0x30] sm:$0xf]
        %v257 = vld [vmem:[%s0 + $0x34] sm:$0xf]
        %v258 = vld [vmem:[%s0 + $0x38] sm:$0xf]
        %v259 = vld [vmem:[%s0 + $0x3c] sm:$0xf]
        %v260 = vld [vmem:[%s1] sm:$0xff]
        %v261 = vld [vmem:[%s1 + $0x8] sm:$0xff]
        %v278 = vunpack.c.l.b16 %v244
        %v279 = vunpack.c.l.b16 %v245
        %v280 = vunpack.c.l.b16 %v246
        %v281 = vunpack.c.l.b16 %v247
        %v282 = vunpack.c.l.b16 %v248
        %v283 = vunpack.c.l.b16 %v249
        %v284 = vunpack.c.l.b16 %v250
        %v285 = vunpack.c.l.b16 %v251
        %v286 = vunpack.c.l.b16 %v252
        %v287 = vunpack.c.l.b16 %v253
        %v288 = vunpack.c.l.b16 %v254
        %v289 = vunpack.c.l.b16 %v255
        %v290 = vunpack.c.l.b16 %v256
        %v291 = vunpack.c.l.b16 %v257
        %v292 = vunpack.c.l.b16 %v258
        %v293 = vunpack.c.l.b16 %v259
        %v294 = vpack.c.b16 %v279, %v278
        %v295 = vpack.c.b16 %v281, %v280
        %v296 = vpack.c.b16 %v283, %v282
        %v297 = vpack.c.b16 %v285, %v284
        %v298 = vpack.c.b16 %v287, %v286
        %v299 = vpack.c.b16 %v289, %v288
        %v300 = vpack.c.b16 %v291, %v290
        %v301 = vpack.c.b16 %v293, %v292
        %v304 = vunpack.c.l.b16 %v260
        %v305 = vunpack.c.h.b16 %v260
        %v306 = vunpack.c.l.b16 %v261
        %v307 = vunpack.c.h.b16 %v261
        %v308 = vpack.c.b16 %v306, %v304
        %v309 = vpack.c.b16 %v307, %v305
        %vm312 = vcmask 130048
        %v314 = vsel %vm312, %v294, 0
        %v317 = vsel %vm312, %v295, 0
        %v320 = vsel %vm312, %v296, 0
        %v323 = vsel %vm312, %v297, 0
        %v326 = vsel %vm312, %v298, 0
        %v329 = vsel %vm312, %v299, 0
        %v332 = vsel %vm312, %v300, 0
        %v335 = vsel %vm312, %v301, 0
        %337 = vmatprep.subr.bf16.mxu0 %v309
        %338 = vmatpush1.bf16.msra.mxu0 %v308
        %339 = vmatprep.subr.bf16.mxu0 0
        %340 = vmatpush1.bf16.msra.mxu0 0
        %341 = vmatprep.subr.bf16.mxu0 0
        %342 = vmatpush1.bf16.msra.mxu0 0
        %343 = vmatprep.subr.bf16.mxu0 0
        %344 = vmatpush1.bf16.msra.mxu0 0
        %345 = vmatprep.subr.bf16.mxu0 0
        %346 = vmatpush1.bf16.msra.mxu0 0
        %347 = vmatprep.subr.bf16.mxu0 0
        %348 = vmatpush1.bf16.msra.mxu0 0
        %349 = vmatprep.subr.bf16.mxu0 0
        %350 = vmatpush1.bf16.msra.mxu0 0
        %351 = vmatprep.subr.bf16.mxu0 0
        %352 = vmatpush1.bf16.msra.mxu0 0
        %353 = vmatprep.subr.bf16.mxu0 0
        %354 = vmatpush1.bf16.msra.mxu0 0
        %355 = vmatprep.subr.bf16.mxu0 0
        %356 = vmatpush1.bf16.msra.mxu0 0
        %357 = vmatprep.subr.bf16.mxu0 0
        %358 = vmatpush1.bf16.msra.mxu0 0
        %359 = vmatprep.subr.bf16.mxu0 0
        %360 = vmatpush1.bf16.msra.mxu0 0
        %361 = vmatprep.subr.bf16.mxu0 0
        %362 = vmatpush1.bf16.msra.mxu0 0
        %363 = vmatprep.subr.bf16.mxu0 0
        %364 = vmatpush1.bf16.msra.mxu0 0
        %365 = vmatprep.subr.bf16.mxu0 0
        %366 = vmatpush1.bf16.msra.mxu0 0
        %367 = vmatprep.subr.bf16.mxu0 0
        %368 = vmatpush1.bf16.msra.mxu0 0
        %369 = vmatprep.mubr.bf16.mxu0 0
        %370 = vmatmul.mubr.bf16.gmra.mrb[0].mxu0 %v314
        %v371 = vpop.f32.mrb[0].mxu0
        %v372 = vadd.f32 0.0, %v371
        %v373 = vpop.f32.mrb[0].mxu0
        %v374 = vadd.f32 0.0, %v373
        %v375 = vpop.f32.mrb[0].mxu0
        %v376 = vadd.f32 0.0, %v375
        %v377 = vpop.f32.mrb[0].mxu0
        %v378 = vadd.f32 0.0, %v377
        %379 = vmatprep.mubr.bf16.mxu0 0
        %380 = vmatmul.mubr.bf16.gmra.mrb[0].mxu0 %v317
        %v381 = vpop.f32.mrb[0].mxu0
        %v382 = vadd.f32 0.0, %v381
        %v383 = vpop.f32.mrb[0].mxu0
        %v384 = vadd.f32 0.0, %v383
        %v385 = vpop.f32.mrb[0].mxu0
        %v386 = vadd.f32 0.0, %v385
        %v387 = vpop.f32.mrb[0].mxu0
        %v388 = vadd.f32 0.0, %v387
        %389 = vmatprep.mubr.bf16.mxu0 0
        %390 = vmatmul.mubr.bf16.gmra.mrb[0].mxu0 %v320
        %v391 = vpop.f32.mrb[0].mxu0
        %v392 = vadd.f32 0.0, %v391
        %v393 = vpop.f32.mrb[0].mxu0
        %v394 = vadd.f32 0.0, %v393
        %v395 = vpop.f32.mrb[0].mxu0
        %v396 = vadd.f32 0.0, %v395
        %v397 = vpop.f32.mrb[0].mxu0
        %v398 = vadd.f32 0.0, %v397
        %399 = vmatprep.mubr.bf16.mxu0 0
        %400 = vmatmul.mubr.bf16.gmra.mrb[0].mxu0 %v323
        %v401 = vpop.f32.mrb[0].mxu0
        %v402 = vadd.f32 0.0, %v401
        %v403 = vpop.f32.mrb[0].mxu0
        %v404 = vadd.f32 0.0, %v403
        %v405 = vpop.f32.mrb[0].mxu0
        %v406 = vadd.f32 0.0, %v405
        %v407 = vpop.f32.mrb[0].mxu0
        %v408 = vadd.f32 0.0, %v407
        %409 = vmatprep.mubr.bf16.mxu0 0
        %410 = vmatmul.mubr.bf16.gmra.mrb[0].mxu0 %v326
        %v411 = vpop.f32.mrb[0].mxu0
        %v412 = vadd.f32 0.0, %v411
        %v413 = vpop.f32.mrb[0].mxu0
        %v414 = vadd.f32 0.0, %v413
        %v415 = vpop.f32.mrb[0].mxu0
        %v416 = vadd.f32 0.0, %v415
        %v417 = vpop.f32.mrb[0].mxu0
        %v418 = vadd.f32 0.0, %v417
        %419 = vmatprep.mubr.bf16.mxu0 0
        %420 = vmatmul.mubr.bf16.gmra.mrb[0].mxu0 %v329
        %v421 = vpop.f32.mrb[0].mxu0
        %v422 = vadd.f32 0.0, %v421
        %v423 = vpop.f32.mrb[0].mxu0
        %v424 = vadd.f32 0.0, %v423
        %v425 = vpop.f32.mrb[0].mxu0
        %v426 = vadd.f32 0.0, %v425
        %v427 = vpop.f32.mrb[0].mxu0
        %v428 = vadd.f32 0.0, %v427
        %429 = vmatprep.mubr.bf16.mxu0 0
        %430 = vmatmul.mubr.bf16.gmra.mrb[0].mxu0 %v332
        %v431 = vpop.f32.mrb[0].mxu0
        %v432 = vadd.f32 0.0, %v431
        %v433 = vpop.f32.mrb[0].mxu0
        %v434 = vadd.f32 0.0, %v433
        %v435 = vpop.f32.mrb[0].mxu0
        %v436 = vadd.f32 0.0, %v435
        %v437 = vpop.f32.mrb[0].mxu0
        %v438 = vadd.f32 0.0, %v437
        %439 = vmatprep.mubr.bf16.mxu0 0
        %440 = vmatmul.mubr.bf16.gmra.mrb[0].mxu0 %v335
        %v441 = vpop.f32.mrb[0].mxu0
        %v442 = vadd.f32 0.0, %v441
        %v443 = vpop.f32.mrb[0].mxu0
        %v444 = vadd.f32 0.0, %v443
        %v445 = vpop.f32.mrb[0].mxu0
        %v446 = vadd.f32 0.0, %v445
        %v447 = vpop.f32.mrb[0].mxu0
        %v448 = vadd.f32 0.0, %v447
        %449 = vdwg.mxu0
        %v450 = vld [vmem:[%s3] sm:$0x1]
        %v452 = vlaneseq
        %v453 = vshrl.u32 %v452, 7
        %v454 = vsub.s32 0, %v453
        %v455 = vrot.slane %v450, %v454
        %v457 = vadd.f32 %v372, %v455
        %v458 = vadd.f32 %v376, %v455
        %v459 = vadd.f32 %v382, %v455
        %v460 = vadd.f32 %v386, %v455
        %v461 = vadd.f32 %v392, %v455
        %v462 = vadd.f32 %v396, %v455
        %v463 = vadd.f32 %v402, %v455
        %v464 = vadd.f32 %v406, %v455
        %v465 = vadd.f32 %v412, %v455
        %v466 = vadd.f32 %v416, %v455
        %v467 = vadd.f32 %v422, %v455
        %v468 = vadd.f32 %v426, %v455
        %v469 = vadd.f32 %v432, %v455
        %v470 = vadd.f32 %v436, %v455
        %v471 = vadd.f32 %v442, %v455
        %v472 = vadd.f32 %v446, %v455
        %473 = vst [vmem:[#allocation3] sm:$0xff] %v457
        %474 = vst [vmem:[#allocation3 + $0x8] sm:$0xff] %v458
        %475 = vst [vmem:[#allocation3 + $0x10] sm:$0xff] %v459
        %476 = vst [vmem:[#allocation3 + $0x18] sm:$0xff] %v460
        %477 = vst [vmem:[#allocation3 + $0x20] sm:$0xff] %v461
        %478 = vst [vmem:[#allocation3 + $0x28] sm:$0xff] %v462
        %479 = vst [vmem:[#allocation3 + $0x30] sm:$0xff] %v463
        %480 = vst [vmem:[#allocation3 + $0x38] sm:$0xff] %v464
        %481 = vst [vmem:[#allocation3 + $0x40] sm:$0xff] %v465
        %482 = vst [vmem:[#allocation3 + $0x48] sm:$0xff] %v466
        %483 = vst [vmem:[#allocation3 + $0x50] sm:$0xff] %v467
        %484 = vst [vmem:[#allocation3 + $0x58] sm:$0xff] %v468
        %485 = vst [vmem:[#allocation3 + $0x60] sm:$0xff] %v469
        %486 = vst [vmem:[#allocation3 + $0x68] sm:$0xff] %v470
        %487 = vst [vmem:[#allocation3 + $0x70] sm:$0xff] %v471
        %488 = vst [vmem:[#allocation3 + $0x78] sm:$0xff] %v472
        %s489 = scalar_lea.vmem %s3, 1
        %v490 = vld [vmem:[%s489] sm:$0x1]
        %v492 = vlaneseq
        %v493 = vshrl.u32 %v492, 7
        %v494 = vsub.s32 0, %v493
        %v495 = vrot.slane %v490, %v494
        %v497 = vadd.f32 %v374, %v495
        %v498 = vadd.f32 %v378, %v495
        %v499 = vadd.f32 %v384, %v495
        %v500 = vadd.f32 %v388, %v495
        %v501 = vadd.f32 %v394, %v495
        %v502 = vadd.f32 %v398, %v495
        %v503 = vadd.f32 %v404, %v495
        %v504 = vadd.f32 %v408, %v495
        %v505 = vadd.f32 %v414, %v495
        %v506 = vadd.f32 %v418, %v495
        %v507 = vadd.f32 %v424, %v495
        %v508 = vadd.f32 %v428, %v495
        %v509 = vadd.f32 %v434, %v495
        %v510 = vadd.f32 %v438, %v495
        %v511 = vadd.f32 %v444, %v495
        %v512 = vadd.f32 %v448, %v495
        %s513 = scalar_lea.vmem [#allocation3], 128
        %514 = vst [vmem:[%s513] sm:$0xff] %v497
        %515 = vst [vmem:[%s513 + $0x8] sm:$0xff] %v498
        %516 = vst [vmem:[%s513 + $0x10] sm:$0xff] %v499
        %517 = vst [vmem:[%s513 + $0x18] sm:$0xff] %v500
        %518 = vst [vmem:[%s513 + $0x20] sm:$0xff] %v501
        %519 = vst [vmem:[%s513 + $0x28] sm:$0xff] %v502
        %520 = vst [vmem:[%s513 + $0x30] sm:$0xff] %v503
        %521 = vst [vmem:[%s513 + $0x38] sm:$0xff] %v504
        %522 = vst [vmem:[%s513 + $0x40] sm:$0xff] %v505
        %523 = vst [vmem:[%s513 + $0x48] sm:$0xff] %v506
        %524 = vst [vmem:[%s513 + $0x50] sm:$0xff] %v507
        %525 = vst [vmem:[%s513 + $0x58] sm:$0xff] %v508
        %526 = vst [vmem:[%s513 + $0x60] sm:$0xff] %v509
        %527 = vst [vmem:[%s513 + $0x68] sm:$0xff] %v510
        %528 = vst [vmem:[%s513 + $0x70] sm:$0xff] %v511
        %529 = vst [vmem:[%s513 + $0x78] sm:$0xff] %v512
      $region44: #{birnn_forward.3} parent=39 // pred_fallthru
        _
      %v530 = vld [vmem:[%s230] sm:$0xf]
      %v531 = vld [vmem:[%s230 + $0x4] sm:$0xf]
      %v532 = vld [vmem:[%s230 + $0x8] sm:$0xf]
      %v533 = vld [vmem:[%s230 + $0xc] sm:$0xf]
      %v534 = vld [vmem:[%s233] sm:$0x1]
      %vm535 = vcmask 261120
      %536 = vst.msk [vmem:[#allocation2] sm:$0xff] %vm535, 0.0
      %537 = vst.msk [vmem:[#allocation2 + $0x8] sm:$0xff] %vm535, 0.0
      %s538 = smul.u32 %s16, 8
      %s539 = smul.u32 %s16, 7
      %v540 = vld [vmem:[#allocation2] sm:$0xff]
      %v541 = vld [vmem:[#allocation2 + $0x8] sm:$0xff]
      %v542 = vpack.c.bf16 %v541, %v540
      %v547 = vunpack.c.l.b16 %v530
      %v548 = vunpack.c.l.b16 %v531
      %v549 = vunpack.c.l.b16 %v532
      %v550 = vunpack.c.l.b16 %v533
      %v551 = vpack.c.b16 %v548, %v547
      %v552 = vpack.c.b16 %v550, %v549
      %v556 = vsel %vm535, %v542, 0
      %558 = vmatprep.subr.bf16.mxu0 0
      %559 = vmatpush1.bf16.msra.mxu0 %v551
      %560 = vmatprep.subr.bf16.mxu0 0
      %561 = vmatpush1.bf16.msra.mxu0 %v552
      %562 = vmatprep.subr.bf16.mxu0 0
      %563 = vmatpush1.bf16.msra.mxu0 0
      %564 = vmatprep.subr.bf16.mxu0 0
      %565 = vmatpush1.bf16.msra.mxu0 0
      %566 = vmatprep.subr.bf16.mxu0 0
      %567 = vmatpush1.bf16.msra.mxu0 0
      %568 = vmatprep.subr.bf16.mxu0 0
      %569 = vmatpush1.bf16.msra.mxu0 0
      %570 = vmatprep.subr.bf16.mxu0 0
      %571 = vmatpush1.bf16.msra.mxu0 0
      %572 = vmatprep.subr.bf16.mxu0 0
      %573 = vmatpush1.bf16.msra.mxu0 0
      %574 = vmatprep.subr.bf16.mxu0 0
      %575 = vmatpush1.bf16.msra.mxu0 0
      %576 = vmatprep.subr.bf16.mxu0 0
      %577 = vmatpush1.bf16.msra.mxu0 0
      %578 = vmatprep.subr.bf16.mxu0 0
      %579 = vmatpush1.bf16.msra.mxu0 0
      %580 = vmatprep.subr.bf16.mxu0 0
      %581 = vmatpush1.bf16.msra.mxu0 0
      %582 = vmatprep.subr.bf16.mxu0 0
      %583 = vmatpush1.bf16.msra.mxu0 0
      %584 = vmatprep.subr.bf16.mxu0 0
      %585 = vmatpush1.bf16.msra.mxu0 0
      %586 = vmatprep.subr.bf16.mxu0 0
      %587 = vmatpush1.bf16.msra.mxu0 0
      %588 = vmatprep.subr.bf16.mxu0 0
      %589 = vmatpush1.bf16.msra.mxu0 0
      %590 = vmatprep.mubr.bf16.mxu0 0
      %591 = vmatmul.mubr.bf16.gmra.mrb[0].mxu0 %v556
      %v592 = vpop.f32.mrb[0].mxu0
      %v593 = vadd.f32 0.0, %v592
      %v594 = vpop.f32.mrb[0].mxu0
      %v595 = vpop.f32.mrb[0].mxu0
      %v596 = vadd.f32 0.0, %v595
      %v597 = vpop.f32.mrb[0].mxu0
      %598 = vdwg.mxu0
      %s599 = sadd.s32 %s538, %s539
      %s600 = smul.u32 %s599, 16
      %s601 = scalar_lea.vmem [#allocation3], %s600
      %v602 = vld [vmem:[%s601] sm:$0xff]
      %v603 = vld [vmem:[%s601 + $0x8] sm:$0xff]
      %v604 = vadd.f32 %v602, %v593
      %v605 = vadd.f32 %v603, %v596
      %v606 = vxor.u32 %v604, 2147483648
      %v607 = vxor.u32 %v605, 2147483648
      %v608 = vmul.f32 %v606, 1.442695
      %v609 = vpow.pop %v608
      %v610 = vmul.f32 %v607, 1.442695
      %v611 = vpow.pop %v610
      %v612 = vadd.f32 %v609, 1.0
      %v613 = vadd.f32 %v611, 1.0
      %v614 = vrcp.pop %v612
      %v615 = vmul.f32 1.0, %v614
      %v616 = vrcp.pop %v613
      %v617 = vmul.f32 1.0, %v616
      %v619 = vlaneseq
      %v620 = vshrl.u32 %v619, 7
      %v621 = vsub.s32 0, %v620
      %v622 = vrot.slane %v534, %v621
      %623 = vrot.lane.b32.xlu0 %v622, 64
      %v624 = vpop.permute.xlu0 %623
      %v626 = vadd.f32 %v593, %v624
      %v627 = vadd.f32 %v596, %v624
      %630 = vrot.lane.b32.xlu0 %v626, 64
      %v631 = vpop.permute.xlu0 %630
      %632 = vrot.lane.b32.xlu0 %v627, 64
      %v633 = vpop.permute.xlu0 %632
      %v636 = vmul.f32 %v615, %v631
      %v637 = vmul.f32 %v617, %v633
      %640 = vrot.lane.b32.xlu0 %v636, 64
      %v641 = vpop.permute.xlu0 %640
      %642 = vrot.lane.b32.xlu0 %v637, 64
      %v643 = vpop.permute.xlu0 %642
      %v646 = vadd.f32 %v602, %v641
      %v647 = vadd.f32 %v603, %v643
      %v648 = vtanh.pop %v646
      %v649 = vtanh.pop %v647
      %v650 = vsub.f32 1.0, %v615
      %v651 = vsub.f32 1.0, %v617
      %654 = vrot.lane.b32.xlu0 %v648, 96
      %v655 = vpop.permute.xlu0 %654
      %656 = vrot.lane.b32.xlu0 %v649, 96
      %v657 = vpop.permute.xlu0 %656
      %v660 = vmul.f32 %v650, %v655
      %v661 = vmul.f32 %v651, %v657
      %664 = vrot.lane.b32.xlu0 %v540, 32
      %v665 = vpop.permute.xlu0 %664
      %666 = vrot.lane.b32.xlu0 %v541, 32
      %v667 = vpop.permute.xlu0 %666
      %v670 = vmul.f32 %v615, %v665
      %v671 = vmul.f32 %v617, %v667
      %v672 = vadd.f32 %v660, %v670
      %v673 = vadd.f32 %v661, %v671
      %676 = vrot.lane.b32.xlu0 %v672, 96
      %v677 = vpop.permute.xlu0 %676
      %678 = vrot.lane.b32.xlu0 %v673, 96
      %v679 = vpop.permute.xlu0 %678
      %682 = vst.msk [vmem:[#allocation2] sm:$0xff] %vm535, %v677
      %683 = vst.msk [vmem:[#allocation2 + $0x8] sm:$0xff] %vm535, %v679
      %v684 = vpack.c.bf16 %v673, %v672
      %v686 = vunpack.c.l.b16 %v684
      %v687 = vunpack.c.h.b16 %v684
      %v688 = vpack.c.b16 %v686, %v686
      %v689 = vpack.c.b16 %v687, %v687
      %690 = vrot.lane.b32.xlu0 %v688, 96
      %v691 = vpop.permute.xlu0 %690
      %692 = vrot.lane.b32.xlu0 %v689, 96
      %v693 = vpop.permute.xlu0 %692
      %s696 = smul.u32 %s539, 2
      %s697 = smul.addr %s696, 4
      %s698 = scalar_lea.vmem %s238, %s697
      %vm699 = vcmask 257024
      %700 = vst.msk [vmem:[%s698] sm:$0xf] %vm699, %v691
      %701 = vst.msk [vmem:[%s698 + $0x4] sm:$0xf] %vm699, %v693
      %s702 = smul.u32 %s16, 5
      %s703 = sadd.s32 %s702, 1
      %v704 = vld [vmem:[#allocation2] sm:$0xff]
      %v705 = vld [vmem:[#allocation2 + $0x8] sm:$0xff]
      %v706 = vpack.c.bf16 %v705, %v704
      %v708 = vsel %vm535, %v706, 0
      %710 = vmatprep.subr.bf16.mxu0 0
      %711 = vmatpush1.bf16.msra.mxu0 %v551
      %712 = vmatprep.subr.bf16.mxu0 0
      %713 = vmatpush1.bf16.msra.mxu0 %v552
      %714 = vmatprep.subr.bf16.mxu0 0
      %715 = vmatpush1.bf16.msra.mxu0 0
      %716 = vmatprep.subr.bf16.mxu0 0
      %717 = vmatpush1.bf16.msra.mxu0 0
      %718 = vmatprep.subr.bf16.mxu0 0
      %719 = vmatpush1.bf16.msra.mxu0 0
      %720 = vmatprep.subr.bf16.mxu0 0
      %721 = vmatpush1.bf16.msra.mxu0 0
      %722 = vmatprep.subr.bf16.mxu0 0
      %723 = vmatpush1.bf16.msra.mxu0 0
      %724 = vmatprep.subr.bf16.mxu0 0
      %725 = vmatpush1.bf16.msra.mxu0 0
      %726 = vmatprep.subr.bf16.mxu0 0
      %727 = vmatpush1.bf16.msra.mxu0 0
      %728 = vmatprep.subr.bf16.mxu0 0
      %729 = vmatpush1.bf16.msra.mxu0 0
      %730 = vmatprep.subr.bf16.mxu0 0
      %731 = vmatpush1.bf16.msra.mxu0 0
      %732 = vmatprep.subr.bf16.mxu0 0
      %733 = vmatpush1.bf16.msra.mxu0 0
      %734 = vmatprep.subr.bf16.mxu0 0
      %735 = vmatpush1.bf16.msra.mxu0 0
      %736 = vmatprep.subr.bf16.mxu0 0
      %737 = vmatpush1.bf16.msra.mxu0 0
      %738 = vmatprep.subr.bf16.mxu0 0
      %739 = vmatpush1.bf16.msra.mxu0 0
      %740 = vmatprep.subr.bf16.mxu0 0
      %741 = vmatpush1.bf16.msra.mxu0 0
      %742 = vmatprep.mubr.bf16.mxu0 0
      %743 = vmatmul.mubr.bf16.gmra.mrb[0].mxu0 %v708
      %v744 = vpop.f32.mrb[0].mxu0
      %v745 = vadd.f32 0.0, %v744
      %v746 = vpop.f32.mrb[0].mxu0
      %v747 = vpop.f32.mrb[0].mxu0
      %v748 = vadd.f32 0.0, %v747
      %v749 = vpop.f32.mrb[0].mxu0
      %750 = vdwg.mxu0
      %s751 = sadd.s32 %s538, %s703
      %s752 = smul.u32 %s751, 16
      %s753 = scalar_lea.vmem [#allocation3], %s752
      %v754 = vld [vmem:[%s753] sm:$0xff]
      %v755 = vld [vmem:[%s753 + $0x8] sm:$0xff]
      %v756 = vadd.f32 %v754, %v745
      %v757 = vadd.f32 %v755, %v748
      %v758 = vxor.u32 %v756, 2147483648
      %v759 = vxor.u32 %v757, 2147483648
      %v760 = vmul.f32 %v758, 1.442695
      %v761 = vpow.pop %v760
      %v762 = vmul.f32 %v759, 1.442695
      %v763 = vpow.pop %v762
      %v764 = vadd.f32 %v761, 1.0
      %v765 = vadd.f32 %v763, 1.0
      %v766 = vrcp.pop %v764
      %v767 = vmul.f32 1.0, %v766
      %v768 = vrcp.pop %v765
      %v769 = vmul.f32 1.0, %v768
      %v770 = vadd.f32 %v745, %v624
      %v771 = vadd.f32 %v748, %v624
      %774 = vrot.lane.b32.xlu0 %v770, 64
      %v775 = vpop.permute.xlu0 %774
      %776 = vrot.lane.b32.xlu0 %v771, 64
      %v777 = vpop.permute.xlu0 %776
      %v780 = vmul.f32 %v767, %v775
      %v781 = vmul.f32 %v769, %v777
      %784 = vrot.lane.b32.xlu0 %v780, 64
      %v785 = vpop.permute.xlu0 %784
      %786 = vrot.lane.b32.xlu0 %v781, 64
      %v787 = vpop.permute.xlu0 %786
      %v790 = vadd.f32 %v754, %v785
      %v791 = vadd.f32 %v755, %v787
      %v792 = vtanh.pop %v790
      %v793 = vtanh.pop %v791
      %v794 = vsub.f32 1.0, %v767
      %v795 = vsub.f32 1.0, %v769
      %798 = vrot.lane.b32.xlu0 %v792, 96
      %v799 = vpop.permute.xlu0 %798
      %800 = vrot.lane.b32.xlu0 %v793, 96
      %v801 = vpop.permute.xlu0 %800
      %v804 = vmul.f32 %v794, %v799
      %v805 = vmul.f32 %v795, %v801
      %808 = vrot.lane.b32.xlu0 %v704, 32
      %v809 = vpop.permute.xlu0 %808
      %810 = vrot.lane.b32.xlu0 %v705, 32
      %v811 = vpop.permute.xlu0 %810
      %v814 = vmul.f32 %v767, %v809
      %v815 = vmul.f32 %v769, %v811
      %v816 = vadd.f32 %v804, %v814
      %v817 = vadd.f32 %v805, %v815
      %820 = vrot.lane.b32.xlu0 %v816, 96
      %v821 = vpop.permute.xlu0 %820
      %822 = vrot.lane.b32.xlu0 %v817, 96
      %v823 = vpop.permute.xlu0 %822
      %826 = vst.msk [vmem:[#allocation2] sm:$0xff] %vm535, %v821
      %827 = vst.msk [vmem:[#allocation2 + $0x8] sm:$0xff] %vm535, %v823
      %v828 = vpack.c.bf16 %v817, %v816
      %v830 = vunpack.c.l.b16 %v828
      %v831 = vunpack.c.h.b16 %v828
      %v832 = vpack.c.b16 %v830, %v830
      %v833 = vpack.c.b16 %v831, %v831
      %834 = vrot.lane.b32.xlu0 %v832, 96
      %v835 = vpop.permute.xlu0 %834
      %836 = vrot.lane.b32.xlu0 %v833, 96
      %v837 = vpop.permute.xlu0 %836
      %s840 = smul.u32 %s703, 2
      %s841 = smul.addr %s840, 4
      %s842 = scalar_lea.vmem %s238, %s841
      %843 = vst.msk [vmem:[%s842] sm:$0xf] %vm699, %v835
      %844 = vst.msk [vmem:[%s842 + $0x4] sm:$0xf] %vm699, %v837
      %s845 = smul.u32 %s16, 3
      %s846 = sadd.s32 %s845, 2
      %v847 = vld [vmem:[#allocation2] sm:$0xff]
      %v848 = vld [vmem:[#allocation2 + $0x8] sm:$0xff]
      %v849 = vpack.c.bf16 %v848, %v847
      %v851 = vsel %vm535, %v849, 0
      %853 = vmatprep.subr.bf16.mxu0 0
      %854 = vmatpush1.bf16.msra.mxu0 %v551
      %855 = vmatprep.subr.bf16.mxu0 0
      %856 = vmatpush1.bf16.msra.mxu0 %v552
      %857 = vmatprep.subr.bf16.mxu0 0
      %858 = vmatpush1.bf16.msra.mxu0 0
      %859 = vmatprep.subr.bf16.mxu0 0
      %860 = vmatpush1.bf16.msra.mxu0 0
      %861 = vmatprep.subr.bf16.mxu0 0
      %862 = vmatpush1.bf16.msra.mxu0 0
      %863 = vmatprep.subr.bf16.mxu0 0
      %864 = vmatpush1.bf16.msra.mxu0 0
      %865 = vmatprep.subr.bf16.mxu0 0
      %866 = vmatpush1.bf16.msra.mxu0 0
      %867 = vmatprep.subr.bf16.mxu0 0
      %868 = vmatpush1.bf16.msra.mxu0 0
      %869 = vmatprep.subr.bf16.mxu0 0
      %870 = vmatpush1.bf16.msra.mxu0 0
      %871 = vmatprep.subr.bf16.mxu0 0
      %872 = vmatpush1.bf16.msra.mxu0 0
      %873 = vmatprep.subr.bf16.mxu0 0
      %874 = vmatpush1.bf16.msra.mxu0 0
      %875 = vmatprep.subr.bf16.mxu0 0
      %876 = vmatpush1.bf16.msra.mxu0 0
      %877 = vmatprep.subr.bf16.mxu0 0
      %878 = vmatpush1.bf16.msra.mxu0 0
      %879 = vmatprep.subr.bf16.mxu0 0
      %880 = vmatpush1.bf16.msra.mxu0 0
      %881 = vmatprep.subr.bf16.mxu0 0
      %882 = vmatpush1.bf16.msra.mxu0 0
      %883 = vmatprep.subr.bf16.mxu0 0
      %884 = vmatpush1.bf16.msra.mxu0 0
      %885 = vmatprep.mubr.bf16.mxu0 0
      %886 = vmatmul.mubr.bf16.gmra.mrb[0].mxu0 %v851
      %v887 = vpop.f32.mrb[0].mxu0
      %v888 = vadd.f32 0.0, %v887
      %v889 = vpop.f32.mrb[0].mxu0
      %v890 = vpop.f32.mrb[0].mxu0
      %v891 = vadd.f32 0.0, %v890
      %v892 = vpop.f32.mrb[0].mxu0
      %893 = vdwg.mxu0
      %s894 = sadd.s32 %s538, %s846
      %s895 = smul.u32 %s894, 16
      %s896 = scalar_lea.vmem [#allocation3], %s895
      %v897 = vld [vmem:[%s896] sm:$0xff]
      %v898 = vld [vmem:[%s896 + $0x8] sm:$0xff]
      %v899 = vadd.f32 %v897, %v888
      %v900 = vadd.f32 %v898, %v891
      %v901 = vxor.u32 %v899, 2147483648
      %v902 = vxor.u32 %v900, 2147483648
      %v903 = vmul.f32 %v901, 1.442695
      %v904 = vpow.pop %v903
      %v905 = vmul.f32 %v902, 1.442695
      %v906 = vpow.pop %v905
      %v907 = vadd.f32 %v904, 1.0
      %v908 = vadd.f32 %v906, 1.0
      %v909 = vrcp.pop %v907
      %v910 = vmul.f32 1.0, %v909
      %v911 = vrcp.pop %v908
      %v912 = vmul.f32 1.0, %v911
      %v913 = vadd.f32 %v888, %v624
      %v914 = vadd.f32 %v891, %v624
      %917 = vrot.lane.b32.xlu0 %v913, 64
      %v918 = vpop.permute.xlu0 %917
      %919 = vrot.lane.b32.xlu0 %v914, 64
      %v920 = vpop.permute.xlu0 %919
      %v923 = vmul.f32 %v910, %v918
      %v924 = vmul.f32 %v912, %v920
      %927 = vrot.lane.b32.xlu0 %v923, 64
      %v928 = vpop.permute.xlu0 %927
      %929 = vrot.lane.b32.xlu0 %v924, 64
      %v930 = vpop.permute.xlu0 %929
      %v933 = vadd.f32 %v897, %v928
      %v934 = vadd.f32 %v898, %v930
      %v935 = vtanh.pop %v933
      %v936 = vtanh.pop %v934
      %v937 = vsub.f32 1.0, %v910
      %v938 = vsub.f32 1.0, %v912
      %941 = vrot.lane.b32.xlu0 %v935, 96
      %v942 = vpop.permute.xlu0 %941
      %943 = vrot.lane.b32.xlu0 %v936, 96
      %v944 = vpop.permute.xlu0 %943
      %v947 = vmul.f32 %v937, %v942
      %v948 = vmul.f32 %v938, %v944
      %951 = vrot.lane.b32.xlu0 %v847, 32
      %v952 = vpop.permute.xlu0 %951
      %953 = vrot.lane.b32.xlu0 %v848, 32
      %v954 = vpop.permute.xlu0 %953
      %v957 = vmul.f32 %v910, %v952
      %v958 = vmul.f32 %v912, %v954
      %v959 = vadd.f32 %v947, %v957
      %v960 = vadd.f32 %v948, %v958
      %963 = vrot.lane.b32.xlu0 %v959, 96
      %v964 = vpop.permute.xlu0 %963
      %965 = vrot.lane.b32.xlu0 %v960, 96
      %v966 = vpop.permute.xlu0 %965
      %969 = vst.msk [vmem:[#allocation2] sm:$0xff] %vm535, %v964
      %970 = vst.msk [vmem:[#allocation2 + $0x8] sm:$0xff] %vm535, %v966
      %v971 = vpack.c.bf16 %v960, %v959
      %v973 = vunpack.c.l.b16 %v971
      %v974 = vunpack.c.h.b16 %v971
      %v975 = vpack.c.b16 %v973, %v973
      %v976 = vpack.c.b16 %v974, %v974
      %977 = vrot.lane.b32.xlu0 %v975, 96
      %v978 = vpop.permute.xlu0 %977
      %979 = vrot.lane.b32.xlu0 %v976, 96
      %v980 = vpop.permute.xlu0 %979
      %s983 = smul.u32 %s846, 2
      %s984 = smul.addr %s983, 4
      %s985 = scalar_lea.vmem %s238, %s984
      %986 = vst.msk [vmem:[%s985] sm:$0xf] %vm699, %v978
      %987 = vst.msk [vmem:[%s985 + $0x4] sm:$0xf] %vm699, %v980
      %s988 = sadd.s32 %s16, 3
      %v989 = vld [vmem:[#allocation2] sm:$0xff]
      %v990 = vld [vmem:[#allocation2 + $0x8] sm:$0xff]
      %v991 = vpack.c.bf16 %v990, %v989
      %v993 = vsel %vm535, %v991, 0
      %995 = vmatprep.subr.bf16.mxu0 0
      %996 = vmatpush1.bf16.msra.mxu0 %v551
      %997 = vmatprep.subr.bf16.mxu0 0
      %998 = vmatpush1.bf16.msra.mxu0 %v552
      %999 = vmatprep.subr.bf16.mxu0 0
      %1000 = vmatpush1.bf16.msra.mxu0 0
      %1001 = vmatprep.subr.bf16.mxu0 0
      %1002 = vmatpush1.bf16.msra.mxu0 0
      %1003 = vmatprep.subr.bf16.mxu0 0
      %1004 = vmatpush1.bf16.msra.mxu0 0
      %1005 = vmatprep.subr.bf16.mxu0 0
      %1006 = vmatpush1.bf16.msra.mxu0 0
      %1007 = vmatprep.subr.bf16.mxu0 0
      %1008 = vmatpush1.bf16.msra.mxu0 0
      %1009 = vmatprep.subr.bf16.mxu0 0
      %1010 = vmatpush1.bf16.msra.mxu0 0
      %1011 = vmatprep.subr.bf16.mxu0 0
      %1012 = vmatpush1.bf16.msra.mxu0 0
      %1013 = vmatprep.subr.bf16.mxu0 0
      %1014 = vmatpush1.bf16.msra.mxu0 0
      %1015 = vmatprep.subr.bf16.mxu0 0
      %1016 = vmatpush1.bf16.msra.mxu0 0
      %1017 = vmatprep.subr.bf16.mxu0 0
      %1018 = vmatpush1.bf16.msra.mxu0 0
      %1019 = vmatprep.subr.bf16.mxu0 0
      %1020 = vmatpush1.bf16.msra.mxu0 0
      %1021 = vmatprep.subr.bf16.mxu0 0
      %1022 = vmatpush1.bf16.msra.mxu0 0
      %1023 = vmatprep.subr.bf16.mxu0 0
      %1024 = vmatpush1.bf16.msra.mxu0 0
      %1025 = vmatprep.subr.bf16.mxu0 0
      %1026 = vmatpush1.bf16.msra.mxu0 0
      %1027 = vmatprep.mubr.bf16.mxu0 0
      %1028 = vmatmul.mubr.bf16.gmra.mrb[0].mxu0 %v993
      %v1029 = vpop.f32.mrb[0].mxu0
      %v1030 = vadd.f32 0.0, %v1029
      %v1031 = vpop.f32.mrb[0].mxu0
      %v1032 = vpop.f32.mrb[0].mxu0
      %v1033 = vadd.f32 0.0, %v1032
      %v1034 = vpop.f32.mrb[0].mxu0
      %1035 = vdwg.mxu0
      %s1036 = sadd.s32 %s538, %s988
      %s1037 = smul.u32 %s1036, 16
      %s1038 = scalar_lea.vmem [#allocation3], %s1037
      %v1039 = vld [vmem:[%s1038] sm:$0xff]
      %v1040 = vld [vmem:[%s1038 + $0x8] sm:$0xff]
      %v1041 = vadd.f32 %v1039, %v1030
      %v1042 = vadd.f32 %v1040, %v1033
      %v1043 = vxor.u32 %v1041, 2147483648
      %v1044 = vxor.u32 %v1042, 2147483648
      %v1045 = vmul.f32 %v1043, 1.442695
      %v1046 = vpow.pop %v1045
      %v1047 = vmul.f32 %v1044, 1.442695
      %v1048 = vpow.pop %v1047
      %v1049 = vadd.f32 %v1046, 1.0
      %v1050 = vadd.f32 %v1048, 1.0
      %v1051 = vrcp.pop %v1049
      %v1052 = vmul.f32 1.0, %v1051
      %v1053 = vrcp.pop %v1050
      %v1054 = vmul.f32 1.0, %v1053
      %v1055 = vadd.f32 %v1030, %v624
      %v1056 = vadd.f32 %v1033, %v624
      %1059 = vrot.lane.b32.xlu0 %v1055, 64
      %v1060 = vpop.permute.xlu0 %1059
      %1061 = vrot.lane.b32.xlu0 %v1056, 64
      %v1062 = vpop.permute.xlu0 %1061
      %v1065 = vmul.f32 %v1052, %v1060
      %v1066 = vmul.f32 %v1054, %v1062
      %1069 = vrot.lane.b32.xlu0 %v1065, 64
      %v1070 = vpop.permute.xlu0 %1069
      %1071 = vrot.lane.b32.xlu0 %v1066, 64
      %v1072 = vpop.permute.xlu0 %1071
      %v1075 = vadd.f32 %v1039, %v1070
      %v1076 = vadd.f32 %v1040, %v1072
      %v1077 = vtanh.pop %v1075
      %v1078 = vtanh.pop %v1076
      %v1079 = vsub.f32 1.0, %v1052
      %v1080 = vsub.f32 1.0, %v1054
      %1083 = vrot.lane.b32.xlu0 %v1077, 96
      %v1084 = vpop.permute.xlu0 %1083
      %1085 = vrot.lane.b32.xlu0 %v1078, 96
      %v1086 = vpop.permute.xlu0 %1085
      %v1089 = vmul.f32 %v1079, %v1084
      %v1090 = vmul.f32 %v1080, %v1086
      %1093 = vrot.lane.b32.xlu0 %v989, 32
      %v1094 = vpop.permute.xlu0 %1093
      %1095 = vrot.lane.b32.xlu0 %v990, 32
      %v1096 = vpop.permute.xlu0 %1095
      %v1099 = vmul.f32 %v1052, %v1094
      %v1100 = vmul.f32 %v1054, %v1096
      %v1101 = vadd.f32 %v1089, %v1099
      %v1102 = vadd.f32 %v1090, %v1100
      %1105 = vrot.lane.b32.xlu0 %v1101, 96
      %v1106 = vpop.permute.xlu0 %1105
      %1107 = vrot.lane.b32.xlu0 %v1102, 96
      %v1108 = vpop.permute.xlu0 %1107
      %1111 = vst.msk [vmem:[#allocation2] sm:$0xff] %vm535, %v1106
      %1112 = vst.msk [vmem:[#allocation2 + $0x8] sm:$0xff] %vm535, %v1108
      %v1113 = vpack.c.bf16 %v1102, %v1101
      %v1115 = vunpack.c.l.b16 %v1113
      %v1116 = vunpack.c.h.b16 %v1113
      %v1117 = vpack.c.b16 %v1115, %v1115
      %v1118 = vpack.c.b16 %v1116, %v1116
      %1119 = vrot.lane.b32.xlu0 %v1117, 96
      %v1120 = vpop.permute.xlu0 %1119
      %1121 = vrot.lane.b32.xlu0 %v1118, 96
      %v1122 = vpop.permute.xlu0 %1121
      %s1125 = smul.u32 %s988, 2
      %s1126 = smul.addr %s1125, 4
      %s1127 = scalar_lea.vmem %s238, %s1126
      %1128 = vst.msk [vmem:[%s1127] sm:$0xf] %vm699, %v1120
      %1129 = vst.msk [vmem:[%s1127 + $0x4] sm:$0xf] %vm699, %v1122
      %s1130 = ssub.s32 4, %s16
      %v1131 = vld [vmem:[#allocation2] sm:$0xff]
      %v1132 = vld [vmem:[#allocation2 + $0x8] sm:$0xff]
      %v1133 = vpack.c.bf16 %v1132, %v1131
      %v1135 = vsel %vm535, %v1133, 0
      %1137 = vmatprep.subr.bf16.mxu0 0
      %1138 = vmatpush1.bf16.msra.mxu0 %v551
      %1139 = vmatprep.subr.bf16.mxu0 0
      %1140 = vmatpush1.bf16.msra.mxu0 %v552
      %1141 = vmatprep.subr.bf16.mxu0 0
      %1142 = vmatpush1.bf16.msra.mxu0 0
      %1143 = vmatprep.subr.bf16.mxu0 0
      %1144 = vmatpush1.bf16.msra.mxu0 0
      %1145 = vmatprep.subr.bf16.mxu0 0
      %1146 = vmatpush1.bf16.msra.mxu0 0
      %1147 = vmatprep.subr.bf16.mxu0 0
      %1148 = vmatpush1.bf16.msra.mxu0 0
      %1149 = vmatprep.subr.bf16.mxu0 0
      %1150 = vmatpush1.bf16.msra.mxu0 0
      %1151 = vmatprep.subr.bf16.mxu0 0
      %1152 = vmatpush1.bf16.msra.mxu0 0
      %1153 = vmatprep.subr.bf16.mxu0 0
      %1154 = vmatpush1.bf16.msra.mxu0 0
      %1155 = vmatprep.subr.bf16.mxu0 0
      %1156 = vmatpush1.bf16.msra.mxu0 0
      %1157 = vmatprep.subr.bf16.mxu0 0
      %1158 = vmatpush1.bf16.msra.mxu0 0
      %1159 = vmatprep.subr.bf16.mxu0 0
      %1160 = vmatpush1.bf16.msra.mxu0 0
      %1161 = vmatprep.subr.bf16.mxu0 0
      %1162 = vmatpush1.bf16.msra.mxu0 0
      %1163 = vmatprep.subr.bf16.mxu0 0
      %1164 = vmatpush1.bf16.msra.mxu0 0
      %1165 = vmatprep.subr.bf16.mxu0 0
      %1166 = vmatpush1.bf16.msra.mxu0 0
      %1167 = vmatprep.subr.bf16.mxu0 0
      %1168 = vmatpush1.bf16.msra.mxu0 0
      %1169 = vmatprep.mubr.bf16.mxu0 0
      %1170 = vmatmul.mubr.bf16.gmra.mrb[0].mxu0 %v1135
      %v1171 = vpop.f32.mrb[0].mxu0
      %v1172 = vadd.f32 0.0, %v1171
      %v1173 = vpop.f32.mrb[0].mxu0
      %v1174 = vpop.f32.mrb[0].mxu0
      %v1175 = vadd.f32 0.0, %v1174
      %v1176 = vpop.f32.mrb[0].mxu0
      %1177 = vdwg.mxu0
      %s1178 = sadd.s32 %s538, %s1130
      %s1179 = smul.u32 %s1178, 16
      %s1180 = scalar_lea.vmem [#allocation3], %s1179
      %v1181 = vld [vmem:[%s1180] sm:$0xff]
      %v1182 = vld [vmem:[%s1180 + $0x8] sm:$0xff]
      %v1183 = vadd.f32 %v1181, %v1172
      %v1184 = vadd.f32 %v1182, %v1175
      %v1185 = vxor.u32 %v1183, 2147483648
      %v1186 = vxor.u32 %v1184, 2147483648
      %v1187 = vmul.f32 %v1185, 1.442695
      %v1188 = vpow.pop %v1187
      %v1189 = vmul.f32 %v1186, 1.442695
      %v1190 = vpow.pop %v1189
      %v1191 = vadd.f32 %v1188, 1.0
      %v1192 = vadd.f32 %v1190, 1.0
      %v1193 = vrcp.pop %v1191
      %v1194 = vmul.f32 1.0, %v1193
      %v1195 = vrcp.pop %v1192
      %v1196 = vmul.f32 1.0, %v1195
      %v1197 = vadd.f32 %v1172, %v624
      %v1198 = vadd.f32 %v1175, %v624
      %1201 = vrot.lane.b32.xlu0 %v1197, 64
      %v1202 = vpop.permute.xlu0 %1201
      %1203 = vrot.lane.b32.xlu0 %v1198, 64
      %v1204 = vpop.permute.xlu0 %1203
      %v1207 = vmul.f32 %v1194, %v1202
      %v1208 = vmul.f32 %v1196, %v1204
      %1211 = vrot.lane.b32.xlu0 %v1207, 64
      %v1212 = vpop.permute.xlu0 %1211
      %1213 = vrot.lane.b32.xlu0 %v1208, 64
      %v1214 = vpop.permute.xlu0 %1213
      %v1217 = vadd.f32 %v1181, %v1212
      %v1218 = vadd.f32 %v1182, %v1214
      %v1219 = vtanh.pop %v1217
      %v1220 = vtanh.pop %v1218
      %v1221 = vsub.f32 1.0, %v1194
      %v1222 = vsub.f32 1.0, %v1196
      %1225 = vrot.lane.b32.xlu0 %v1219, 96
      %v1226 = vpop.permute.xlu0 %1225
      %1227 = vrot.lane.b32.xlu0 %v1220, 96
      %v1228 = vpop.permute.xlu0 %1227
      %v1231 = vmul.f32 %v1221, %v1226
      %v1232 = vmul.f32 %v1222, %v1228
      %1235 = vrot.lane.b32.xlu0 %v1131, 32
      %v1236 = vpop.permute.xlu0 %1235
      %1237 = vrot.lane.b32.xlu0 %v1132, 32
      %v1238 = vpop.permute.xlu0 %1237
      %v1241 = vmul.f32 %v1194, %v1236
      %v1242 = vmul.f32 %v1196, %v1238
      %v1243 = vadd.f32 %v1231, %v1241
      %v1244 = vadd.f32 %v1232, %v1242
      %1247 = vrot.lane.b32.xlu0 %v1243, 96
      %v1248 = vpop.permute.xlu0 %1247
      %1249 = vrot.lane.b32.xlu0 %v1244, 96
      %v1250 = vpop.permute.xlu0 %1249
      %1253 = vst.msk [vmem:[#allocation2] sm:$0xff] %vm535, %v1248
      %1254 = vst.msk [vmem:[#allocation2 + $0x8] sm:$0xff] %vm535, %v1250
      %v1255 = vpack.c.bf16 %v1244, %v1243
      %v1257 = vunpack.c.l.b16 %v1255
      %v1258 = vunpack.c.h.b16 %v1255
      %v1259 = vpack.c.b16 %v1257, %v1257
      %v1260 = vpack.c.b16 %v1258, %v1258
      %1261 = vrot.lane.b32.xlu0 %v1259, 96
      %v1262 = vpop.permute.xlu0 %1261
      %1263 = vrot.lane.b32.xlu0 %v1260, 96
      %v1264 = vpop.permute.xlu0 %1263
      %s1267 = smul.u32 %s1130, 2
      %s1268 = smul.addr %s1267, 4
      %s1269 = scalar_lea.vmem %s238, %s1268
      %1270 = vst.msk [vmem:[%s1269] sm:$0xf] %vm699, %v1262
      %1271 = vst.msk [vmem:[%s1269 + $0x4] sm:$0xf] %vm699, %v1264
      %s1272 = smul.u32 %s16, 4294967293
      %s1273 = sadd.s32 %s1272, 5
      %v1274 = vld [vmem:[#allocation2] sm:$0xff]
      %v1275 = vld [vmem:[#allocation2 + $0x8] sm:$0xff]
      %v1276 = vpack.c.bf16 %v1275, %v1274
      %v1278 = vsel %vm535, %v1276, 0
      %1280 = vmatprep.subr.bf16.mxu0 0
      %1281 = vmatpush1.bf16.msra.mxu0 %v551
      %1282 = vmatprep.subr.bf16.mxu0 0
      %1283 = vmatpush1.bf16.msra.mxu0 %v552
      %1284 = vmatprep.subr.bf16.mxu0 0
      %1285 = vmatpush1.bf16.msra.mxu0 0
      %1286 = vmatprep.subr.bf16.mxu0 0
      %1287 = vmatpush1.bf16.msra.mxu0 0
      %1288 = vmatprep.subr.bf16.mxu0 0
      %1289 = vmatpush1.bf16.msra.mxu0 0
      %1290 = vmatprep.subr.bf16.mxu0 0
      %1291 = vmatpush1.bf16.msra.mxu0 0
      %1292 = vmatprep.subr.bf16.mxu0 0
      %1293 = vmatpush1.bf16.msra.mxu0 0
      %1294 = vmatprep.subr.bf16.mxu0 0
      %1295 = vmatpush1.bf16.msra.mxu0 0
      %1296 = vmatprep.subr.bf16.mxu0 0
      %1297 = vmatpush1.bf16.msra.mxu0 0
      %1298 = vmatprep.subr.bf16.mxu0 0
      %1299 = vmatpush1.bf16.msra.mxu0 0
      %1300 = vmatprep.subr.bf16.mxu0 0
      %1301 = vmatpush1.bf16.msra.mxu0 0
      %1302 = vmatprep.subr.bf16.mxu0 0
      %1303 = vmatpush1.bf16.msra.mxu0 0
      %1304 = vmatprep.subr.bf16.mxu0 0
      %1305 = vmatpush1.bf16.msra.mxu0 0
      %1306 = vmatprep.subr.bf16.mxu0 0
      %1307 = vmatpush1.bf16.msra.mxu0 0
      %1308 = vmatprep.subr.bf16.mxu0 0
      %1309 = vmatpush1.bf16.msra.mxu0 0
      %1310 = vmatprep.subr.bf16.mxu0 0
      %1311 = vmatpush1.bf16.msra.mxu0 0
      %1312 = vmatprep.mubr.bf16.mxu0 0
      %1313 = vmatmul.mubr.bf16.gmra.mrb[0].mxu0 %v1278
      %v1314 = vpop.f32.mrb[0].mxu0
      %v1315 = vadd.f32 0.0, %v1314
      %v1316 = vpop.f32.mrb[0].mxu0
      %v1317 = vpop.f32.mrb[0].mxu0
      %v1318 = vadd.f32 0.0, %v1317
      %v1319 = vpop.f32.mrb[0].mxu0
      %1320 = vdwg.mxu0
      %s1321 = sadd.s32 %s538, %s1273
      %s1322 = smul.u32 %s1321, 16
      %s1323 = scalar_lea.vmem [#allocation3], %s1322
      %v1324 = vld [vmem:[%s1323] sm:$0xff]
      %v1325 = vld [vmem:[%s1323 + $0x8] sm:$0xff]
      %v1326 = vadd.f32 %v1324, %v1315
      %v1327 = vadd.f32 %v1325, %v1318
      %v1328 = vxor.u32 %v1326, 2147483648
      %v1329 = vxor.u32 %v1327, 2147483648
      %v1330 = vmul.f32 %v1328, 1.442695
      %v1331 = vpow.pop %v1330
      %v1332 = vmul.f32 %v1329, 1.442695
      %v1333 = vpow.pop %v1332
      %v1334 = vadd.f32 %v1331, 1.0
      %v1335 = vadd.f32 %v1333, 1.0
      %v1336 = vrcp.pop %v1334
      %v1337 = vmul.f32 1.0, %v1336
      %v1338 = vrcp.pop %v1335
      %v1339 = vmul.f32 1.0, %v1338
      %v1340 = vadd.f32 %v1315, %v624
      %v1341 = vadd.f32 %v1318, %v624
      %1344 = vrot.lane.b32.xlu0 %v1340, 64
      %v1345 = vpop.permute.xlu0 %1344
      %1346 = vrot.lane.b32.xlu0 %v1341, 64
      %v1347 = vpop.permute.xlu0 %1346
      %v1350 = vmul.f32 %v1337, %v1345
      %v1351 = vmul.f32 %v1339, %v1347
      %1354 = vrot.lane.b32.xlu0 %v1350, 64
      %v1355 = vpop.permute.xlu0 %1354
      %1356 = vrot.lane.b32.xlu0 %v1351, 64
      %v1357 = vpop.permute.xlu0 %1356
      %v1360 = vadd.f32 %v1324, %v1355
      %v1361 = vadd.f32 %v1325, %v1357
      %v1362 = vtanh.pop %v1360
      %v1363 = vtanh.pop %v1361
      %v1364 = vsub.f32 1.0, %v1337
      %v1365 = vsub.f32 1.0, %v1339
      %1368 = vrot.lane.b32.xlu0 %v1362, 96
      %v1369 = vpop.permute.xlu0 %1368
      %1370 = vrot.lane.b32.xlu0 %v1363, 96
      %v1371 = vpop.permute.xlu0 %1370
      %v1374 = vmul.f32 %v1364, %v1369
      %v1375 = vmul.f32 %v1365, %v1371
      %1378 = vrot.lane.b32.xlu0 %v1274, 32
      %v1379 = vpop.permute.xlu0 %1378
      %1380 = vrot.lane.b32.xlu0 %v1275, 32
      %v1381 = vpop.permute.xlu0 %1380
      %v1384 = vmul.f32 %v1337, %v1379
      %v1385 = vmul.f32 %v1339, %v1381
      %v1386 = vadd.f32 %v1374, %v1384
      %v1387 = vadd.f32 %v1375, %v1385
      %1390 = vrot.lane.b32.xlu0 %v1386, 96
      %v1391 = vpop.permute.xlu0 %1390
      %1392 = vrot.lane.b32.xlu0 %v1387, 96
      %v1393 = vpop.permute.xlu0 %1392
      %1396 = vst.msk [vmem:[#allocation2] sm:$0xff] %vm535, %v1391
      %1397 = vst.msk [vmem:[#allocation2 + $0x8] sm:$0xff] %vm535, %v1393
      %v1398 = vpack.c.bf16 %v1387, %v1386
      %v1400 = vunpack.c.l.b16 %v1398
      %v1401 = vunpack.c.h.b16 %v1398
      %v1402 = vpack.c.b16 %v1400, %v1400
      %v1403 = vpack.c.b16 %v1401, %v1401
      %1404 = vrot.lane.b32.xlu0 %v1402, 96
      %v1405 = vpop.permute.xlu0 %1404
      %1406 = vrot.lane.b32.xlu0 %v1403, 96
      %v1407 = vpop.permute.xlu0 %1406
      %s1410 = smul.u32 %s1273, 2
      %s1411 = smul.addr %s1410, 4
      %s1412 = scalar_lea.vmem %s238, %s1411
      %1413 = vst.msk [vmem:[%s1412] sm:$0xf] %vm699, %v1405
      %1414 = vst.msk [vmem:[%s1412 + $0x4] sm:$0xf] %vm699, %v1407
      %s1415 = smul.u32 %s16, 4294967291
      %s1416 = sadd.s32 %s1415, 6
      %v1417 = vld [vmem:[#allocation2] sm:$0xff]
      %v1418 = vld [vmem:[#allocation2 + $0x8] sm:$0xff]
      %v1419 = vpack.c.bf16 %v1418, %v1417
      %v1421 = vsel %vm535, %v1419, 0
      %1423 = vmatprep.subr.bf16.mxu0 0
      %1424 = vmatpush1.bf16.msra.mxu0 %v551
      %1425 = vmatprep.subr.bf16.mxu0 0
      %1426 = vmatpush1.bf16.msra.mxu0 %v552
      %1427 = vmatprep.subr.bf16.mxu0 0
      %1428 = vmatpush1.bf16.msra.mxu0 0
      %1429 = vmatprep.subr.bf16.mxu0 0
      %1430 = vmatpush1.bf16.msra.mxu0 0
      %1431 = vmatprep.subr.bf16.mxu0 0
      %1432 = vmatpush1.bf16.msra.mxu0 0
      %1433 = vmatprep.subr.bf16.mxu0 0
      %1434 = vmatpush1.bf16.msra.mxu0 0
      %1435 = vmatprep.subr.bf16.mxu0 0
      %1436 = vmatpush1.bf16.msra.mxu0 0
      %1437 = vmatprep.subr.bf16.mxu0 0
      %1438 = vmatpush1.bf16.msra.mxu0 0
      %1439 = vmatprep.subr.bf16.mxu0 0
      %1440 = vmatpush1.bf16.msra.mxu0 0
      %1441 = vmatprep.subr.bf16.mxu0 0
      %1442 = vmatpush1.bf16.msra.mxu0 0
      %1443 = vmatprep.subr.bf16.mxu0 0
      %1444 = vmatpush1.bf16.msra.mxu0 0
      %1445 = vmatprep.subr.bf16.mxu0 0
      %1446 = vmatpush1.bf16.msra.mxu0 0
      %1447 = vmatprep.subr.bf16.mxu0 0
      %1448 = vmatpush1.bf16.msra.mxu0 0
      %1449 = vmatprep.subr.bf16.mxu0 0
      %1450 = vmatpush1.bf16.msra.mxu0 0
      %1451 = vmatprep.subr.bf16.mxu0 0
      %1452 = vmatpush1.bf16.msra.mxu0 0
      %1453 = vmatprep.subr.bf16.mxu0 0
      %1454 = vmatpush1.bf16.msra.mxu0 0
      %1455 = vmatprep.mubr.bf16.mxu0 0
      %1456 = vmatmul.mubr.bf16.gmra.mrb[0].mxu0 %v1421
      %v1457 = vpop.f32.mrb[0].mxu0
      %v1458 = vadd.f32 0.0, %v1457
      %v1459 = vpop.f32.mrb[0].mxu0
      %v1460 = vpop.f32.mrb[0].mxu0
      %v1461 = vadd.f32 0.0, %v1460
      %v1462 = vpop.f32.mrb[0].mxu0
      %1463 = vdwg.mxu0
      %s1464 = sadd.s32 %s538, %s1416
      %s1465 = smul.u32 %s1464, 16
      %s1466 = scalar_lea.vmem [#allocation3], %s1465
      %v1467 = vld [vmem:[%s1466] sm:$0xff]
      %v1468 = vld [vmem:[%s1466 + $0x8] sm:$0xff]
      %v1469 = vadd.f32 %v1467, %v1458
      %v1470 = vadd.f32 %v1468, %v1461
      %v1471 = vxor.u32 %v1469, 2147483648
      %v1472 = vxor.u32 %v1470, 2147483648
      %v1473 = vmul.f32 %v1471, 1.442695
      %v1474 = vpow.pop %v1473
      %v1475 = vmul.f32 %v1472, 1.442695
      %v1476 = vpow.pop %v1475
      %v1477 = vadd.f32 %v1474, 1.0
      %v1478 = vadd.f32 %v1476, 1.0
      %v1479 = vrcp.pop %v1477
      %v1480 = vmul.f32 1.0, %v1479
      %v1481 = vrcp.pop %v1478
      %v1482 = vmul.f32 1.0, %v1481
      %v1483 = vadd.f32 %v1458, %v624
      %v1484 = vadd.f32 %v1461, %v624
      %1487 = vrot.lane.b32.xlu0 %v1483, 64
      %v1488 = vpop.permute.xlu0 %1487
      %1489 = vrot.lane.b32.xlu0 %v1484, 64
      %v1490 = vpop.permute.xlu0 %1489
      %v1493 = vmul.f32 %v1480, %v1488
      %v1494 = vmul.f32 %v1482, %v1490
      %1497 = vrot.lane.b32.xlu0 %v1493, 64
      %v1498 = vpop.permute.xlu0 %1497
      %1499 = vrot.lane.b32.xlu0 %v1494, 64
      %v1500 = vpop.permute.xlu0 %1499
      %v1503 = vadd.f32 %v1467, %v1498
      %v1504 = vadd.f32 %v1468, %v1500
      %v1505 = vtanh.pop %v1503
      %v1506 = vtanh.pop %v1504
      %v1507 = vsub.f32 1.0, %v1480
      %v1508 = vsub.f32 1.0, %v1482
      %1511 = vrot.lane.b32.xlu0 %v1505, 96
      %v1512 = vpop.permute.xlu0 %1511
      %1513 = vrot.lane.b32.xlu0 %v1506, 96
      %v1514 = vpop.permute.xlu0 %1513
      %v1517 = vmul.f32 %v1507, %v1512
      %v1518 = vmul.f32 %v1508, %v1514
      %1521 = vrot.lane.b32.xlu0 %v1417, 32
      %v1522 = vpop.permute.xlu0 %1521
      %1523 = vrot.lane.b32.xlu0 %v1418, 32
      %v1524 = vpop.permute.xlu0 %1523
      %v1527 = vmul.f32 %v1480, %v1522
      %v1528 = vmul.f32 %v1482, %v1524
      %v1529 = vadd.f32 %v1517, %v1527
      %v1530 = vadd.f32 %v1518, %v1528
      %1533 = vrot.lane.b32.xlu0 %v1529, 96
      %v1534 = vpop.permute.xlu0 %1533
      %1535 = vrot.lane.b32.xlu0 %v1530, 96
      %v1536 = vpop.permute.xlu0 %1535
      %1539 = vst.msk [vmem:[#allocation2] sm:$0xff] %vm535, %v1534
      %1540 = vst.msk [vmem:[#allocation2 + $0x8] sm:$0xff] %vm535, %v1536
      %v1541 = vpack.c.bf16 %v1530, %v1529
      %v1543 = vunpack.c.l.b16 %v1541
      %v1544 = vunpack.c.h.b16 %v1541
      %v1545 = vpack.c.b16 %v1543, %v1543
      %v1546 = vpack.c.b16 %v1544, %v1544
      %1547 = vrot.lane.b32.xlu0 %v1545, 96
      %v1548 = vpop.permute.xlu0 %1547
      %1549 = vrot.lane.b32.xlu0 %v1546, 96
      %v1550 = vpop.permute.xlu0 %1549
      %s1553 = smul.u32 %s1416, 2
      %s1554 = smul.addr %s1553, 4
      %s1555 = scalar_lea.vmem %s238, %s1554
      %1556 = vst.msk [vmem:[%s1555] sm:$0xf] %vm699, %v1548
      %1557 = vst.msk [vmem:[%s1555 + $0x4] sm:$0xf] %vm699, %v1550
      %s1558 = smul.u32 %s16, 4294967289
      %s1559 = sadd.s32 %s1558, 7
      %v1560 = vld [vmem:[#allocation2] sm:$0xff]
      %v1561 = vld [vmem:[#allocation2 + $0x8] sm:$0xff]
      %v1562 = vpack.c.bf16 %v1561, %v1560
      %v1564 = vsel %vm535, %v1562, 0
      %1566 = vmatprep.subr.bf16.mxu0 0
      %1567 = vmatpush1.bf16.msra.mxu0 %v551
      %1568 = vmatprep.subr.bf16.mxu0 0
      %1569 = vmatpush1.bf16.msra.mxu0 %v552
      %1570 = vmatprep.subr.bf16.mxu0 0
      %1571 = vmatpush1.bf16.msra.mxu0 0
      %1572 = vmatprep.subr.bf16.mxu0 0
      %1573 = vmatpush1.bf16.msra.mxu0 0
      %1574 = vmatprep.subr.bf16.mxu0 0
      %1575 = vmatpush1.bf16.msra.mxu0 0
      %1576 = vmatprep.subr.bf16.mxu0 0
      %1577 = vmatpush1.bf16.msra.mxu0 0
      %1578 = vmatprep.subr.bf16.mxu0 0
      %1579 = vmatpush1.bf16.msra.mxu0 0
      %1580 = vmatprep.subr.bf16.mxu0 0
      %1581 = vmatpush1.bf16.msra.mxu0 0
      %1582 = vmatprep.subr.bf16.mxu0 0
      %1583 = vmatpush1.bf16.msra.mxu0 0
      %1584 = vmatprep.subr.bf16.mxu0 0
      %1585 = vmatpush1.bf16.msra.mxu0 0
      %1586 = vmatprep.subr.bf16.mxu0 0
      %1587 = vmatpush1.bf16.msra.mxu0 0
      %1588 = vmatprep.subr.bf16.mxu0 0
      %1589 = vmatpush1.bf16.msra.mxu0 0
      %1590 = vmatprep.subr.bf16.mxu0 0
      %1591 = vmatpush1.bf16.msra.mxu0 0
      %1592 = vmatprep.subr.bf16.mxu0 0
      %1593 = vmatpush1.bf16.msra.mxu0 0
      %1594 = vmatprep.subr.bf16.mxu0 0
      %1595 = vmatpush1.bf16.msra.mxu0 0
      %1596 = vmatprep.subr.bf16.mxu0 0
      %1597 = vmatpush1.bf16.msra.mxu0 0
      %1598 = vmatprep.mubr.bf16.mxu0 0
      %1599 = vmatmul.mubr.bf16.gmra.mrb[0].mxu0 %v1564
      %v1600 = vpop.f32.mrb[0].mxu0
      %v1601 = vadd.f32 0.0, %v1600
      %v1602 = vpop.f32.mrb[0].mxu0
      %v1603 = vpop.f32.mrb[0].mxu0
      %v1604 = vadd.f32 0.0, %v1603
      %v1605 = vpop.f32.mrb[0].mxu0
      %1606 = vdwg.mxu0
      %s1607 = sadd.s32 %s538, %s1559
      %s1608 = smul.u32 %s1607, 16
      %s1609 = scalar_lea.vmem [#allocation3], %s1608
      %v1610 = vld [vmem:[%s1609] sm:$0xff]
      %v1611 = vld [vmem:[%s1609 + $0x8] sm:$0xff]
      %v1612 = vadd.f32 %v1610, %v1601
      %v1613 = vadd.f32 %v1611, %v1604
      %v1614 = vxor.u32 %v1612, 2147483648
      %v1615 = vxor.u32 %v1613, 2147483648
      %v1616 = vmul.f32 %v1614, 1.442695
      %v1617 = vpow.pop %v1616
      %v1618 = vmul.f32 %v1615, 1.442695
      %v1619 = vpow.pop %v1618
      %v1620 = vadd.f32 %v1617, 1.0
      %v1621 = vadd.f32 %v1619, 1.0
      %v1622 = vrcp.pop %v1620
      %v1623 = vmul.f32 1.0, %v1622
      %v1624 = vrcp.pop %v1621
      %v1625 = vmul.f32 1.0, %v1624
      %v1626 = vadd.f32 %v1601, %v624
      %v1627 = vadd.f32 %v1604, %v624
      %1630 = vrot.lane.b32.xlu0 %v1626, 64
      %v1631 = vpop.permute.xlu0 %1630
      %1632 = vrot.lane.b32.xlu0 %v1627, 64
      %v1633 = vpop.permute.xlu0 %1632
      %v1636 = vmul.f32 %v1623, %v1631
      %v1637 = vmul.f32 %v1625, %v1633
      %1640 = vrot.lane.b32.xlu0 %v1636, 64
      %v1641 = vpop.permute.xlu0 %1640
      %1642 = vrot.lane.b32.xlu0 %v1637, 64
      %v1643 = vpop.permute.xlu0 %1642
      %v1646 = vadd.f32 %v1610, %v1641
      %v1647 = vadd.f32 %v1611, %v1643
      %v1648 = vtanh.pop %v1646
      %v1649 = vtanh.pop %v1647
      %v1650 = vsub.f32 1.0, %v1623
      %v1651 = vsub.f32 1.0, %v1625
      %1654 = vrot.lane.b32.xlu0 %v1648, 96
      %v1655 = vpop.permute.xlu0 %1654
      %1656 = vrot.lane.b32.xlu0 %v1649, 96
      %v1657 = vpop.permute.xlu0 %1656
      %v1660 = vmul.f32 %v1650, %v1655
      %v1661 = vmul.f32 %v1651, %v1657
      %1664 = vrot.lane.b32.xlu0 %v1560, 32
      %v1665 = vpop.permute.xlu0 %1664
      %1666 = vrot.lane.b32.xlu0 %v1561, 32
      %v1667 = vpop.permute.xlu0 %1666
      %v1670 = vmul.f32 %v1623, %v1665
      %v1671 = vmul.f32 %v1625, %v1667
      %v1672 = vadd.f32 %v1660, %v1670
      %v1673 = vadd.f32 %v1661, %v1671
      %1676 = vrot.lane.b32.xlu0 %v1672, 96
      %v1677 = vpop.permute.xlu0 %1676
      %1678 = vrot.lane.b32.xlu0 %v1673, 96
      %v1679 = vpop.permute.xlu0 %1678
      %1682 = vst.msk [vmem:[#allocation2] sm:$0xff] %vm535, %v1677
      %1683 = vst.msk [vmem:[#allocation2 + $0x8] sm:$0xff] %vm535, %v1679
      %v1684 = vpack.c.bf16 %v1673, %v1672
      %v1686 = vunpack.c.l.b16 %v1684
      %v1687 = vunpack.c.h.b16 %v1684
      %v1688 = vpack.c.b16 %v1686, %v1686
      %v1689 = vpack.c.b16 %v1687, %v1687
      %1690 = vrot.lane.b32.xlu0 %v1688, 96
      %v1691 = vpop.permute.xlu0 %1690
      %1692 = vrot.lane.b32.xlu0 %v1689, 96
      %v1693 = vpop.permute.xlu0 %1692
      %s1696 = smul.u32 %s1559, 2
      %s1697 = smul.addr %s1696, 4
      %s1698 = scalar_lea.vmem %s238, %s1697
      %1699 = vst.msk [vmem:[%s1698] sm:$0xf] %vm699, %v1691
      %1700 = vst.msk [vmem:[%s1698 + $0x4] sm:$0xf] %vm699, %v1693
      %p1701 = scmp.lt.s32.totalorder %s16, 1
      %s1702 = scalar_select %p1701, %s16, 1
      %s1703 = smul.addr %s1702, 16
      %s1704 = smul.addr %s1703, 4
      %s1705 = scalar_lea.vmem %s5, %s1704
      // Predicated region
      $region45: #{birnn_forward.3} parent=39 // pred_check
        %p1706 = pneg %p149
      $region46: #{birnn_forward.3} parent=39 // pred_check_branch
        %1708 = sbr.rel (%p1706) target = $region48
      $region47: #{birnn_forward.3} parent=39 // pred_region
        _
      $region48: #{birnn_forward.3} parent=39 // pred_fallthru
        _
    $region40: #{birnn_forward.3} parent=5 // pred_fallthru
      _
    %p1709 = scmp.le.s32.totalorder 2, %s11
    // Predicated region
    $region49: #{birnn_forward.3} parent=5 // pred_check
      %p1710 = pneg %p1709
    $region50: #{birnn_forward.3} parent=5 // pred_check_branch
      %1712 = sbr.rel (%p1710) target = $region52
    $region51: #{birnn_forward.3} parent=5 // pred_region
      %s1713 = ssub.s32 %s11, 2
      // Predicated region
      $region53: #{birnn_forward.3} parent=51 // pred_check
        %p1714 = pneg %p155
      $region54: #{birnn_forward.3} parent=51 // pred_check_branch
        %1716 = sbr.rel (%p1714) target = $region56
      $region55: #{birnn_forward.3} parent=51 // pred_region
        %p1717 = scmp.lt.s32.totalorder %s17, 1
        %s1718 = scalar_select %p1717, %s17, 1
        %s1719 = smul.addr %s1718, 16
        %s1720 = smul.addr %s1719, 4
        %s1721 = scalar_lea.vmem %s5, %s1720
      $region56: #{birnn_forward.3} parent=51 // pred_fallthru
        _
    $region52: #{birnn_forward.3} parent=5 // pred_fallthru
      _
  $region6: #{birnn_forward.3} parent=0 // loop_footer
    %s15 = sadd.s32 1, %s11
  $region7: #{birnn_forward.3} parent=0 // loop_footer_branch
    %10 = sbr.rel target = $region3
  $region8: #{birnn_forward.3} parent=0 // loop_exit
    _

// kernel: birnn_forward.4
$region0: #{birnn_forward.4}
  #allocation0 [shape = 'u32[]', space=smem, size = 0x4, offset = 0x4, fixed_abs, tag = 'smem constant byte address 0x4 - core index']
  #allocation1 [shape = 'u32[144,128]{1,0:T(1,128)}', space=vmem, size = 0x12000, scoped, tag = 'internal scratch']
  #allocation2 [shape = 'f32[16,32]{1,0:T(8,128)}', space=vmem, size = 0x2000, scoped, tag = 'scratch operand']
  #allocation3 [shape = 'f32[16,16,128]{2,1,0:T(8,128)}', space=vmem, size = 0x20000, scoped, tag = 'scratch operand']
  %s0 = inlined_call_operand.vmem [shape: bf16[2,8,16,32], index: 0, kind: input, shape index: {}]
  %s1 = inlined_call_operand.vmem [shape: bf16[2,32,256], index: 1, kind: input, shape index: {}]
  %s2 = inlined_call_operand.vmem [shape: bf16[2,32,96], index: 2, kind: input, shape index: {}]
  %s3 = inlined_call_operand.vmem [shape: f32[2,1,128], index: 3, kind: input, shape index: {}]
  %s4 = inlined_call_operand.vmem [shape: f32[2,1,32], index: 4, kind: input, shape index: {}]
  %s5 = inlined_call_operand.vmem [shape: bf16[2,8,16,32], index: 5, kind: output, shape index: {}]
  %s6 = sld [smem:[#allocation0]]
  $region57: #{birnn_forward.4} parent=0
    _
  %s8 = ssub.s32 1, %s6
  %s9 = scalar_select 0, %s8, %s6
  loop: start=0, step=1, limit=4
  $region2: #{birnn_forward.4} parent=0 // loop_pre_header
    _
  $region3: #{birnn_forward.4} parent=0 // loop_header
    %s11 = sphi 0, %s15
    %p12 = scmp.ge.s32.totalorder %s11, 4
    %s19 = sphi 0, %s19
    %s21 = sphi 0, %s19
    %s22 = sphi 0, %s21
    %s36 = sphi 0, %s22
    %s40 = sphi 0, %s40
    %s42 = sphi 0, %s40
    %s43 = sphi 0, %s42
    %s57 = sphi 0, %s43
    %s63 = sphi 0, %s65
    %s66 = sphi 0, %s63
    %s67 = sphi 0, %s66
    %s83 = sphi 0, %s67
    %s87 = sphi 0, %s87
    %s89 = sphi 0, %s87
    %s90 = sphi 0, %s89
    %s104 = sphi 0, %s90
    %s110 = sphi 0, %s112
    %s113 = sphi 0, %s110
    %s114 = sphi 0, %s113
    %s130 = sphi 0, %s114
    %s136 = sphi 0, %s138
    %s139 = sphi 0, %s136
    %s140 = sphi 0, %s139
    %s156 = sphi 0, %s140
  $region4: #{birnn_forward.4} parent=0 // loop_header_branch
    %14 = sbr.rel (%p12) target = $region8
  $region5: #{birnn_forward.4} parent=0 // loop_body
    %s16 = ssub.s32 %s11, 1
    %s17 = ssub.s32 %s11, 2
    %s18 = sadd.s32 %s11, 1
    %s20 = sadd.s32 %s19, 1
    %p23 = scmp.eq.s32.totalorder %s11, 1
    %p24 = scmp.ne.s32.totalorder %s19, %s21
    %p25 = scmp.eq.s32.totalorder %s11, 0
    %p26 = por %p24, %p25
    %p27 = scmp.ne.s32.totalorder %s19, %s21
    %p28 = scmp.eq.s32.totalorder %s16, 1
    %p29 = por %p27, %p28
    %p30 = scmp.ne.s32.totalorder %s21, %s22
    %p31 = scmp.eq.s32.totalorder %s16, 0
    %p32 = por %p30, %p31
    %p33 = scmp.ne.s32.totalorder %s21, %s22
    %p34 = scmp.eq.s32.totalorder %s17, 1
    %p35 = por %p33, %p34
    %p37 = scmp.ne.s32.totalorder %s22, %s36
    %p38 = scmp.eq.s32.totalorder %s17, 0
    %p39 = por %p37, %p38
    %s41 = sadd.s32 %s40, 1
    %p44 = scmp.eq.s32.totalorder %s11, 1
    %p45 = scmp.ne.s32.totalorder %s40, %s42
    %p46 = scmp.eq.s32.totalorder %s11, 0
    %p47 = por %p45, %p46
    %p48 = scmp.ne.s32.totalorder %s40, %s42
    %p49 = scmp.eq.s32.totalorder %s16, 1
    %p50 = por %p48, %p49
    %p51 = scmp.ne.s32.totalorder %s42, %s43
    %p52 = scmp.eq.s32.totalorder %s16, 0
    %p53 = por %p51, %p52
    %p54 = scmp.ne.s32.totalorder %s42, %s43
    %p55 = scmp.eq.s32.totalorder %s17, 1
    %p56 = por %p54, %p55
    %p58 = scmp.ne.s32.totalorder %s43, %s57
    %p59 = scmp.eq.s32.totalorder %s17, 0
    %p60 = por %p58, %p59
    %s61 = ssub.s32 %s11, %s18
    %p62 = scmp.eq.s32.totalorder %s61, 0
    %s64 = sadd.s32 %s63, 1
    %s65 = scalar_select %p62, %s63, %s64
    %p68 = pneg %p62
    %p69 = scmp.eq.s32.totalorder %s11, 1
    %p70 = por %p68, %p69
    %p71 = scmp.ne.s32.totalorder %s63, %s66
    %p72 = scmp.eq.s32.totalorder %s11, 0
    %p73 = por %p71, %p72
    %p74 = scmp.ne.s32.totalorder %s63, %s66
    %p75 = scmp.eq.s32.totalorder %s16, 1
    %p76 = por %p74, %p75
    %p77 = scmp.ne.s32.totalorder %s66, %s67
    %p78 = scmp.eq.s32.totalorder %s16, 0
    %p79 = por %p77, %p78
    %p80 = scmp.ne.s32.totalorder %s66, %s67
    %p81 = scmp.eq.s32.totalorder %s17, 1
    %p82 = por %p80, %p81
    %p84 = scmp.ne.s32.totalorder %s67, %s83
    %p85 = scmp.eq.s32.totalorder %s17, 0
    %p86 = por %p84, %p85
    %s88 = sadd.s32 %s87, 1
    %p91 = scmp.eq.s32.totalorder %s11, 1
    %p92 = scmp.ne.s32.totalorder %s87, %s89
    %p93 = scmp.eq.s32.totalorder %s11, 0
    %p94 = por %p92, %p93
    %p95 = scmp.ne.s32.totalorder %s87, %s89
    %p96 = scmp.eq.s32.totalorder %s16, 1
    %p97 = por %p95, %p96
    %p98 = scmp.ne.s32.totalorder %s89, %s90
    %p99 = scmp.eq.s32.totalorder %s16, 0
    %p100 = por %p98, %p99
    %p101 = scmp.ne.s32.totalorder %s89, %s90
    %p102 = scmp.eq.s32.totalorder %s17, 1
    %p103 = por %p101, %p102
    %p105 = scmp.ne.s32.totalorder %s90, %s104
    %p106 = scmp.eq.s32.totalorder %s17, 0
    %p107 = por %p105, %p106
    %s108 = ssub.s32 %s11, %s18
    %p109 = scmp.eq.s32.totalorder %s108, 0
    %s111 = sadd.s32 %s110, 1
    %s112 = scalar_select %p109, %s110, %s111
    %p115 = pneg %p109
    %p116 = scmp.eq.s32.totalorder %s11, 1
    %p117 = por %p115, %p116
    %p118 = scmp.ne.s32.totalorder %s110, %s113
    %p119 = scmp.eq.s32.totalorder %s11, 0
    %p120 = por %p118, %p119
    %p121 = scmp.ne.s32.totalorder %s110, %s113
    %p122 = scmp.eq.s32.totalorder %s16, 1
    %p123 = por %p121, %p122
    %p124 = scmp.ne.s32.totalorder %s113, %s114
    %p125 = scmp.eq.s32.totalorder %s16, 0
    %p126 = por %p124, %p125
    %p127 = scmp.ne.s32.totalorder %s113, %s114
    %p128 = scmp.eq.s32.totalorder %s17, 1
    %p129 = por %p127, %p128
    %p131 = scmp.ne.s32.totalorder %s114, %s130
    %p132 = scmp.eq.s32.totalorder %s17, 0
    %p133 = por %p131, %p132
    %s134 = ssub.s32 %s11, %s18
    %p135 = scmp.eq.s32.totalorder %s134, 0
    %s137 = sadd.s32 %s136, 1
    %s138 = scalar_select %p135, %s136, %s137
    %p141 = pneg %p135
    %p142 = scmp.eq.s32.totalorder %s11, 1
    %p143 = por %p141, %p142
    %p144 = scmp.ne.s32.totalorder %s136, %s139
    %p145 = scmp.eq.s32.totalorder %s11, 0
    %p146 = por %p144, %p145
    %p147 = scmp.ne.s32.totalorder %s136, %s139
    %p148 = scmp.eq.s32.totalorder %s16, 1
    %p149 = por %p147, %p148
    %p150 = scmp.ne.s32.totalorder %s139, %s140
    %p151 = scmp.eq.s32.totalorder %s16, 0
    %p152 = por %p150, %p151
    %p153 = scmp.ne.s32.totalorder %s139, %s140
    %p154 = scmp.eq.s32.totalorder %s17, 1
    %p155 = por %p153, %p154
    %p157 = scmp.ne.s32.totalorder %s140, %s156
    %p158 = scmp.eq.s32.totalorder %s17, 0
    %p159 = por %p157, %p158
    %p160 = scmp.le.s32.totalorder 1, %s11
    %p161 = scmp.lt.s32.totalorder %s11, 3
    %p162 = pnand %p160, %p161
    %p163 = pneg %p162
    // Predicated region
    $region9: #{birnn_forward.4} parent=5 // pred_check
      _
    $region10: #{birnn_forward.4} parent=5 // pred_check_branch
      %165 = sbr.rel (%p162) target = $region12
    $region11: #{birnn_forward.4} parent=5 // pred_region
      %s166 = ssub.s32 %s11, 1
      // Predicated region
      $region13: #{birnn_forward.4} parent=11 // pred_check
        %p167 = pneg %p32
      $region14: #{birnn_forward.4} parent=11 // pred_check_branch
        %169 = sbr.rel (%p167) target = $region16
      $region15: #{birnn_forward.4} parent=11 // pred_region
        _
      $region16: #{birnn_forward.4} parent=11 // pred_fallthru
        _
      // Predicated region
      $region17: #{birnn_forward.4} parent=11 // pred_check
        %p170 = pneg %p53
      $region18: #{birnn_forward.4} parent=11 // pred_check_branch
        %172 = sbr.rel (%p170) target = $region20
      $region19: #{birnn_forward.4} parent=11 // pred_region
        _
      $region20: #{birnn_forward.4} parent=11 // pred_fallthru
        _
      // Predicated region
      $region21: #{birnn_forward.4} parent=11 // pred_check
        %p173 = pneg %p100
      $region22: #{birnn_forward.4} parent=11 // pred_check_branch
        %175 = sbr.rel (%p173) target = $region24
      $region23: #{birnn_forward.4} parent=11 // pred_region
        _
      $region24: #{birnn_forward.4} parent=11 // pred_fallthru
        _
    $region12: #{birnn_forward.4} parent=5 // pred_fallthru
      _
    %p176 = scmp.lt.s32.totalorder %s11, 2
    // Predicated region
    $region25: #{birnn_forward.4} parent=5 // pred_check
      %p177 = pneg %p176
    $region26: #{birnn_forward.4} parent=5 // pred_check_branch
      %179 = sbr.rel (%p177) target = $region28
    $region27: #{birnn_forward.4} parent=5 // pred_region
      // Predicated region
      $region29: #{birnn_forward.4} parent=27 // pred_check
        %p180 = pneg %p73
      $region30: #{birnn_forward.4} parent=27 // pred_check_branch
        %182 = sbr.rel (%p180) target = $region32
      $region31: #{birnn_forward.4} parent=27 // pred_region
        %p183 = scmp.lt.s32.totalorder %s11, 1
        %s184 = scalar_select %p183, %s11, 1
        %s185 = smul.addr %s184, 4
        %s186 = smul.addr %s185, 4
        %s187 = scalar_lea.vmem %s2, %s186
      $region32: #{birnn_forward.4} parent=27 // pred_fallthru
        _
      // Predicated region
      $region33: #{birnn_forward.4} parent=27 // pred_check
        %p188 = pneg %p120
      $region34: #{birnn_forward.4} parent=27 // pred_check_branch
        %190 = sbr.rel (%p188) target = $region36
      $region35: #{birnn_forward.4} parent=27 // pred_region
        %p191 = scmp.lt.s32.totalorder %s11, 1
        %s192 = scalar_select %p191, %s11, 1
        %s193 = scalar_lea.vmem %s4, %s192
      $region36: #{birnn_forward.4} parent=27 // pred_fallthru
        _
    $region28: #{birnn_forward.4} parent=5 // pred_fallthru
      _
    %p194 = scmp.le.s32.totalorder 1, %s11
    %p195 = scmp.lt.s32.totalorder %s11, 3
    %p196 = pnand %p194, %p195
    %p197 = pneg %p196
    // Predicated region
    $region37: #{birnn_forward.4} parent=5 // pred_check
      _
    $region38: #{birnn_forward.4} parent=5 // pred_check_branch
      %199 = sbr.rel (%p196) target = $region40
    $region39: #{birnn_forward.4} parent=5 // pred_region
      %s200 = ssub.s32 %s11, 1
      %p201 = pneg %p32
      %p202 = pneg %p29
      %p203 = pneg %p53
      %p204 = pneg %p50
      %p205 = scmp.lt.s32.totalorder %s16, 1
      %s206 = scalar_select %p205, %s16, 1
      %s207 = smul.addr %s206, 4
      %s208 = smul.addr %s207, 4
      %s209 = scalar_lea.vmem %s2, %s208
      %p210 = pneg %p79
      %p211 = pneg %p76
      %p212 = pneg %p100
      %p213 = pneg %p97
      %p214 = scmp.lt.s32.totalorder %s16, 1
      %s215 = scalar_select %p214, %s16, 1
      %s216 = scalar_lea.vmem %s4, %s215
      %p217 = pneg %p126
      %p218 = pneg %p123
      %p219 = pneg %p152
      %p220 = pneg %p149
      %p221 = scmp.lt.s32.totalorder %s16, 1
      %s222 = scalar_select %p221, %s16, 1
      %s223 = smul.addr %s222, 16
      %s224 = smul.addr %s223, 4
      %s225 = scalar_lea.vmem %s5, %s224
      %p226 = scmp.lt.s32.totalorder %s16, 1
      %s227 = scalar_select %p226, %s16, 1
      %s228 = smul.addr %s227, 4
      %s229 = smul.addr %s228, 4
      %s230 = scalar_lea.vmem %s2, %s229
      %p231 = scmp.lt.s32.totalorder %s16, 1
      %s232 = scalar_select %p231, %s16, 1
      %s233 = scalar_lea.vmem %s4, %s232
      %p234 = scmp.lt.s32.totalorder %s16, 1
      %s235 = scalar_select %p234, %s16, 1
      %s236 = smul.addr %s235, 16
      %s237 = smul.addr %s236, 4
      %s238 = scalar_lea.vmem %s5, %s237
      %p240 = scmp.eq.s32.totalorder %s16, 0
      // Predicated region
      $region41: #{birnn_forward.4} parent=39 // pred_check
        %p241 = pneg %p240
      $region42: #{birnn_forward.4} parent=39 // pred_check_branch
        %243 = sbr.rel (%p241) target = $region44
      $region43: #{birnn_forward.4} parent=39 // pred_region
        %v244 = vld [vmem:[%s0] sm:$0xf]
        %v245 = vld [vmem:[%s0 + $0x4] sm:$0xf]
        %v246 = vld [vmem:[%s0 + $0x8] sm:$0xf]
        %v247 = vld [vmem:[%s0 + $0xc] sm:$0xf]
        %v248 = vld [vmem:[%s0 + $0x10] sm:$0xf]
        %v249 = vld [vmem:[%s0 + $0x14] sm:$0xf]
        %v250 = vld [vmem:[%s0 + $0x18] sm:$0xf]
        %v251 = vld [vmem:[%s0 + $0x1c] sm:$0xf]
        %v252 = vld [vmem:[%s0 + $0x20] sm:$0xf]
        %v253 = vld [vmem:[%s0 + $0x24] sm:$0xf]
        %v254 = vld [vmem:[%s0 + $0x28] sm:$0xf]
        %v255 = vld [vmem:[%s0 + $0x2c] sm:$0xf]
        %v256 = vld [vmem:[%s0 + $0x30] sm:$0xf]
        %v257 = vld [vmem:[%s0 + $0x34] sm:$0xf]
        %v258 = vld [vmem:[%s0 + $0x38] sm:$0xf]
        %v259 = vld [vmem:[%s0 + $0x3c] sm:$0xf]
        %v260 = vld [vmem:[%s1] sm:$0xff]
        %v261 = vld [vmem:[%s1 + $0x8] sm:$0xff]
        %v262 = vld [vmem:[%s1 + $0x10] sm:$0xff]
        %v263 = vld [vmem:[%s1 + $0x18] sm:$0xff]
        %s264 = scalar_lea.vmem %s0, 64
        %v265 = vld [vmem:[%s264] sm:$0xf]
        %v266 = vld [vmem:[%s264 + $0x4] sm:$0xf]
        %v267 = vld [vmem:[%s264 + $0x8] sm:$0xf]
        %v268 = vld [vmem:[%s264 + $0xc] sm:$0xf]
        %v269 = vld [vmem:[%s264 + $0x10] sm:$0xf]
        %v270 = vld [vmem:[%s264 + $0x14] sm:$0xf]
        %v271 = vld [vmem:[%s264 + $0x18] sm:$0xf]
        %v272 = vld [vmem:[%s264 + $0x1c] sm:$0xf]
        %v273 = vld [vmem:[%s264 + $0x20] sm:$0xf]
        %v274 = vld [vmem:[%s264 + $0x24] sm:$0xf]
        %v275 = vld [vmem:[%s264 + $0x28] sm:$0xf]
        %v276 = vld [vmem:[%s264 + $0x2c] sm:$0xf]
        %v277 = vld [vmem:[%s264 + $0x30] sm:$0xf]
        %v278 = vld [vmem:[%s264 + $0x34] sm:$0xf]
        %v279 = vld [vmem:[%s264 + $0x38] sm:$0xf]
        %v280 = vld [vmem:[%s264 + $0x3c] sm:$0xf]
        %s281 = scalar_lea.vmem %s1, 32
        %v282 = vld [vmem:[%s281] sm:$0xff]
        %v283 = vld [vmem:[%s281 + $0x8] sm:$0xff]
        %v284 = vld [vmem:[%s281 + $0x10] sm:$0xff]
        %v285 = vld [vmem:[%s281 + $0x18] sm:$0xff]
        %v302 = vunpack.c.l.b16 %v265
        %v303 = vunpack.c.l.b16 %v266
        %v304 = vunpack.c.l.b16 %v267
        %v305 = vunpack.c.l.b16 %v268
        %v306 = vunpack.c.l.b16 %v269
        %v307 = vunpack.c.l.b16 %v270
        %v308 = vunpack.c.l.b16 %v271
        %v309 = vunpack.c.l.b16 %v272
        %v310 = vunpack.c.l.b16 %v273
        %v311 = vunpack.c.l.b16 %v274
        %v312 = vunpack.c.l.b16 %v275
        %v313 = vunpack.c.l.b16 %v276
        %v314 = vunpack.c.l.b16 %v277
        %v315 = vunpack.c.l.b16 %v278
        %v316 = vunpack.c.l.b16 %v279
        %v317 = vunpack.c.l.b16 %v280
        %v318 = vpack.c.b16 %v303, %v302
        %v319 = vpack.c.b16 %v305, %v304
        %v320 = vpack.c.b16 %v307, %v306
        %v321 = vpack.c.b16 %v309, %v308
        %v322 = vpack.c.b16 %v311, %v310
        %v323 = vpack.c.b16 %v313, %v312
        %v324 = vpack.c.b16 %v315, %v314
        %v325 = vpack.c.b16 %v317, %v316
        %v330 = vunpack.c.l.b16 %v282
        %v331 = vunpack.c.h.b16 %v282
        %v332 = vunpack.c.l.b16 %v283
        %v333 = vunpack.c.h.b16 %v283
        %v334 = vunpack.c.l.b16 %v284
        %v335 = vunpack.c.h.b16 %v284
        %v336 = vunpack.c.l.b16 %v285
        %v337 = vunpack.c.h.b16 %v285
        %v338 = vpack.c.b16 %v332, %v330
        %v339 = vpack.c.b16 %v333, %v331
        %v340 = vpack.c.b16 %v336, %v334
        %v341 = vpack.c.b16 %v337, %v335
        %vm346 = vcmask 261120
        %v348 = vsel %vm346, %v318, 0
        %v351 = vsel %vm346, %v319, 0
        %v354 = vsel %vm346, %v320, 0
        %v357 = vsel %vm346, %v321, 0
        %v360 = vsel %vm346, %v322, 0
        %v363 = vsel %vm346, %v323, 0
        %v366 = vsel %vm346, %v324, 0
        %v369 = vsel %vm346, %v325, 0
        %371 = vmatprep.subr.bf16.mxu0 %v339
        %372 = vmatpush1.bf16.msra.mxu0 %v338
        %373 = vmatprep.subr.bf16.mxu0 %v341
        %374 = vmatpush1.bf16.msra.mxu0 %v340
        %375 = vmatprep.subr.bf16.mxu0 0
        %376 = vmatpush1.bf16.msra.mxu0 0
        %377 = vmatprep.subr.bf16.mxu0 0
        %378 = vmatpush1.bf16.msra.mxu0 0
        %379 = vmatprep.subr.bf16.mxu0 0
        %380 = vmatpush1.bf16.msra.mxu0 0
        %381 = vmatprep.subr.bf16.mxu0 0
        %382 = vmatpush1.bf16.msra.mxu0 0
        %383 = vmatprep.subr.bf16.mxu0 0
        %384 = vmatpush1.bf16.msra.mxu0 0
        %385 = vmatprep.subr.bf16.mxu0 0
        %386 = vmatpush1.bf16.msra.mxu0 0
        %387 = vmatprep.subr.bf16.mxu0 0
        %388 = vmatpush1.bf16.msra.mxu0 0
        %389 = vmatprep.subr.bf16.mxu0 0
        %390 = vmatpush1.bf16.msra.mxu0 0
        %391 = vmatprep.subr.bf16.mxu0 0
        %392 = vmatpush1.bf16.msra.mxu0 0
        %393 = vmatprep.subr.bf16.mxu0 0
        %394 = vmatpush1.bf16.msra.mxu0 0
        %395 = vmatprep.subr.bf16.mxu0 0
        %396 = vmatpush1.bf16.msra.mxu0 0
        %397 = vmatprep.subr.bf16.mxu0 0
        %398 = vmatpush1.bf16.msra.mxu0 0
        %399 = vmatprep.subr.bf16.mxu0 0
        %400 = vmatpush1.bf16.msra.mxu0 0
        %401 = vmatprep.subr.bf16.mxu0 0
        %402 = vmatpush1.bf16.msra.mxu0 0
        %403 = vmatprep.mubr.bf16.mxu0 0
        %404 = vmatmul.mubr.bf16.gmra.mrb[0].mxu0 %v348
        %v405 = vpop.f32.mrb[0].mxu0
        %v406 = vadd.f32 0.0, %v405
        %v407 = vpop.f32.mrb[0].mxu0
        %v408 = vadd.f32 0.0, %v407
        %v409 = vpop.f32.mrb[0].mxu0
        %v410 = vadd.f32 0.0, %v409
        %v411 = vpop.f32.mrb[0].mxu0
        %v412 = vadd.f32 0.0, %v411
        %413 = vmatprep.mubr.bf16.mxu0 0
        %414 = vmatmul.mubr.bf16.gmra.mrb[0].mxu0 %v351
        %v415 = vpop.f32.mrb[0].mxu0
        %v416 = vadd.f32 0.0, %v415
        %v417 = vpop.f32.mrb[0].mxu0
        %v418 = vadd.f32 0.0, %v417
        %v419 = vpop.f32.mrb[0].mxu0
        %v420 = vadd.f32 0.0, %v419
        %v421 = vpop.f32.mrb[0].mxu0
        %v422 = vadd.f32 0.0, %v421
        %423 = vmatprep.mubr.bf16.mxu0 0
        %424 = vmatmul.mubr.bf16.gmra.mrb[0].mxu0 %v354
        %v425 = vpop.f32.mrb[0].mxu0
        %v426 = vadd.f32 0.0, %v425
        %v427 = vpop.f32.mrb[0].mxu0
        %v428 = vadd.f32 0.0, %v427
        %v429 = vpop.f32.mrb[0].mxu0
        %v430 = vadd.f32 0.0, %v429
        %v431 = vpop.f32.mrb[0].mxu0
        %v432 = vadd.f32 0.0, %v431
        %433 = vmatprep.mubr.bf16.mxu0 0
        %434 = vmatmul.mubr.bf16.gmra.mrb[0].mxu0 %v357
        %v435 = vpop.f32.mrb[0].mxu0
        %v436 = vadd.f32 0.0, %v435
        %v437 = vpop.f32.mrb[0].mxu0
        %v438 = vadd.f32 0.0, %v437
        %v439 = vpop.f32.mrb[0].mxu0
        %v440 = vadd.f32 0.0, %v439
        %v441 = vpop.f32.mrb[0].mxu0
        %v442 = vadd.f32 0.0, %v441
        %443 = vmatprep.mubr.bf16.mxu0 0
        %444 = vmatmul.mubr.bf16.gmra.mrb[0].mxu0 %v360
        %v445 = vpop.f32.mrb[0].mxu0
        %v446 = vadd.f32 0.0, %v445
        %v447 = vpop.f32.mrb[0].mxu0
        %v448 = vadd.f32 0.0, %v447
        %v449 = vpop.f32.mrb[0].mxu0
        %v450 = vadd.f32 0.0, %v449
        %v451 = vpop.f32.mrb[0].mxu0
        %v452 = vadd.f32 0.0, %v451
        %453 = vmatprep.mubr.bf16.mxu0 0
        %454 = vmatmul.mubr.bf16.gmra.mrb[0].mxu0 %v363
        %v455 = vpop.f32.mrb[0].mxu0
        %v456 = vadd.f32 0.0, %v455
        %v457 = vpop.f32.mrb[0].mxu0
        %v458 = vadd.f32 0.0, %v457
        %v459 = vpop.f32.mrb[0].mxu0
        %v460 = vadd.f32 0.0, %v459
        %v461 = vpop.f32.mrb[0].mxu0
        %v462 = vadd.f32 0.0, %v461
        %463 = vmatprep.mubr.bf16.mxu0 0
        %464 = vmatmul.mubr.bf16.gmra.mrb[0].mxu0 %v366
        %v465 = vpop.f32.mrb[0].mxu0
        %v466 = vadd.f32 0.0, %v465
        %v467 = vpop.f32.mrb[0].mxu0
        %v468 = vadd.f32 0.0, %v467
        %v469 = vpop.f32.mrb[0].mxu0
        %v470 = vadd.f32 0.0, %v469
        %v471 = vpop.f32.mrb[0].mxu0
        %v472 = vadd.f32 0.0, %v471
        %473 = vmatprep.mubr.bf16.mxu0 0
        %474 = vmatmul.mubr.bf16.gmra.mrb[0].mxu0 %v369
        %v475 = vpop.f32.mrb[0].mxu0
        %v476 = vadd.f32 0.0, %v475
        %v477 = vpop.f32.mrb[0].mxu0
        %v478 = vadd.f32 0.0, %v477
        %v479 = vpop.f32.mrb[0].mxu0
        %v480 = vadd.f32 0.0, %v479
        %v481 = vpop.f32.mrb[0].mxu0
        %v482 = vadd.f32 0.0, %v481
        %483 = vdwg.mxu0
        %v500 = vunpack.c.l.b16 %v244
        %v501 = vunpack.c.l.b16 %v245
        %v502 = vunpack.c.l.b16 %v246
        %v503 = vunpack.c.l.b16 %v247
        %v504 = vunpack.c.l.b16 %v248
        %v505 = vunpack.c.l.b16 %v249
        %v506 = vunpack.c.l.b16 %v250
        %v507 = vunpack.c.l.b16 %v251
        %v508 = vunpack.c.l.b16 %v252
        %v509 = vunpack.c.l.b16 %v253
        %v510 = vunpack.c.l.b16 %v254
        %v511 = vunpack.c.l.b16 %v255
        %v512 = vunpack.c.l.b16 %v256
        %v513 = vunpack.c.l.b16 %v257
        %v514 = vunpack.c.l.b16 %v258
        %v515 = vunpack.c.l.b16 %v259
        %v516 = vpack.c.b16 %v501, %v500
        %v517 = vpack.c.b16 %v503, %v502
        %v518 = vpack.c.b16 %v505, %v504
        %v519 = vpack.c.b16 %v507, %v506
        %v520 = vpack.c.b16 %v509, %v508
        %v521 = vpack.c.b16 %v511, %v510
        %v522 = vpack.c.b16 %v513, %v512
        %v523 = vpack.c.b16 %v515, %v514
        %v528 = vunpack.c.l.b16 %v260
        %v529 = vunpack.c.h.b16 %v260
        %v530 = vunpack.c.l.b16 %v261
        %v531 = vunpack.c.h.b16 %v261
        %v532 = vunpack.c.l.b16 %v262
        %v533 = vunpack.c.h.b16 %v262
        %v534 = vunpack.c.l.b16 %v263
        %v535 = vunpack.c.h.b16 %v263
        %v536 = vpack.c.b16 %v530, %v528
        %v537 = vpack.c.b16 %v531, %v529
        %v538 = vpack.c.b16 %v534, %v532
        %v539 = vpack.c.b16 %v535, %v533
        %v545 = vsel %vm346, %v516, 0
        %v548 = vsel %vm346, %v517, 0
        %v551 = vsel %vm346, %v518, 0
        %v554 = vsel %vm346, %v519, 0
        %v557 = vsel %vm346, %v520, 0
        %v560 = vsel %vm346, %v521, 0
        %v563 = vsel %vm346, %v522, 0
        %v566 = vsel %vm346, %v523, 0
        %568 = vmatprep.subr.bf16.mxu0 %v537
        %569 = vmatpush1.bf16.msra.mxu0 %v536
        %570 = vmatprep.subr.bf16.mxu0 %v539
        %571 = vmatpush1.bf16.msra.mxu0 %v538
        %572 = vmatprep.subr.bf16.mxu0 0
        %573 = vmatpush1.bf16.msra.mxu0 0
        %574 = vmatprep.subr.bf16.mxu0 0
        %575 = vmatpush1.bf16.msra.mxu0 0
        %576 = vmatprep.subr.bf16.mxu0 0
        %577 = vmatpush1.bf16.msra.mxu0 0
        %578 = vmatprep.subr.bf16.mxu0 0
        %579 = vmatpush1.bf16.msra.mxu0 0
        %580 = vmatprep.subr.bf16.mxu0 0
        %581 = vmatpush1.bf16.msra.mxu0 0
        %582 = vmatprep.subr.bf16.mxu0 0
        %583 = vmatpush1.bf16.msra.mxu0 0
        %584 = vmatprep.subr.bf16.mxu0 0
        %585 = vmatpush1.bf16.msra.mxu0 0
        %586 = vmatprep.subr.bf16.mxu0 0
        %587 = vmatpush1.bf16.msra.mxu0 0
        %588 = vmatprep.subr.bf16.mxu0 0
        %589 = vmatpush1.bf16.msra.mxu0 0
        %590 = vmatprep.subr.bf16.mxu0 0
        %591 = vmatpush1.bf16.msra.mxu0 0
        %592 = vmatprep.subr.bf16.mxu0 0
        %593 = vmatpush1.bf16.msra.mxu0 0
        %594 = vmatprep.subr.bf16.mxu0 0
        %595 = vmatpush1.bf16.msra.mxu0 0
        %596 = vmatprep.subr.bf16.mxu0 0
        %597 = vmatpush1.bf16.msra.mxu0 0
        %598 = vmatprep.subr.bf16.mxu0 0
        %599 = vmatpush1.bf16.msra.mxu0 0
        %600 = vmatprep.mubr.bf16.mxu0 0
        %601 = vmatmul.mubr.bf16.gmra.mrb[0].mxu0 %v545
        %v602 = vpop.f32.mrb[0].mxu0
        %v603 = vadd.f32 %v406, %v602
        %v604 = vpop.f32.mrb[0].mxu0
        %v605 = vadd.f32 %v408, %v604
        %v606 = vpop.f32.mrb[0].mxu0
        %v607 = vadd.f32 %v410, %v606
        %v608 = vpop.f32.mrb[0].mxu0
        %v609 = vadd.f32 %v412, %v608
        %610 = vmatprep.mubr.bf16.mxu0 0
        %611 = vmatmul.mubr.bf16.gmra.mrb[0].mxu0 %v548
        %v612 = vpop.f32.mrb[0].mxu0
        %v613 = vadd.f32 %v416, %v612
        %v614 = vpop.f32.mrb[0].mxu0
        %v615 = vadd.f32 %v418, %v614
        %v616 = vpop.f32.mrb[0].mxu0
        %v617 = vadd.f32 %v420, %v616
        %v618 = vpop.f32.mrb[0].mxu0
        %v619 = vadd.f32 %v422, %v618
        %620 = vmatprep.mubr.bf16.mxu0 0
        %621 = vmatmul.mubr.bf16.gmra.mrb[0].mxu0 %v551
        %v622 = vpop.f32.mrb[0].mxu0
        %v623 = vadd.f32 %v426, %v622
        %v624 = vpop.f32.mrb[0].mxu0
        %v625 = vadd.f32 %v428, %v624
        %v626 = vpop.f32.mrb[0].mxu0
        %v627 = vadd.f32 %v430, %v626
        %v628 = vpop.f32.mrb[0].mxu0
        %v629 = vadd.f32 %v432, %v628
        %630 = vmatprep.mubr.bf16.mxu0 0
        %631 = vmatmul.mubr.bf16.gmra.mrb[0].mxu0 %v554
        %v632 = vpop.f32.mrb[0].mxu0
        %v633 = vadd.f32 %v436, %v632
        %v634 = vpop.f32.mrb[0].mxu0
        %v635 = vadd.f32 %v438, %v634
        %v636 = vpop.f32.mrb[0].mxu0
        %v637 = vadd.f32 %v440, %v636
        %v638 = vpop.f32.mrb[0].mxu0
        %v639 = vadd.f32 %v442, %v638
        %640 = vmatprep.mubr.bf16.mxu0 0
        %641 = vmatmul.mubr.bf16.gmra.mrb[0].mxu0 %v557
        %v642 = vpop.f32.mrb[0].mxu0
        %v643 = vadd.f32 %v446, %v642
        %v644 = vpop.f32.mrb[0].mxu0
        %v645 = vadd.f32 %v448, %v644
        %v646 = vpop.f32.mrb[0].mxu0
        %v647 = vadd.f32 %v450, %v646
        %v648 = vpop.f32.mrb[0].mxu0
        %v649 = vadd.f32 %v452, %v648
        %650 = vmatprep.mubr.bf16.mxu0 0
        %651 = vmatmul.mubr.bf16.gmra.mrb[0].mxu0 %v560
        %v652 = vpop.f32.mrb[0].mxu0
        %v653 = vadd.f32 %v456, %v652
        %v654 = vpop.f32.mrb[0].mxu0
        %v655 = vadd.f32 %v458, %v654
        %v656 = vpop.f32.mrb[0].mxu0
        %v657 = vadd.f32 %v460, %v656
        %v658 = vpop.f32.mrb[0].mxu0
        %v659 = vadd.f32 %v462, %v658
        %660 = vmatprep.mubr.bf16.mxu0 0
        %661 = vmatmul.mubr.bf16.gmra.mrb[0].mxu0 %v563
        %v662 = vpop.f32.mrb[0].mxu0
        %v663 = vadd.f32 %v466, %v662
        %v664 = vpop.f32.mrb[0].mxu0
        %v665 = vadd.f32 %v468, %v664
        %v666 = vpop.f32.mrb[0].mxu0
        %v667 = vadd.f32 %v470, %v666
        %v668 = vpop.f32.mrb[0].mxu0
        %v669 = vadd.f32 %v472, %v668
        %670 = vmatprep.mubr.bf16.mxu0 0
        %671 = vmatmul.mubr.bf16.gmra.mrb[0].mxu0 %v566
        %v672 = vpop.f32.mrb[0].mxu0
        %v673 = vadd.f32 %v476, %v672
        %v674 = vpop.f32.mrb[0].mxu0
        %v675 = vadd.f32 %v478, %v674
        %v676 = vpop.f32.mrb[0].mxu0
        %v677 = vadd.f32 %v480, %v676
        %v678 = vpop.f32.mrb[0].mxu0
        %v679 = vadd.f32 %v482, %v678
        %680 = vdwg.mxu0
        %v681 = vld [vmem:[%s3] sm:$0x1]
        %v683 = vlaneseq
        %v684 = vshrl.u32 %v683, 7
        %v685 = vsub.s32 0, %v684
        %v686 = vrot.slane %v681, %v685
        %v688 = vadd.f32 %v603, %v686
        %v689 = vadd.f32 %v607, %v686
        %v690 = vadd.f32 %v613, %v686
        %v691 = vadd.f32 %v617, %v686
        %v692 = vadd.f32 %v623, %v686
        %v693 = vadd.f32 %v627, %v686
        %v694 = vadd.f32 %v633, %v686
        %v695 = vadd.f32 %v637, %v686
        %v696 = vadd.f32 %v643, %v686
        %v697 = vadd.f32 %v647, %v686
        %v698 = vadd.f32 %v653, %v686
        %v699 = vadd.f32 %v657, %v686
        %v700 = vadd.f32 %v663, %v686
        %v701 = vadd.f32 %v667, %v686
        %v702 = vadd.f32 %v673, %v686
        %v703 = vadd.f32 %v677, %v686
        %704 = vst [vmem:[#allocation3] sm:$0xff] %v688
        %705 = vst [vmem:[#allocation3 + $0x8] sm:$0xff] %v689
        %706 = vst [vmem:[#allocation3 + $0x10] sm:$0xff] %v690
        %707 = vst [vmem:[#allocation3 + $0x18] sm:$0xff] %v691
        %708 = vst [vmem:[#allocation3 + $0x20] sm:$0xff] %v692
        %709 = vst [vmem:[#allocation3 + $0x28] sm:$0xff] %v693
        %710 = vst [vmem:[#allocation3 + $0x30] sm:$0xff] %v694
        %711 = vst [vmem:[#allocation3 + $0x38] sm:$0xff] %v695
        %712 = vst [vmem:[#allocation3 + $0x40] sm:$0xff] %v696
        %713 = vst [vmem:[#allocation3 + $0x48] sm:$0xff] %v697
        %714 = vst [vmem:[#allocation3 + $0x50] sm:$0xff] %v698
        %715 = vst [vmem:[#allocation3 + $0x58] sm:$0xff] %v699
        %716 = vst [vmem:[#allocation3 + $0x60] sm:$0xff] %v700
        %717 = vst [vmem:[#allocation3 + $0x68] sm:$0xff] %v701
        %718 = vst [vmem:[#allocation3 + $0x70] sm:$0xff] %v702
        %719 = vst [vmem:[#allocation3 + $0x78] sm:$0xff] %v703
        %s720 = scalar_lea.vmem %s3, 1
        %v721 = vld [vmem:[%s720] sm:$0x1]
        %v723 = vlaneseq
        %v724 = vshrl.u32 %v723, 7
        %v725 = vsub.s32 0, %v724
        %v726 = vrot.slane %v721, %v725
        %v728 = vadd.f32 %v605, %v726
        %v729 = vadd.f32 %v609, %v726
        %v730 = vadd.f32 %v615, %v726
        %v731 = vadd.f32 %v619, %v726
        %v732 = vadd.f32 %v625, %v726
        %v733 = vadd.f32 %v629, %v726
        %v734 = vadd.f32 %v635, %v726
        %v735 = vadd.f32 %v639, %v726
        %v736 = vadd.f32 %v645, %v726
        %v737 = vadd.f32 %v649, %v726
        %v738 = vadd.f32 %v655, %v726
        %v739 = vadd.f32 %v659, %v726
        %v740 = vadd.f32 %v665, %v726
        %v741 = vadd.f32 %v669, %v726
        %v742 = vadd.f32 %v675, %v726
        %v743 = vadd.f32 %v679, %v726
        %s744 = scalar_lea.vmem [#allocation3], 128
        %745 = vst [vmem:[%s744] sm:$0xff] %v728
        %746 = vst [vmem:[%s744 + $0x8] sm:$0xff] %v729
        %747 = vst [vmem:[%s744 + $0x10] sm:$0xff] %v730
        %748 = vst [vmem:[%s744 + $0x18] sm:$0xff] %v731
        %749 = vst [vmem:[%s744 + $0x20] sm:$0xff] %v732
        %750 = vst [vmem:[%s744 + $0x28] sm:$0xff] %v733
        %751 = vst [vmem:[%s744 + $0x30] sm:$0xff] %v734
        %752 = vst [vmem:[%s744 + $0x38] sm:$0xff] %v735
        %753 = vst [vmem:[%s744 + $0x40] sm:$0xff] %v736
        %754 = vst [vmem:[%s744 + $0x48] sm:$0xff] %v737
        %755 = vst [vmem:[%s744 + $0x50] sm:$0xff] %v738
        %756 = vst [vmem:[%s744 + $0x58] sm:$0xff] %v739
        %757 = vst [vmem:[%s744 + $0x60] sm:$0xff] %v740
        %758 = vst [vmem:[%s744 + $0x68] sm:$0xff] %v741
        %759 = vst [vmem:[%s744 + $0x70] sm:$0xff] %v742
        %760 = vst [vmem:[%s744 + $0x78] sm:$0xff] %v743
      $region44: #{birnn_forward.4} parent=39 // pred_fallthru
        _
      %v761 = vld [vmem:[%s230] sm:$0xf]
      %v762 = vld [vmem:[%s230 + $0x4] sm:$0xf]
      %v763 = vld [vmem:[%s230 + $0x8] sm:$0xf]
      %v764 = vld [vmem:[%s230 + $0xc] sm:$0xf]
      %v765 = vld [vmem:[%s233] sm:$0x1]
      %vm766 = vcmask 261120
      %767 = vst.msk [vmem:[#allocation2] sm:$0xff] %vm766, 0.0
      %768 = vst.msk [vmem:[#allocation2 + $0x8] sm:$0xff] %vm766, 0.0
      %s769 = smul.u32 %s16, 8
      %s770 = smul.u32 %s16, 7
      %v771 = vld [vmem:[#allocation2] sm:$0xff]
      %v772 = vld [vmem:[#allocation2 + $0x8] sm:$0xff]
      %v773 = vpack.c.bf16 %v772, %v771
      %v778 = vunpack.c.l.b16 %v761
      %v779 = vunpack.c.l.b16 %v762
      %v780 = vunpack.c.l.b16 %v763
      %v781 = vunpack.c.l.b16 %v764
      %v782 = vpack.c.b16 %v779, %v778
      %v783 = vpack.c.b16 %v781, %v780
      %v787 = vsel %vm766, %v773, 0
      %789 = vmatprep.subr.bf16.mxu0 0
      %790 = vmatpush1.bf16.msra.mxu0 %v782
      %791 = vmatprep.subr.bf16.mxu0 0
      %792 = vmatpush1.bf16.msra.mxu0 %v783
      %793 = vmatprep.subr.bf16.mxu0 0
      %794 = vmatpush1.bf16.msra.mxu0 0
      %795 = vmatprep.subr.bf16.mxu0 0
      %796 = vmatpush1.bf16.msra.mxu0 0
      %797 = vmatprep.subr.bf16.mxu0 0
      %798 = vmatpush1.bf16.msra.mxu0 0
      %799 = vmatprep.subr.bf16.mxu0 0
      %800 = vmatpush1.bf16.msra.mxu0 0
      %801 = vmatprep.subr.bf16.mxu0 0
      %802 = vmatpush1.bf16.msra.mxu0 0
      %803 = vmatprep.subr.bf16.mxu0 0
      %804 = vmatpush1.bf16.msra.mxu0 0
      %805 = vmatprep.subr.bf16.mxu0 0
      %806 = vmatpush1.bf16.msra.mxu0 0
      %807 = vmatprep.subr.bf16.mxu0 0
      %808 = vmatpush1.bf16.msra.mxu0 0
      %809 = vmatprep.subr.bf16.mxu0 0
      %810 = vmatpush1.bf16.msra.mxu0 0
      %811 = vmatprep.subr.bf16.mxu0 0
      %812 = vmatpush1.bf16.msra.mxu0 0
      %813 = vmatprep.subr.bf16.mxu0 0
      %814 = vmatpush1.bf16.msra.mxu0 0
      %815 = vmatprep.subr.bf16.mxu0 0
      %816 = vmatpush1.bf16.msra.mxu0 0
      %817 = vmatprep.subr.bf16.mxu0 0
      %818 = vmatpush1.bf16.msra.mxu0 0
      %819 = vmatprep.subr.bf16.mxu0 0
      %820 = vmatpush1.bf16.msra.mxu0 0
      %821 = vmatprep.mubr.bf16.mxu0 0
      %822 = vmatmul.mubr.bf16.gmra.mrb[0].mxu0 %v787
      %v823 = vpop.f32.mrb[0].mxu0
      %v824 = vadd.f32 0.0, %v823
      %v825 = vpop.f32.mrb[0].mxu0
      %v826 = vpop.f32.mrb[0].mxu0
      %v827 = vadd.f32 0.0, %v826
      %v828 = vpop.f32.mrb[0].mxu0
      %829 = vdwg.mxu0
      %s830 = sadd.s32 %s769, %s770
      %s831 = smul.u32 %s830, 16
      %s832 = scalar_lea.vmem [#allocation3], %s831
      %v833 = vld [vmem:[%s832] sm:$0xff]
      %v834 = vld [vmem:[%s832 + $0x8] sm:$0xff]
      %v835 = vadd.f32 %v833, %v824
      %v836 = vadd.f32 %v834, %v827
      %v837 = vxor.u32 %v835, 2147483648
      %v838 = vxor.u32 %v836, 2147483648
      %v839 = vmul.f32 %v837, 1.442695
      %v840 = vpow.pop %v839
      %v841 = vmul.f32 %v838, 1.442695
      %v842 = vpow.pop %v841
      %v843 = vadd.f32 %v840, 1.0
      %v844 = vadd.f32 %v842, 1.0
      %v845 = vrcp.pop %v843
      %v846 = vmul.f32 1.0, %v845
      %v847 = vrcp.pop %v844
      %v848 = vmul.f32 1.0, %v847
      %v850 = vlaneseq
      %v851 = vshrl.u32 %v850, 7
      %v852 = vsub.s32 0, %v851
      %v853 = vrot.slane %v765, %v852
      %854 = vrot.lane.b32.xlu0 %v853, 64
      %v855 = vpop.permute.xlu0 %854
      %v857 = vadd.f32 %v824, %v855
      %v858 = vadd.f32 %v827, %v855
      %861 = vrot.lane.b32.xlu0 %v857, 64
      %v862 = vpop.permute.xlu0 %861
      %863 = vrot.lane.b32.xlu0 %v858, 64
      %v864 = vpop.permute.xlu0 %863
      %v867 = vmul.f32 %v846, %v862
      %v868 = vmul.f32 %v848, %v864
      %871 = vrot.lane.b32.xlu0 %v867, 64
      %v872 = vpop.permute.xlu0 %871
      %873 = vrot.lane.b32.xlu0 %v868, 64
      %v874 = vpop.permute.xlu0 %873
      %v877 = vadd.f32 %v833, %v872
      %v878 = vadd.f32 %v834, %v874
      %v879 = vtanh.pop %v877
      %v880 = vtanh.pop %v878
      %v881 = vsub.f32 1.0, %v846
      %v882 = vsub.f32 1.0, %v848
      %885 = vrot.lane.b32.xlu0 %v879, 96
      %v886 = vpop.permute.xlu0 %885
      %887 = vrot.lane.b32.xlu0 %v880, 96
      %v888 = vpop.permute.xlu0 %887
      %v891 = vmul.f32 %v881, %v886
      %v892 = vmul.f32 %v882, %v888
      %895 = vrot.lane.b32.xlu0 %v771, 32
      %v896 = vpop.permute.xlu0 %895
      %897 = vrot.lane.b32.xlu0 %v772, 32
      %v898 = vpop.permute.xlu0 %897
      %v901 = vmul.f32 %v846, %v896
      %v902 = vmul.f32 %v848, %v898
      %v903 = vadd.f32 %v891, %v901
      %v904 = vadd.f32 %v892, %v902
      %907 = vrot.lane.b32.xlu0 %v903, 96
      %v908 = vpop.permute.xlu0 %907
      %909 = vrot.lane.b32.xlu0 %v904, 96
      %v910 = vpop.permute.xlu0 %909
      %913 = vst.msk [vmem:[#allocation2] sm:$0xff] %vm766, %v908
      %914 = vst.msk [vmem:[#allocation2 + $0x8] sm:$0xff] %vm766, %v910
      %v915 = vpack.c.bf16 %v904, %v903
      %v917 = vunpack.c.l.b16 %v915
      %v918 = vunpack.c.h.b16 %v915
      %v919 = vpack.c.b16 %v917, %v917
      %v920 = vpack.c.b16 %v918, %v918
      %921 = vrot.lane.b32.xlu0 %v919, 96
      %v922 = vpop.permute.xlu0 %921
      %923 = vrot.lane.b32.xlu0 %v920, 96
      %v924 = vpop.permute.xlu0 %923
      %s927 = smul.u32 %s770, 2
      %s928 = smul.addr %s927, 4
      %s929 = scalar_lea.vmem %s238, %s928
      %vm930 = vcmask 257024
      %931 = vst.msk [vmem:[%s929] sm:$0xf] %vm930, %v922
      %932 = vst.msk [vmem:[%s929 + $0x4] sm:$0xf] %vm930, %v924
      %s933 = smul.u32 %s16, 5
      %s934 = sadd.s32 %s933, 1
      %v935 = vld [vmem:[#allocation2] sm:$0xff]
      %v936 = vld [vmem:[#allocation2 + $0x8] sm:$0xff]
      %v937 = vpack.c.bf16 %v936, %v935
      %v939 = vsel %vm766, %v937, 0
      %941 = vmatprep.subr.bf16.mxu0 0
      %942 = vmatpush1.bf16.msra.mxu0 %v782
      %943 = vmatprep.subr.bf16.mxu0 0
      %944 = vmatpush1.bf16.msra.mxu0 %v783
      %945 = vmatprep.subr.bf16.mxu0 0
      %946 = vmatpush1.bf16.msra.mxu0 0
      %947 = vmatprep.subr.bf16.mxu0 0
      %948 = vmatpush1.bf16.msra.mxu0 0
      %949 = vmatprep.subr.bf16.mxu0 0
      %950 = vmatpush1.bf16.msra.mxu0 0
      %951 = vmatprep.subr.bf16.mxu0 0
      %952 = vmatpush1.bf16.msra.mxu0 0
      %953 = vmatprep.subr.bf16.mxu0 0
      %954 = vmatpush1.bf16.msra.mxu0 0
      %955 = vmatprep.subr.bf16.mxu0 0
      %956 = vmatpush1.bf16.msra.mxu0 0
      %957 = vmatprep.subr.bf16.mxu0 0
      %958 = vmatpush1.bf16.msra.mxu0 0
      %959 = vmatprep.subr.bf16.mxu0 0
      %960 = vmatpush1.bf16.msra.mxu0 0
      %961 = vmatprep.subr.bf16.mxu0 0
      %962 = vmatpush1.bf16.msra.mxu0 0
      %963 = vmatprep.subr.bf16.mxu0 0
      %964 = vmatpush1.bf16.msra.mxu0 0
      %965 = vmatprep.subr.bf16.mxu0 0
      %966 = vmatpush1.bf16.msra.mxu0 0
      %967 = vmatprep.subr.bf16.mxu0 0
      %968 = vmatpush1.bf16.msra.mxu0 0
      %969 = vmatprep.subr.bf16.mxu0 0
      %970 = vmatpush1.bf16.msra.mxu0 0
      %971 = vmatprep.subr.bf16.mxu0 0
      %972 = vmatpush1.bf16.msra.mxu0 0
      %973 = vmatprep.mubr.bf16.mxu0 0
      %974 = vmatmul.mubr.bf16.gmra.mrb[0].mxu0 %v939
      %v975 = vpop.f32.mrb[0].mxu0
      %v976 = vadd.f32 0.0, %v975
      %v977 = vpop.f32.mrb[0].mxu0
      %v978 = vpop.f32.mrb[0].mxu0
      %v979 = vadd.f32 0.0, %v978
      %v980 = vpop.f32.mrb[0].mxu0
      %981 = vdwg.mxu0
      %s982 = sadd.s32 %s769, %s934
      %s983 = smul.u32 %s982, 16
      %s984 = scalar_lea.vmem [#allocation3], %s983
      %v985 = vld [vmem:[%s984] sm:$0xff]
      %v986 = vld [vmem:[%s984 + $0x8] sm:$0xff]
      %v987 = vadd.f32 %v985, %v976
      %v988 = vadd.f32 %v986, %v979
      %v989 = vxor.u32 %v987, 2147483648
      %v990 = vxor.u32 %v988, 2147483648
      %v991 = vmul.f32 %v989, 1.442695
      %v992 = vpow.pop %v991
      %v993 = vmul.f32 %v990, 1.442695
      %v994 = vpow.pop %v993
      %v995 = vadd.f32 %v992, 1.0
      %v996 = vadd.f32 %v994, 1.0
      %v997 = vrcp.pop %v995
      %v998 = vmul.f32 1.0, %v997
      %v999 = vrcp.pop %v996
      %v1000 = vmul.f32 1.0, %v999
      %v1001 = vadd.f32 %v976, %v855
      %v1002 = vadd.f32 %v979, %v855
      %1005 = vrot.lane.b32.xlu0 %v1001, 64
      %v1006 = vpop.permute.xlu0 %1005
      %1007 = vrot.lane.b32.xlu0 %v1002, 64
      %v1008 = vpop.permute.xlu0 %1007
      %v1011 = vmul.f32 %v998, %v1006
      %v1012 = vmul.f32 %v1000, %v1008
      %1015 = vrot.lane.b32.xlu0 %v1011, 64
      %v1016 = vpop.permute.xlu0 %1015
      %1017 = vrot.lane.b32.xlu0 %v1012, 64
      %v1018 = vpop.permute.xlu0 %1017
      %v1021 = vadd.f32 %v985, %v1016
      %v1022 = vadd.f32 %v986, %v1018
      %v1023 = vtanh.pop %v1021
      %v1024 = vtanh.pop %v1022
      %v1025 = vsub.f32 1.0, %v998
      %v1026 = vsub.f32 1.0, %v1000
      %1029 = vrot.lane.b32.xlu0 %v1023, 96
      %v1030 = vpop.permute.xlu0 %1029
      %1031 = vrot.lane.b32.xlu0 %v1024, 96
      %v1032 = vpop.permute.xlu0 %1031
      %v1035 = vmul.f32 %v1025, %v1030
      %v1036 = vmul.f32 %v1026, %v1032
      %1039 = vrot.lane.b32.xlu0 %v935, 32
      %v1040 = vpop.permute.xlu0 %1039
      %1041 = vrot.lane.b32.xlu0 %v936, 32
      %v1042 = vpop.permute.xlu0 %1041
      %v1045 = vmul.f32 %v998, %v1040
      %v1046 = vmul.f32 %v1000, %v1042
      %v1047 = vadd.f32 %v1035, %v1045
      %v1048 = vadd.f32 %v1036, %v1046
      %1051 = vrot.lane.b32.xlu0 %v1047, 96
      %v1052 = vpop.permute.xlu0 %1051
      %1053 = vrot.lane.b32.xlu0 %v1048, 96
      %v1054 = vpop.permute.xlu0 %1053
      %1057 = vst.msk [vmem:[#allocation2] sm:$0xff] %vm766, %v1052
      %1058 = vst.msk [vmem:[#allocation2 + $0x8] sm:$0xff] %vm766, %v1054
      %v1059 = vpack.c.bf16 %v1048, %v1047
      %v1061 = vunpack.c.l.b16 %v1059
      %v1062 = vunpack.c.h.b16 %v1059
      %v1063 = vpack.c.b16 %v1061, %v1061
      %v1064 = vpack.c.b16 %v1062, %v1062
      %1065 = vrot.lane.b32.xlu0 %v1063, 96
      %v1066 = vpop.permute.xlu0 %1065
      %1067 = vrot.lane.b32.xlu0 %v1064, 96
      %v1068 = vpop.permute.xlu0 %1067
      %s1071 = smul.u32 %s934, 2
      %s1072 = smul.addr %s1071, 4
      %s1073 = scalar_lea.vmem %s238, %s1072
      %1074 = vst.msk [vmem:[%s1073] sm:$0xf] %vm930, %v1066
      %1075 = vst.msk [vmem:[%s1073 + $0x4] sm:$0xf] %vm930, %v1068
      %s1076 = smul.u32 %s16, 3
      %s1077 = sadd.s32 %s1076, 2
      %v1078 = vld [vmem:[#allocation2] sm:$0xff]
      %v1079 = vld [vmem:[#allocation2 + $0x8] sm:$0xff]
      %v1080 = vpack.c.bf16 %v1079, %v1078
      %v1082 = vsel %vm766, %v1080, 0
      %1084 = vmatprep.subr.bf16.mxu0 0
      %1085 = vmatpush1.bf16.msra.mxu0 %v782
      %1086 = vmatprep.subr.bf16.mxu0 0
      %1087 = vmatpush1.bf16.msra.mxu0 %v783
      %1088 = vmatprep.subr.bf16.mxu0 0
      %1089 = vmatpush1.bf16.msra.mxu0 0
      %1090 = vmatprep.subr.bf16.mxu0 0
      %1091 = vmatpush1.bf16.msra.mxu0 0
      %1092 = vmatprep.subr.bf16.mxu0 0
      %1093 = vmatpush1.bf16.msra.mxu0 0
      %1094 = vmatprep.subr.bf16.mxu0 0
      %1095 = vmatpush1.bf16.msra.mxu0 0
      %1096 = vmatprep.subr.bf16.mxu0 0
      %1097 = vmatpush1.bf16.msra.mxu0 0
      %1098 = vmatprep.subr.bf16.mxu0 0
      %1099 = vmatpush1.bf16.msra.mxu0 0
      %1100 = vmatprep.subr.bf16.mxu0 0
      %1101 = vmatpush1.bf16.msra.mxu0 0
      %1102 = vmatprep.subr.bf16.mxu0 0
      %1103 = vmatpush1.bf16.msra.mxu0 0
      %1104 = vmatprep.subr.bf16.mxu0 0
      %1105 = vmatpush1.bf16.msra.mxu0 0
      %1106 = vmatprep.subr.bf16.mxu0 0
      %1107 = vmatpush1.bf16.msra.mxu0 0
      %1108 = vmatprep.subr.bf16.mxu0 0
      %1109 = vmatpush1.bf16.msra.mxu0 0
      %1110 = vmatprep.subr.bf16.mxu0 0
      %1111 = vmatpush1.bf16.msra.mxu0 0
      %1112 = vmatprep.subr.bf16.mxu0 0
      %1113 = vmatpush1.bf16.msra.mxu0 0
      %1114 = vmatprep.subr.bf16.mxu0 0
      %1115 = vmatpush1.bf16.msra.mxu0 0
      %1116 = vmatprep.mubr.bf16.mxu0 0
      %1117 = vmatmul.mubr.bf16.gmra.mrb[0].mxu0 %v1082
      %v1118 = vpop.f32.mrb[0].mxu0
      %v1119 = vadd.f32 0.0, %v1118
      %v1120 = vpop.f32.mrb[0].mxu0
      %v1121 = vpop.f32.mrb[0].mxu0
      %v1122 = vadd.f32 0.0, %v1121
      %v1123 = vpop.f32.mrb[0].mxu0
      %1124 = vdwg.mxu0
      %s1125 = sadd.s32 %s769, %s1077
      %s1126 = smul.u32 %s1125, 16
      %s1127 = scalar_lea.vmem [#allocation3], %s1126
      %v1128 = vld [vmem:[%s1127] sm:$0xff]
      %v1129 = vld [vmem:[%s1127 + $0x8] sm:$0xff]
      %v1130 = vadd.f32 %v1128, %v1119
      %v1131 = vadd.f32 %v1129, %v1122
      %v1132 = vxor.u32 %v1130, 2147483648
      %v1133 = vxor.u32 %v1131, 2147483648
      %v1134 = vmul.f32 %v1132, 1.442695
      %v1135 = vpow.pop %v1134
      %v1136 = vmul.f32 %v1133, 1.442695
      %v1137 = vpow.pop %v1136
      %v1138 = vadd.f32 %v1135, 1.0
      %v1139 = vadd.f32 %v1137, 1.0
      %v1140 = vrcp.pop %v1138
      %v1141 = vmul.f32 1.0, %v1140
      %v1142 = vrcp.pop %v1139
      %v1143 = vmul.f32 1.0, %v1142
      %v1144 = vadd.f32 %v1119, %v855
      %v1145 = vadd.f32 %v1122, %v855
      %1148 = vrot.lane.b32.xlu0 %v1144, 64
      %v1149 = vpop.permute.xlu0 %1148
      %1150 = vrot.lane.b32.xlu0 %v1145, 64
      %v1151 = vpop.permute.xlu0 %1150
      %v1154 = vmul.f32 %v1141, %v1149
      %v1155 = vmul.f32 %v1143, %v1151
      %1158 = vrot.lane.b32.xlu0 %v1154, 64
      %v1159 = vpop.permute.xlu0 %1158
      %1160 = vrot.lane.b32.xlu0 %v1155, 64
      %v1161 = vpop.permute.xlu0 %1160
      %v1164 = vadd.f32 %v1128, %v1159
      %v1165 = vadd.f32 %v1129, %v1161
      %v1166 = vtanh.pop %v1164
      %v1167 = vtanh.pop %v1165
      %v1168 = vsub.f32 1.0, %v1141
      %v1169 = vsub.f32 1.0, %v1143
      %1172 = vrot.lane.b32.xlu0 %v1166, 96
      %v1173 = vpop.permute.xlu0 %1172
      %1174 = vrot.lane.b32.xlu0 %v1167, 96
      %v1175 = vpop.permute.xlu0 %1174
      %v1178 = vmul.f32 %v1168, %v1173
      %v1179 = vmul.f32 %v1169, %v1175
      %1182 = vrot.lane.b32.xlu0 %v1078, 32
      %v1183 = vpop.permute.xlu0 %1182
      %1184 = vrot.lane.b32.xlu0 %v1079, 32
      %v1185 = vpop.permute.xlu0 %1184
      %v1188 = vmul.f32 %v1141, %v1183
      %v1189 = vmul.f32 %v1143, %v1185
      %v1190 = vadd.f32 %v1178, %v1188
      %v1191 = vadd.f32 %v1179, %v1189
      %1194 = vrot.lane.b32.xlu0 %v1190, 96
      %v1195 = vpop.permute.xlu0 %1194
      %1196 = vrot.lane.b32.xlu0 %v1191, 96
      %v1197 = vpop.permute.xlu0 %1196
      %1200 = vst.msk [vmem:[#allocation2] sm:$0xff] %vm766, %v1195
      %1201 = vst.msk [vmem:[#allocation2 + $0x8] sm:$0xff] %vm766, %v1197
      %v1202 = vpack.c.bf16 %v1191, %v1190
      %v1204 = vunpack.c.l.b16 %v1202
      %v1205 = vunpack.c.h.b16 %v1202
      %v1206 = vpack.c.b16 %v1204, %v1204
      %v1207 = vpack.c.b16 %v1205, %v1205
      %1208 = vrot.lane.b32.xlu0 %v1206, 96
      %v1209 = vpop.permute.xlu0 %1208
      %1210 = vrot.lane.b32.xlu0 %v1207, 96
      %v1211 = vpop.permute.xlu0 %1210
      %s1214 = smul.u32 %s1077, 2
      %s1215 = smul.addr %s1214, 4
      %s1216 = scalar_lea.vmem %s238, %s1215
      %1217 = vst.msk [vmem:[%s1216] sm:$0xf] %vm930, %v1209
      %1218 = vst.msk [vmem:[%s1216 + $0x4] sm:$0xf] %vm930, %v1211
      %s1219 = sadd.s32 %s16, 3
      %v1220 = vld [vmem:[#allocation2] sm:$0xff]
      %v1221 = vld [vmem:[#allocation2 + $0x8] sm:$0xff]
      %v1222 = vpack.c.bf16 %v1221, %v1220
      %v1224 = vsel %vm766, %v1222, 0
      %1226 = vmatprep.subr.bf16.mxu0 0
      %1227 = vmatpush1.bf16.msra.mxu0 %v782
      %1228 = vmatprep.subr.bf16.mxu0 0
      %1229 = vmatpush1.bf16.msra.mxu0 %v783
      %1230 = vmatprep.subr.bf16.mxu0 0
      %1231 = vmatpush1.bf16.msra.mxu0 0
      %1232 = vmatprep.subr.bf16.mxu0 0
      %1233 = vmatpush1.bf16.msra.mxu0 0
      %1234 = vmatprep.subr.bf16.mxu0 0
      %1235 = vmatpush1.bf16.msra.mxu0 0
      %1236 = vmatprep.subr.bf16.mxu0 0
      %1237 = vmatpush1.bf16.msra.mxu0 0
      %1238 = vmatprep.subr.bf16.mxu0 0
      %1239 = vmatpush1.bf16.msra.mxu0 0
      %1240 = vmatprep.subr.bf16.mxu0 0
      %1241 = vmatpush1.bf16.msra.mxu0 0
      %1242 = vmatprep.subr.bf16.mxu0 0
      %1243 = vmatpush1.bf16.msra.mxu0 0
      %1244 = vmatprep.subr.bf16.mxu0 0
      %1245 = vmatpush1.bf16.msra.mxu0 0
      %1246 = vmatprep.subr.bf16.mxu0 0
      %1247 = vmatpush1.bf16.msra.mxu0 0
      %1248 = vmatprep.subr.bf16.mxu0 0
      %1249 = vmatpush1.bf16.msra.mxu0 0
      %1250 = vmatprep.subr.bf16.mxu0 0
      %1251 = vmatpush1.bf16.msra.mxu0 0
      %1252 = vmatprep.subr.bf16.mxu0 0
      %1253 = vmatpush1.bf16.msra.mxu0 0
      %1254 = vmatprep.subr.bf16.mxu0 0
      %1255 = vmatpush1.bf16.msra.mxu0 0
      %1256 = vmatprep.subr.bf16.mxu0 0
      %1257 = vmatpush1.bf16.msra.mxu0 0
      %1258 = vmatprep.mubr.bf16.mxu0 0
      %1259 = vmatmul.mubr.bf16.gmra.mrb[0].mxu0 %v1224
      %v1260 = vpop.f32.mrb[0].mxu0
      %v1261 = vadd.f32 0.0, %v1260
      %v1262 = vpop.f32.mrb[0].mxu0
      %v1263 = vpop.f32.mrb[0].mxu0
      %v1264 = vadd.f32 0.0, %v1263
      %v1265 = vpop.f32.mrb[0].mxu0
      %1266 = vdwg.mxu0
      %s1267 = sadd.s32 %s769, %s1219
      %s1268 = smul.u32 %s1267, 16
      %s1269 = scalar_lea.vmem [#allocation3], %s1268
      %v1270 = vld [vmem:[%s1269] sm:$0xff]
      %v1271 = vld [vmem:[%s1269 + $0x8] sm:$0xff]
      %v1272 = vadd.f32 %v1270, %v1261
      %v1273 = vadd.f32 %v1271, %v1264
      %v1274 = vxor.u32 %v1272, 2147483648
      %v1275 = vxor.u32 %v1273, 2147483648
      %v1276 = vmul.f32 %v1274, 1.442695
      %v1277 = vpow.pop %v1276
      %v1278 = vmul.f32 %v1275, 1.442695
      %v1279 = vpow.pop %v1278
      %v1280 = vadd.f32 %v1277, 1.0
      %v1281 = vadd.f32 %v1279, 1.0
      %v1282 = vrcp.pop %v1280
      %v1283 = vmul.f32 1.0, %v1282
      %v1284 = vrcp.pop %v1281
      %v1285 = vmul.f32 1.0, %v1284
      %v1286 = vadd.f32 %v1261, %v855
      %v1287 = vadd.f32 %v1264, %v855
      %1290 = vrot.lane.b32.xlu0 %v1286, 64
      %v1291 = vpop.permute.xlu0 %1290
      %1292 = vrot.lane.b32.xlu0 %v1287, 64
      %v1293 = vpop.permute.xlu0 %1292
      %v1296 = vmul.f32 %v1283, %v1291
      %v1297 = vmul.f32 %v1285, %v1293
      %1300 = vrot.lane.b32.xlu0 %v1296, 64
      %v1301 = vpop.permute.xlu0 %1300
      %1302 = vrot.lane.b32.xlu0 %v1297, 64
      %v1303 = vpop.permute.xlu0 %1302
      %v1306 = vadd.f32 %v1270, %v1301
      %v1307 = vadd.f32 %v1271, %v1303
      %v1308 = vtanh.pop %v1306
      %v1309 = vtanh.pop %v1307
      %v1310 = vsub.f32 1.0, %v1283
      %v1311 = vsub.f32 1.0, %v1285
      %1314 = vrot.lane.b32.xlu0 %v1308, 96
      %v1315 = vpop.permute.xlu0 %1314
      %1316 = vrot.lane.b32.xlu0 %v1309, 96
      %v1317 = vpop.permute.xlu0 %1316
      %v1320 = vmul.f32 %v1310, %v1315
      %v1321 = vmul.f32 %v1311, %v1317
      %1324 = vrot.lane.b32.xlu0 %v1220, 32
      %v1325 = vpop.permute.xlu0 %1324
      %1326 = vrot.lane.b32.xlu0 %v1221, 32
      %v1327 = vpop.permute.xlu0 %1326
      %v1330 = vmul.f32 %v1283, %v1325
      %v1331 = vmul.f32 %v1285, %v1327
      %v1332 = vadd.f32 %v1320, %v1330
      %v1333 = vadd.f32 %v1321, %v1331
      %1336 = vrot.lane.b32.xlu0 %v1332, 96
      %v1337 = vpop.permute.xlu0 %1336
      %1338 = vrot.lane.b32.xlu0 %v1333, 96
      %v1339 = vpop.permute.xlu0 %1338
      %1342 = vst.msk [vmem:[#allocation2] sm:$0xff] %vm766, %v1337
      %1343 = vst.msk [vmem:[#allocation2 + $0x8] sm:$0xff] %vm766, %v1339
      %v1344 = vpack.c.bf16 %v1333, %v1332
      %v1346 = vunpack.c.l.b16 %v1344
      %v1347 = vunpack.c.h.b16 %v1344
      %v1348 = vpack.c.b16 %v1346, %v1346
      %v1349 = vpack.c.b16 %v1347, %v1347
      %1350 = vrot.lane.b32.xlu0 %v1348, 96
      %v1351 = vpop.permute.xlu0 %1350
      %1352 = vrot.lane.b32.xlu0 %v1349, 96
      %v1353 = vpop.permute.xlu0 %1352
      %s1356 = smul.u32 %s1219, 2
      %s1357 = smul.addr %s1356, 4
      %s1358 = scalar_lea.vmem %s238, %s1357
      %1359 = vst.msk [vmem:[%s1358] sm:$0xf] %vm930, %v1351
      %1360 = vst.msk [vmem:[%s1358 + $0x4] sm:$0xf] %vm930, %v1353
      %s1361 = ssub.s32 4, %s16
      %v1362 = vld [vmem:[#allocation2] sm:$0xff]
      %v1363 = vld [vmem:[#allocation2 + $0x8] sm:$0xff]
      %v1364 = vpack.c.bf16 %v1363, %v1362
      %v1366 = vsel %vm766, %v1364, 0
      %1368 = vmatprep.subr.bf16.mxu0 0
      %1369 = vmatpush1.bf16.msra.mxu0 %v782
      %1370 = vmatprep.subr.bf16.mxu0 0
      %1371 = vmatpush1.bf16.msra.mxu0 %v783
      %1372 = vmatprep.subr.bf16.mxu0 0
      %1373 = vmatpush1.bf16.msra.mxu0 0
      %1374 = vmatprep.subr.bf16.mxu0 0
      %1375 = vmatpush1.bf16.msra.mxu0 0
      %1376 = vmatprep.subr.bf16.mxu0 0
      %1377 = vmatpush1.bf16.msra.mxu0 0
      %1378 = vmatprep.subr.bf16.mxu0 0
      %1379 = vmatpush1.bf16.msra.mxu0 0
      %1380 = vmatprep.subr.bf16.mxu0 0
      %1381 = vmatpush1.bf16.msra.mxu0 0
      %1382 = vmatprep.subr.bf16.mxu0 0
      %1383 = vmatpush1.bf16.msra.mxu0 0
      %1384 = vmatprep.subr.bf16.mxu0 0
      %1385 = vmatpush1.bf16.msra.mxu0 0
      %1386 = vmatprep.subr.bf16.mxu0 0
      %1387 = vmatpush1.bf16.msra.mxu0 0
      %1388 = vmatprep.subr.bf16.mxu0 0
      %1389 = vmatpush1.bf16.msra.mxu0 0
      %1390 = vmatprep.subr.bf16.mxu0 0
      %1391 = vmatpush1.bf16.msra.mxu0 0
      %1392 = vmatprep.subr.bf16.mxu0 0
      %1393 = vmatpush1.bf16.msra.mxu0 0
      %1394 = vmatprep.subr.bf16.mxu0 0
      %1395 = vmatpush1.bf16.msra.mxu0 0
      %1396 = vmatprep.subr.bf16.mxu0 0
      %1397 = vmatpush1.bf16.msra.mxu0 0
      %1398 = vmatprep.subr.bf16.mxu0 0
      %1399 = vmatpush1.bf16.msra.mxu0 0
      %1400 = vmatprep.mubr.bf16.mxu0 0
      %1401 = vmatmul.mubr.bf16.gmra.mrb[0].mxu0 %v1366
      %v1402 = vpop.f32.mrb[0].mxu0
      %v1403 = vadd.f32 0.0, %v1402
      %v1404 = vpop.f32.mrb[0].mxu0
      %v1405 = vpop.f32.mrb[0].mxu0
      %v1406 = vadd.f32 0.0, %v1405
      %v1407 = vpop.f32.mrb[0].mxu0
      %1408 = vdwg.mxu0
      %s1409 = sadd.s32 %s769, %s1361
      %s1410 = smul.u32 %s1409, 16
      %s1411 = scalar_lea.vmem [#allocation3], %s1410
      %v1412 = vld [vmem:[%s1411] sm:$0xff]
      %v1413 = vld [vmem:[%s1411 + $0x8] sm:$0xff]
      %v1414 = vadd.f32 %v1412, %v1403
      %v1415 = vadd.f32 %v1413, %v1406
      %v1416 = vxor.u32 %v1414, 2147483648
      %v1417 = vxor.u32 %v1415, 2147483648
      %v1418 = vmul.f32 %v1416, 1.442695
      %v1419 = vpow.pop %v1418
      %v1420 = vmul.f32 %v1417, 1.442695
      %v1421 = vpow.pop %v1420
      %v1422 = vadd.f32 %v1419, 1.0
      %v1423 = vadd.f32 %v1421, 1.0
      %v1424 = vrcp.pop %v1422
      %v1425 = vmul.f32 1.0, %v1424
      %v1426 = vrcp.pop %v1423
      %v1427 = vmul.f32 1.0, %v1426
      %v1428 = vadd.f32 %v1403, %v855
      %v1429 = vadd.f32 %v1406, %v855
      %1432 = vrot.lane.b32.xlu0 %v1428, 64
      %v1433 = vpop.permute.xlu0 %1432
      %1434 = vrot.lane.b32.xlu0 %v1429, 64
      %v1435 = vpop.permute.xlu0 %1434
      %v1438 = vmul.f32 %v1425, %v1433
      %v1439 = vmul.f32 %v1427, %v1435
      %1442 = vrot.lane.b32.xlu0 %v1438, 64
      %v1443 = vpop.permute.xlu0 %1442
      %1444 = vrot.lane.b32.xlu0 %v1439, 64
      %v1445 = vpop.permute.xlu0 %1444
      %v1448 = vadd.f32 %v1412, %v1443
      %v1449 = vadd.f32 %v1413, %v1445
      %v1450 = vtanh.pop %v1448
      %v1451 = vtanh.pop %v1449
      %v1452 = vsub.f32 1.0, %v1425
      %v1453 = vsub.f32 1.0, %v1427
      %1456 = vrot.lane.b32.xlu0 %v1450, 96
      %v1457 = vpop.permute.xlu0 %1456
      %1458 = vrot.lane.b32.xlu0 %v1451, 96
      %v1459 = vpop.permute.xlu0 %1458
      %v1462 = vmul.f32 %v1452, %v1457
      %v1463 = vmul.f32 %v1453, %v1459
      %1466 = vrot.lane.b32.xlu0 %v1362, 32
      %v1467 = vpop.permute.xlu0 %1466
      %1468 = vrot.lane.b32.xlu0 %v1363, 32
      %v1469 = vpop.permute.xlu0 %1468
      %v1472 = vmul.f32 %v1425, %v1467
      %v1473 = vmul.f32 %v1427, %v1469
      %v1474 = vadd.f32 %v1462, %v1472
      %v1475 = vadd.f32 %v1463, %v1473
      %1478 = vrot.lane.b32.xlu0 %v1474, 96
      %v1479 = vpop.permute.xlu0 %1478
      %1480 = vrot.lane.b32.xlu0 %v1475, 96
      %v1481 = vpop.permute.xlu0 %1480
      %1484 = vst.msk [vmem:[#allocation2] sm:$0xff] %vm766, %v1479
      %1485 = vst.msk [vmem:[#allocation2 + $0x8] sm:$0xff] %vm766, %v1481
      %v1486 = vpack.c.bf16 %v1475, %v1474
      %v1488 = vunpack.c.l.b16 %v1486
      %v1489 = vunpack.c.h.b16 %v1486
      %v1490 = vpack.c.b16 %v1488, %v1488
      %v1491 = vpack.c.b16 %v1489, %v1489
      %1492 = vrot.lane.b32.xlu0 %v1490, 96
      %v1493 = vpop.permute.xlu0 %1492
      %1494 = vrot.lane.b32.xlu0 %v1491, 96
      %v1495 = vpop.permute.xlu0 %1494
      %s1498 = smul.u32 %s1361, 2
      %s1499 = smul.addr %s1498, 4
      %s1500 = scalar_lea.vmem %s238, %s1499
      %1501 = vst.msk [vmem:[%s1500] sm:$0xf] %vm930, %v1493
      %1502 = vst.msk [vmem:[%s1500 + $0x4] sm:$0xf] %vm930, %v1495
      %s1503 = smul.u32 %s16, 4294967293
      %s1504 = sadd.s32 %s1503, 5
      %v1505 = vld [vmem:[#allocation2] sm:$0xff]
      %v1506 = vld [vmem:[#allocation2 + $0x8] sm:$0xff]
      %v1507 = vpack.c.bf16 %v1506, %v1505
      %v1509 = vsel %vm766, %v1507, 0
      %1511 = vmatprep.subr.bf16.mxu0 0
      %1512 = vmatpush1.bf16.msra.mxu0 %v782
      %1513 = vmatprep.subr.bf16.mxu0 0
      %1514 = vmatpush1.bf16.msra.mxu0 %v783
      %1515 = vmatprep.subr.bf16.mxu0 0
      %1516 = vmatpush1.bf16.msra.mxu0 0
      %1517 = vmatprep.subr.bf16.mxu0 0
      %1518 = vmatpush1.bf16.msra.mxu0 0
      %1519 = vmatprep.subr.bf16.mxu0 0
      %1520 = vmatpush1.bf16.msra.mxu0 0
      %1521 = vmatprep.subr.bf16.mxu0 0
      %1522 = vmatpush1.bf16.msra.mxu0 0
      %1523 = vmatprep.subr.bf16.mxu0 0
      %1524 = vmatpush1.bf16.msra.mxu0 0
      %1525 = vmatprep.subr.bf16.mxu0 0
      %1526 = vmatpush1.bf16.msra.mxu0 0
      %1527 = vmatprep.subr.bf16.mxu0 0
      %1528 = vmatpush1.bf16.msra.mxu0 0
      %1529 = vmatprep.subr.bf16.mxu0 0
      %1530 = vmatpush1.bf16.msra.mxu0 0
      %1531 = vmatprep.subr.bf16.mxu0 0
      %1532 = vmatpush1.bf16.msra.mxu0 0
      %1533 = vmatprep.subr.bf16.mxu0 0
      %1534 = vmatpush1.bf16.msra.mxu0 0
      %1535 = vmatprep.subr.bf16.mxu0 0
      %1536 = vmatpush1.bf16.msra.mxu0 0
      %1537 = vmatprep.subr.bf16.mxu0 0
      %1538 = vmatpush1.bf16.msra.mxu0 0
      %1539 = vmatprep.subr.bf16.mxu0 0
      %1540 = vmatpush1.bf16.msra.mxu0 0
      %1541 = vmatprep.subr.bf16.mxu0 0
      %1542 = vmatpush1.bf16.msra.mxu0 0
      %1543 = vmatprep.mubr.bf16.mxu0 0
      %1544 = vmatmul.mubr.bf16.gmra.mrb[0].mxu0 %v1509
      %v1545 = vpop.f32.mrb[0].mxu0
      %v1546 = vadd.f32 0.0, %v1545
      %v1547 = vpop.f32.mrb[0].mxu0
      %v1548 = vpop.f32.mrb[0].mxu0
      %v1549 = vadd.f32 0.0, %v1548
      %v1550 = vpop.f32.mrb[0].mxu0
      %1551 = vdwg.mxu0
      %s1552 = sadd.s32 %s769, %s1504
      %s1553 = smul.u32 %s1552, 16
      %s1554 = scalar_lea.vmem [#allocation3], %s1553
      %v1555 = vld [vmem:[%s1554] sm:$0xff]
      %v1556 = vld [vmem:[%s1554 + $0x8] sm:$0xff]
      %v1557 = vadd.f32 %v1555, %v1546
      %v1558 = vadd.f32 %v1556, %v1549
      %v1559 = vxor.u32 %v1557, 2147483648
      %v1560 = vxor.u32 %v1558, 2147483648
      %v1561 = vmul.f32 %v1559, 1.442695
      %v1562 = vpow.pop %v1561
      %v1563 = vmul.f32 %v1560, 1.442695
      %v1564 = vpow.pop %v1563
      %v1565 = vadd.f32 %v1562, 1.0
      %v1566 = vadd.f32 %v1564, 1.0
      %v1567 = vrcp.pop %v1565
      %v1568 = vmul.f32 1.0, %v1567
      %v1569 = vrcp.pop %v1566
      %v1570 = vmul.f32 1.0, %v1569
      %v1571 = vadd.f32 %v1546, %v855
      %v1572 = vadd.f32 %v1549, %v855
      %1575 = vrot.lane.b32.xlu0 %v1571, 64
      %v1576 = vpop.permute.xlu0 %1575
      %1577 = vrot.lane.b32.xlu0 %v1572, 64
      %v1578 = vpop.permute.xlu0 %1577
      %v1581 = vmul.f32 %v1568, %v1576
      %v1582 = vmul.f32 %v1570, %v1578
      %1585 = vrot.lane.b32.xlu0 %v1581, 64
      %v1586 = vpop.permute.xlu0 %1585
      %1587 = vrot.lane.b32.xlu0 %v1582, 64
      %v1588 = vpop.permute.xlu0 %1587
      %v1591 = vadd.f32 %v1555, %v1586
      %v1592 = vadd.f32 %v1556, %v1588
      %v1593 = vtanh.pop %v1591
      %v1594 = vtanh.pop %v1592
      %v1595 = vsub.f32 1.0, %v1568
      %v1596 = vsub.f32 1.0, %v1570
      %1599 = vrot.lane.b32.xlu0 %v1593, 96
      %v1600 = vpop.permute.xlu0 %1599
      %1601 = vrot.lane.b32.xlu0 %v1594, 96
      %v1602 = vpop.permute.xlu0 %1601
      %v1605 = vmul.f32 %v1595, %v1600
      %v1606 = vmul.f32 %v1596, %v1602
      %1609 = vrot.lane.b32.xlu0 %v1505, 32
      %v1610 = vpop.permute.xlu0 %1609
      %1611 = vrot.lane.b32.xlu0 %v1506, 32
      %v1612 = vpop.permute.xlu0 %1611
      %v1615 = vmul.f32 %v1568, %v1610
      %v1616 = vmul.f32 %v1570, %v1612
      %v1617 = vadd.f32 %v1605, %v1615
      %v1618 = vadd.f32 %v1606, %v1616
      %1621 = vrot.lane.b32.xlu0 %v1617, 96
      %v1622 = vpop.permute.xlu0 %1621
      %1623 = vrot.lane.b32.xlu0 %v1618, 96
      %v1624 = vpop.permute.xlu0 %1623
      %1627 = vst.msk [vmem:[#allocation2] sm:$0xff] %vm766, %v1622
      %1628 = vst.msk [vmem:[#allocation2 + $0x8] sm:$0xff] %vm766, %v1624
      %v1629 = vpack.c.bf16 %v1618, %v1617
      %v1631 = vunpack.c.l.b16 %v1629
      %v1632 = vunpack.c.h.b16 %v1629
      %v1633 = vpack.c.b16 %v1631, %v1631
      %v1634 = vpack.c.b16 %v1632, %v1632
      %1635 = vrot.lane.b32.xlu0 %v1633, 96
      %v1636 = vpop.permute.xlu0 %1635
      %1637 = vrot.lane.b32.xlu0 %v1634, 96
      %v1638 = vpop.permute.xlu0 %1637
      %s1641 = smul.u32 %s1504, 2
      %s1642 = smul.addr %s1641, 4
      %s1643 = scalar_lea.vmem %s238, %s1642
      %1644 = vst.msk [vmem:[%s1643] sm:$0xf] %vm930, %v1636
      %1645 = vst.msk [vmem:[%s1643 + $0x4] sm:$0xf] %vm930, %v1638
      %s1646 = smul.u32 %s16, 4294967291
      %s1647 = sadd.s32 %s1646, 6
      %v1648 = vld [vmem:[#allocation2] sm:$0xff]
      %v1649 = vld [vmem:[#allocation2 + $0x8] sm:$0xff]
      %v1650 = vpack.c.bf16 %v1649, %v1648
      %v1652 = vsel %vm766, %v1650, 0
      %1654 = vmatprep.subr.bf16.mxu0 0
      %1655 = vmatpush1.bf16.msra.mxu0 %v782
      %1656 = vmatprep.subr.bf16.mxu0 0
      %1657 = vmatpush1.bf16.msra.mxu0 %v783
      %1658 = vmatprep.subr.bf16.mxu0 0
      %1659 = vmatpush1.bf16.msra.mxu0 0
      %1660 = vmatprep.subr.bf16.mxu0 0
      %1661 = vmatpush1.bf16.msra.mxu0 0
      %1662 = vmatprep.subr.bf16.mxu0 0
      %1663 = vmatpush1.bf16.msra.mxu0 0
      %1664 = vmatprep.subr.bf16.mxu0 0
      %1665 = vmatpush1.bf16.msra.mxu0 0
      %1666 = vmatprep.subr.bf16.mxu0 0
      %1667 = vmatpush1.bf16.msra.mxu0 0
      %1668 = vmatprep.subr.bf16.mxu0 0
      %1669 = vmatpush1.bf16.msra.mxu0 0
      %1670 = vmatprep.subr.bf16.mxu0 0
      %1671 = vmatpush1.bf16.msra.mxu0 0
      %1672 = vmatprep.subr.bf16.mxu0 0
      %1673 = vmatpush1.bf16.msra.mxu0 0
      %1674 = vmatprep.subr.bf16.mxu0 0
      %1675 = vmatpush1.bf16.msra.mxu0 0
      %1676 = vmatprep.subr.bf16.mxu0 0
      %1677 = vmatpush1.bf16.msra.mxu0 0
      %1678 = vmatprep.subr.bf16.mxu0 0
      %1679 = vmatpush1.bf16.msra.mxu0 0
      %1680 = vmatprep.subr.bf16.mxu0 0
      %1681 = vmatpush1.bf16.msra.mxu0 0
      %1682 = vmatprep.subr.bf16.mxu0 0
      %1683 = vmatpush1.bf16.msra.mxu0 0
      %1684 = vmatprep.subr.bf16.mxu0 0
      %1685 = vmatpush1.bf16.msra.mxu0 0
      %1686 = vmatprep.mubr.bf16.mxu0 0
      %1687 = vmatmul.mubr.bf16.gmra.mrb[0].mxu0 %v1652
      %v1688 = vpop.f32.mrb[0].mxu0
      %v1689 = vadd.f32 0.0, %v1688
      %v1690 = vpop.f32.mrb[0].mxu0
      %v1691 = vpop.f32.mrb[0].mxu0
      %v1692 = vadd.f32 0.0, %v1691
      %v1693 = vpop.f32.mrb[0].mxu0
      %1694 = vdwg.mxu0
      %s1695 = sadd.s32 %s769, %s1647
      %s1696 = smul.u32 %s1695, 16
      %s1697 = scalar_lea.vmem [#allocation3], %s1696
      %v1698 = vld [vmem:[%s1697] sm:$0xff]
      %v1699 = vld [vmem:[%s1697 + $0x8] sm:$0xff]
      %v1700 = vadd.f32 %v1698, %v1689
      %v1701 = vadd.f32 %v1699, %v1692
      %v1702 = vxor.u32 %v1700, 2147483648
      %v1703 = vxor.u32 %v1701, 2147483648
      %v1704 = vmul.f32 %v1702, 1.442695
      %v1705 = vpow.pop %v1704
      %v1706 = vmul.f32 %v1703, 1.442695
      %v1707 = vpow.pop %v1706
      %v1708 = vadd.f32 %v1705, 1.0
      %v1709 = vadd.f32 %v1707, 1.0
      %v1710 = vrcp.pop %v1708
      %v1711 = vmul.f32 1.0, %v1710
      %v1712 = vrcp.pop %v1709
      %v1713 = vmul.f32 1.0, %v1712
      %v1714 = vadd.f32 %v1689, %v855
      %v1715 = vadd.f32 %v1692, %v855
      %1718 = vrot.lane.b32.xlu0 %v1714, 64
      %v1719 = vpop.permute.xlu0 %1718
      %1720 = vrot.lane.b32.xlu0 %v1715, 64
      %v1721 = vpop.permute.xlu0 %1720
      %v1724 = vmul.f32 %v1711, %v1719
      %v1725 = vmul.f32 %v1713, %v1721
      %1728 = vrot.lane.b32.xlu0 %v1724, 64
      %v1729 = vpop.permute.xlu0 %1728
      %1730 = vrot.lane.b32.xlu0 %v1725, 64
      %v1731 = vpop.permute.xlu0 %1730
      %v1734 = vadd.f32 %v1698, %v1729
      %v1735 = vadd.f32 %v1699, %v1731
      %v1736 = vtanh.pop %v1734
      %v1737 = vtanh.pop %v1735
      %v1738 = vsub.f32 1.0, %v1711
      %v1739 = vsub.f32 1.0, %v1713
      %1742 = vrot.lane.b32.xlu0 %v1736, 96
      %v1743 = vpop.permute.xlu0 %1742
      %1744 = vrot.lane.b32.xlu0 %v1737, 96
      %v1745 = vpop.permute.xlu0 %1744
      %v1748 = vmul.f32 %v1738, %v1743
      %v1749 = vmul.f32 %v1739, %v1745
      %1752 = vrot.lane.b32.xlu0 %v1648, 32
      %v1753 = vpop.permute.xlu0 %1752
      %1754 = vrot.lane.b32.xlu0 %v1649, 32
      %v1755 = vpop.permute.xlu0 %1754
      %v1758 = vmul.f32 %v1711, %v1753
      %v1759 = vmul.f32 %v1713, %v1755
      %v1760 = vadd.f32 %v1748, %v1758
      %v1761 = vadd.f32 %v1749, %v1759
      %1764 = vrot.lane.b32.xlu0 %v1760, 96
      %v1765 = vpop.permute.xlu0 %1764
      %1766 = vrot.lane.b32.xlu0 %v1761, 96
      %v1767 = vpop.permute.xlu0 %1766
      %1770 = vst.msk [vmem:[#allocation2] sm:$0xff] %vm766, %v1765
      %1771 = vst.msk [vmem:[#allocation2 + $0x8] sm:$0xff] %vm766, %v1767
      %v1772 = vpack.c.bf16 %v1761, %v1760
      %v1774 = vunpack.c.l.b16 %v1772
      %v1775 = vunpack.c.h.b16 %v1772
      %v1776 = vpack.c.b16 %v1774, %v1774
      %v1777 = vpack.c.b16 %v1775, %v1775
      %1778 = vrot.lane.b32.xlu0 %v1776, 96
      %v1779 = vpop.permute.xlu0 %1778
      %1780 = vrot.lane.b32.xlu0 %v1777, 96
      %v1781 = vpop.permute.xlu0 %1780
      %s1784 = smul.u32 %s1647, 2
      %s1785 = smul.addr %s1784, 4
      %s1786 = scalar_lea.vmem %s238, %s1785
      %1787 = vst.msk [vmem:[%s1786] sm:$0xf] %vm930, %v1779
      %1788 = vst.msk [vmem:[%s1786 + $0x4] sm:$0xf] %vm930, %v1781
      %s1789 = smul.u32 %s16, 4294967289
      %s1790 = sadd.s32 %s1789, 7
      %v1791 = vld [vmem:[#allocation2] sm:$0xff]
      %v1792 = vld [vmem:[#allocation2 + $0x8] sm:$0xff]
      %v1793 = vpack.c.bf16 %v1792, %v1791
      %v1795 = vsel %vm766, %v1793, 0
      %1797 = vmatprep.subr.bf16.mxu0 0
      %1798 = vmatpush1.bf16.msra.mxu0 %v782
      %1799 = vmatprep.subr.bf16.mxu0 0
      %1800 = vmatpush1.bf16.msra.mxu0 %v783
      %1801 = vmatprep.subr.bf16.mxu0 0
      %1802 = vmatpush1.bf16.msra.mxu0 0
      %1803 = vmatprep.subr.bf16.mxu0 0
      %1804 = vmatpush1.bf16.msra.mxu0 0
      %1805 = vmatprep.subr.bf16.mxu0 0
      %1806 = vmatpush1.bf16.msra.mxu0 0
      %1807 = vmatprep.subr.bf16.mxu0 0
      %1808 = vmatpush1.bf16.msra.mxu0 0
      %1809 = vmatprep.subr.bf16.mxu0 0
      %1810 = vmatpush1.bf16.msra.mxu0 0
      %1811 = vmatprep.subr.bf16.mxu0 0
      %1812 = vmatpush1.bf16.msra.mxu0 0
      %1813 = vmatprep.subr.bf16.mxu0 0
      %1814 = vmatpush1.bf16.msra.mxu0 0
      %1815 = vmatprep.subr.bf16.mxu0 0
      %1816 = vmatpush1.bf16.msra.mxu0 0
      %1817 = vmatprep.subr.bf16.mxu0 0
      %1818 = vmatpush1.bf16.msra.mxu0 0
      %1819 = vmatprep.subr.bf16.mxu0 0
      %1820 = vmatpush1.bf16.msra.mxu0 0
      %1821 = vmatprep.subr.bf16.mxu0 0
      %1822 = vmatpush1.bf16.msra.mxu0 0
      %1823 = vmatprep.subr.bf16.mxu0 0
      %1824 = vmatpush1.bf16.msra.mxu0 0
      %1825 = vmatprep.subr.bf16.mxu0 0
      %1826 = vmatpush1.bf16.msra.mxu0 0
      %1827 = vmatprep.subr.bf16.mxu0 0
      %1828 = vmatpush1.bf16.msra.mxu0 0
      %1829 = vmatprep.mubr.bf16.mxu0 0
      %1830 = vmatmul.mubr.bf16.gmra.mrb[0].mxu0 %v1795
      %v1831 = vpop.f32.mrb[0].mxu0
      %v1832 = vadd.f32 0.0, %v1831
      %v1833 = vpop.f32.mrb[0].mxu0
      %v1834 = vpop.f32.mrb[0].mxu0
      %v1835 = vadd.f32 0.0, %v1834
      %v1836 = vpop.f32.mrb[0].mxu0
      %1837 = vdwg.mxu0
      %s1838 = sadd.s32 %s769, %s1790
      %s1839 = smul.u32 %s1838, 16
      %s1840 = scalar_lea.vmem [#allocation3], %s1839
      %v1841 = vld [vmem:[%s1840] sm:$0xff]
      %v1842 = vld [vmem:[%s1840 + $0x8] sm:$0xff]
      %v1843 = vadd.f32 %v1841, %v1832
      %v1844 = vadd.f32 %v1842, %v1835
      %v1845 = vxor.u32 %v1843, 2147483648
      %v1846 = vxor.u32 %v1844, 2147483648
      %v1847 = vmul.f32 %v1845, 1.442695
      %v1848 = vpow.pop %v1847
      %v1849 = vmul.f32 %v1846, 1.442695
      %v1850 = vpow.pop %v1849
      %v1851 = vadd.f32 %v1848, 1.0
      %v1852 = vadd.f32 %v1850, 1.0
      %v1853 = vrcp.pop %v1851
      %v1854 = vmul.f32 1.0, %v1853
      %v1855 = vrcp.pop %v1852
      %v1856 = vmul.f32 1.0, %v1855
      %v1857 = vadd.f32 %v1832, %v855
      %v1858 = vadd.f32 %v1835, %v855
      %1861 = vrot.lane.b32.xlu0 %v1857, 64
      %v1862 = vpop.permute.xlu0 %1861
      %1863 = vrot.lane.b32.xlu0 %v1858, 64
      %v1864 = vpop.permute.xlu0 %1863
      %v1867 = vmul.f32 %v1854, %v1862
      %v1868 = vmul.f32 %v1856, %v1864
      %1871 = vrot.lane.b32.xlu0 %v1867, 64
      %v1872 = vpop.permute.xlu0 %1871
      %1873 = vrot.lane.b32.xlu0 %v1868, 64
      %v1874 = vpop.permute.xlu0 %1873
      %v1877 = vadd.f32 %v1841, %v1872
      %v1878 = vadd.f32 %v1842, %v1874
      %v1879 = vtanh.pop %v1877
      %v1880 = vtanh.pop %v1878
      %v1881 = vsub.f32 1.0, %v1854
      %v1882 = vsub.f32 1.0, %v1856
      %1885 = vrot.lane.b32.xlu0 %v1879, 96
      %v1886 = vpop.permute.xlu0 %1885
      %1887 = vrot.lane.b32.xlu0 %v1880, 96
      %v1888 = vpop.permute.xlu0 %1887
      %v1891 = vmul.f32 %v1881, %v1886
      %v1892 = vmul.f32 %v1882, %v1888
      %1895 = vrot.lane.b32.xlu0 %v1791, 32
      %v1896 = vpop.permute.xlu0 %1895
      %1897 = vrot.lane.b32.xlu0 %v1792, 32
      %v1898 = vpop.permute.xlu0 %1897
      %v1901 = vmul.f32 %v1854, %v1896
      %v1902 = vmul.f32 %v1856, %v1898
      %v1903 = vadd.f32 %v1891, %v1901
      %v1904 = vadd.f32 %v1892, %v1902
      %1907 = vrot.lane.b32.xlu0 %v1903, 96
      %v1908 = vpop.permute.xlu0 %1907
      %1909 = vrot.lane.b32.xlu0 %v1904, 96
      %v1910 = vpop.permute.xlu0 %1909
      %1913 = vst.msk [vmem:[#allocation2] sm:$0xff] %vm766, %v1908
      %1914 = vst.msk [vmem:[#allocation2 + $0x8] sm:$0xff] %vm766, %v1910
      %v1915 = vpack.c.bf16 %v1904, %v1903
      %v1917 = vunpack.c.l.b16 %v1915
      %v1918 = vunpack.c.h.b16 %v1915
      %v1919 = vpack.c.b16 %v1917, %v1917
      %v1920 = vpack.c.b16 %v1918, %v1918
      %1921 = vrot.lane.b32.xlu0 %v1919, 96
      %v1922 = vpop.permute.xlu0 %1921
      %1923 = vrot.lane.b32.xlu0 %v1920, 96
      %v1924 = vpop.permute.xlu0 %1923
      %s1927 = smul.u32 %s1790, 2
      %s1928 = smul.addr %s1927, 4
      %s1929 = scalar_lea.vmem %s238, %s1928
      %1930 = vst.msk [vmem:[%s1929] sm:$0xf] %vm930, %v1922
      %1931 = vst.msk [vmem:[%s1929 + $0x4] sm:$0xf] %vm930, %v1924
      %p1932 = scmp.lt.s32.totalorder %s16, 1
      %s1933 = scalar_select %p1932, %s16, 1
      %s1934 = smul.addr %s1933, 16
      %s1935 = smul.addr %s1934, 4
      %s1936 = scalar_lea.vmem %s5, %s1935
      // Predicated region
      $region45: #{birnn_forward.4} parent=39 // pred_check
        %p1937 = pneg %p149
      $region46: #{birnn_forward.4} parent=39 // pred_check_branch
        %1939 = sbr.rel (%p1937) target = $region48
      $region47: #{birnn_forward.4} parent=39 // pred_region
        _
      $region48: #{birnn_forward.4} parent=39 // pred_fallthru
        _
    $region40: #{birnn_forward.4} parent=5 // pred_fallthru
      _
    %p1940 = scmp.le.s32.totalorder 2, %s11
    // Predicated region
    $region49: #{birnn_forward.4} parent=5 // pred_check
      %p1941 = pneg %p1940
    $region50: #{birnn_forward.4} parent=5 // pred_check_branch
      %1943 = sbr.rel (%p1941) target = $region52
    $region51: #{birnn_forward.4} parent=5 // pred_region
      %s1944 = ssub.s32 %s11, 2
      // Predicated region
      $region53: #{birnn_forward.4} parent=51 // pred_check
        %p1945 = pneg %p155
      $region54: #{birnn_forward.4} parent=51 // pred_check_branch
        %1947 = sbr.rel (%p1945) target = $region56
      $region55: #{birnn_forward.4} parent=51 // pred_region
        %p1948 = scmp.lt.s32.totalorder %s17, 1
        %s1949 = scalar_select %p1948, %s17, 1
        %s1950 = smul.addr %s1949, 16
        %s1951 = smul.addr %s1950, 4
        %s1952 = scalar_lea.vmem %s5, %s1951
      $region56: #{birnn_forward.4} parent=51 // pred_fallthru
        _
    $region52: #{birnn_forward.4} parent=5 // pred_fallthru
      _
  $region6: #{birnn_forward.4} parent=0 // loop_footer
    %s15 = sadd.s32 1, %s11
  $region7: #{birnn_forward.4} parent=0 // loop_footer_branch
    %10 = sbr.rel target = $region3
  $region8: #{birnn_forward.4} parent=0 // loop_exit
    _

</llo_original>
